<compile_context>
chip_gen: v7x
topology: tpu7x:2x2x1
jax: 0.10.0
libtpu: 0.0.40
codegen_flags: <defaults>
</compile_context>

<pallas_src>
import jax
import jax.numpy as jnp
from jax.experimental import pallas as pl
from jax.experimental.pallas import tpu as pltpu

WIDTH = 200            # logical hidden width
WIDTH_PAD = 256        # MXU/lane-aligned hidden width
IN_FEATURES = 5
IN_PAD = 8             # sublane-aligned input width
OUT_FEATURES = 3
OUT_PAD = 128          # lane-dense padded output width
N_MID_LAYERS = 7       # fc2 .. fc8


def _styler_kernel(x_ref, w1_ref, b1_ref, wmid_ref, bmid_ref, w9_ref, b9_ref,
                   o_ref):
    """Fused 9-layer MLP forward for one batch tile.

    All matmuls run on the MXU with bf16 inputs and f32 accumulation; the
    bias add + ReLU epilogue is done in f32 on the VPU, then the activation
    is narrowed to bf16 for the next layer.
    """
    # Layer 1 (K padded 5 -> 8): tiny K, <1% of total FLOPs.
    y = jnp.dot(x_ref[...], w1_ref[...], preferred_element_type=jnp.float32)
    h = jnp.maximum(y + b1_ref[...], 0.0).astype(jnp.bfloat16)

    # Layers 2..8: seven 256x256 (padded) layers, weights stacked on axis 0.
    for l in range(N_MID_LAYERS):
        y = jnp.dot(h, wmid_ref[l], preferred_element_type=jnp.float32)
        h = jnp.maximum(y + bmid_ref[l], 0.0).astype(jnp.bfloat16)

    # Layer 9: 256 -> 128 (logical 200 -> 3); padded lanes are exactly zero.
    y = jnp.dot(h, w9_ref[...], preferred_element_type=jnp.float32)
    o_ref[...] = jnp.maximum(y + b9_ref[...], 0.0).astype(o_ref.dtype)


def _round_up(v, m):
    return ((v + m - 1) // m) * m


def styler_forward(x, params, *, tm=1024):
    """x: [N, 5] float32. params: list of 9 (W, b); W is [in, out], b is [out]."""
    n, f_in = x.shape
    assert f_in == IN_FEATURES
    assert len(params) == 9

    # --- pick the batch tile (static Python ints) ---------------------------
    tm = max(128, (int(tm) // 128) * 128)      # multiple of 128 MXU rows
    tm = min(tm, _round_up(n, 128))            # never larger than the batch
    if n > 128:
        # keep >= 2 grid steps so v7x's 2 TensorCores both get work
        tm = min(tm, _round_up(_round_up(n, 2) // 2, 128))
    tm = max(tm, 128)
    n_pad = _round_up(n, tm)

    # --- prep inputs / weights ----------------------------------------------
    # All zero-padding is exact: padded weight rows/cols and biases are zero,
    # so padded lanes carry relu(0 + 0) = 0 through every layer.
    x_p = jnp.zeros((n_pad, IN_PAD), jnp.bfloat16)
    x_p = x_p.at[:n, :IN_FEATURES].set(x.astype(jnp.bfloat16))

    (w1, b1) = params[0]
    mids = params[1:1 + N_MID_LAYERS]
    (w9, b9) = params[8]

    w1_p = jnp.zeros((IN_PAD, WIDTH_PAD), jnp.bfloat16)
    w1_p = w1_p.at[:IN_FEATURES, :WIDTH].set(w1.astype(jnp.bfloat16))
    b1_p = jnp.zeros((1, WIDTH_PAD), jnp.float32)
    b1_p = b1_p.at[0, :WIDTH].set(b1.astype(jnp.float32))

    wmid_p = jnp.zeros((N_MID_LAYERS, WIDTH_PAD, WIDTH_PAD), jnp.bfloat16)
    wmid_p = wmid_p.at[:, :WIDTH, :WIDTH].set(
        jnp.stack([w.astype(jnp.bfloat16) for (w, _) in mids]))
    bmid_p = jnp.zeros((N_MID_LAYERS, 1, WIDTH_PAD), jnp.float32)
    bmid_p = bmid_p.at[:, 0, :WIDTH].set(
        jnp.stack([b.astype(jnp.float32) for (_, b) in mids]))

    w9_p = jnp.zeros((WIDTH_PAD, OUT_PAD), jnp.bfloat16)
    w9_p = w9_p.at[:WIDTH, :OUT_FEATURES].set(w9.astype(jnp.bfloat16))
    b9_p = jnp.zeros((1, OUT_PAD), jnp.float32)
    b9_p = b9_p.at[0, :OUT_FEATURES].set(b9.astype(jnp.float32))

    grid = (n_pad // tm,)
    out = pl.pallas_call(
        _styler_kernel,
        out_shape=jax.ShapeDtypeStruct((n_pad, OUT_PAD), jnp.float32),
        grid_spec=pltpu.PrefetchScalarGridSpec(
            num_scalar_prefetch=0,
            grid=grid,
            in_specs=[
                pl.BlockSpec((tm, IN_PAD), lambda i: (i, 0)),             # x tile
                pl.BlockSpec((IN_PAD, WIDTH_PAD), lambda i: (0, 0)),      # W1
                pl.BlockSpec((1, WIDTH_PAD), lambda i: (0, 0)),           # b1
                pl.BlockSpec((N_MID_LAYERS, WIDTH_PAD, WIDTH_PAD),
                             lambda i: (0, 0, 0)),                        # W2..W8
                pl.BlockSpec((N_MID_LAYERS, 1, WIDTH_PAD),
                             lambda i: (0, 0, 0)),                        # b2..b8
                pl.BlockSpec((WIDTH_PAD, OUT_PAD), lambda i: (0, 0)),     # W9 (pad)
                pl.BlockSpec((1, OUT_PAD), lambda i: (0, 0)),             # b9 (pad)
            ],
            out_specs=pl.BlockSpec((tm, OUT_PAD), lambda i: (i, 0)),
        ),
        compiler_params=pltpu.CompilerParams(
            dimension_semantics=("parallel",),
            # Large tiles + resident weights comfortably fit; raise the scoped
            # limit past v5e's ~16 MiB default so tm >= 1024 always compiles.
            vmem_limit_bytes=48 * 1024 * 1024,
        ),
    )(x_p, w1_p, b1_p, wmid_p, bmid_p, w9_p, b9_p)

    return out[:n, :OUT_FEATURES]


def init_params(key):
    """Deterministic init mimicking torch.nn.Linear (uniform +/- 1/sqrt(fan_in))."""
    dims = [IN_FEATURES] + [WIDTH] * 8 + [OUT_FEATURES]
    params = []
    for i in range(9):
        fan_in, fan_out = dims[i], dims[i + 1]
        key, kw, kb = jax.random.split(key, 3)
        bound = 1.0 / jnp.sqrt(float(fan_in))
        w = jax.random.uniform(kw, (fan_in, fan_out), jnp.float32, -bound, bound)
        b = jax.random.uniform(kb, (fan_out,), jnp.float32, -bound, bound)
        params.append((w, b))
    return params


def reference_forward_bf16(x, params):
    """Pure-JAX reference with the same bf16-inputs / f32-accumulation math."""
    h = x
    for (w, b) in params:
        y = jnp.dot(h.astype(jnp.bfloat16), w.astype(jnp.bfloat16),
                    preferred_element_type=jnp.float32)
        h = jnp.maximum(y + b.astype(jnp.float32), 0.0)
    return h


def reference_forward_f32(x, params):
    h = x
    for (w, b) in params:
        h = jnp.maximum(h @ w + b, 0.0)
    return h


if __name__ == "__main__":
    key = jax.random.PRNGKey(0)
    key, kx = jax.random.split(key)

    # Small test: N not a multiple of 128 so the batch-padding path runs; the
    # wrapper auto-caps the tile to 256 so the grid has 2 steps (v7x megacore).
    N = 384
    x = jax.random.normal(kx, (N, IN_FEATURES), jnp.float32)
    params = init_params(key)

    out = styler_forward(x, params)
    out = jax.block_until_ready(out)
    assert out.shape == (N, OUT_FEATURES)

    # Tight check against a reference using the same bf16/f32 matmul math.
    ref_bf16 = reference_forward_bf16(x, params)
    assert jnp.allclose(out, ref_bf16, atol=2e-3, rtol=2e-3), \
        "mismatch vs bf16-matched JAX reference"

    # Loose sanity check against the full-f32 reference (bf16 matmul error).
    ref_f32 = reference_forward_f32(x, params)
    assert jnp.allclose(out, ref_f32, atol=5e-2, rtol=5e-2), \
        "mismatch vs f32 JAX reference"

    print("KERNEL_OK")
</pallas_src>

<mosaic_0001>
module attributes {stable_mosaic.version = 11 : i64} {
  func.func @_styler_kernel(%arg0: i32, %arg1: memref<256x8xbf16, #tpu.memory_space<vmem>>, %arg2: memref<8x256xbf16, #tpu.memory_space<vmem>>, %arg3: memref<1x256xf32, #tpu.memory_space<vmem>>, %arg4: memref<7x256x256xbf16, #tpu.memory_space<vmem>>, %arg5: memref<7x1x256xf32, #tpu.memory_space<vmem>>, %arg6: memref<256x128xbf16, #tpu.memory_space<vmem>>, %arg7: memref<1x128xf32, #tpu.memory_space<vmem>>, %arg8: memref<256x128xf32, #tpu.memory_space<vmem>>) attributes {dimension_semantics = [#tpu.dimension_semantics<parallel>], iteration_bounds = array<i64: 2>, scalar_prefetch = 0 : i64, scratch_operands = 0 : i64, tpu.core_type = #tpu.core_type<tc>, window_params = [{transform_indices = @transform_0, window_bounds = array<i64: 256, 8>}, {pipeline_mode = #tpu.pipeline_mode<synchronous>, transform_indices = @transform_1, window_bounds = array<i64: 8, 256>}, {pipeline_mode = #tpu.pipeline_mode<synchronous>, transform_indices = @transform_2, window_bounds = array<i64: 1, 256>}, {pipeline_mode = #tpu.pipeline_mode<synchronous>, transform_indices = @transform_3, window_bounds = array<i64: 7, 256, 256>}, {pipeline_mode = #tpu.pipeline_mode<synchronous>, transform_indices = @transform_4, window_bounds = array<i64: 7, 1, 256>}, {pipeline_mode = #tpu.pipeline_mode<synchronous>, transform_indices = @transform_5, window_bounds = array<i64: 256, 128>}, {pipeline_mode = #tpu.pipeline_mode<synchronous>, transform_indices = @transform_6, window_bounds = array<i64: 1, 128>}, {transform_indices = @transform_7, window_bounds = array<i64: 256, 128>}]} {
    %c0 = arith.constant 0 : index
    %c0_0 = arith.constant 0 : index
    %0 = vector.load %arg1[%c0, %c0_0] : memref<256x8xbf16, #tpu.memory_space<vmem>>, vector<256x8xbf16>
    %c0_1 = arith.constant 0 : index
    %c0_2 = arith.constant 0 : index
    %1 = vector.load %arg2[%c0_1, %c0_2] : memref<8x256xbf16, #tpu.memory_space<vmem>>, vector<8x256xbf16>
    %cst = arith.constant dense<0.000000e+00> : vector<256x256xf32>
    %2 = tpu.matmul %0, %1, %cst {dimension_numbers = #tpu.dot_dimension_numbers<[1], [0], [0], [1], [0, 0, 1, 1], [], []>} : vector<256x8xbf16>, vector<8x256xbf16>, vector<256x256xf32> -> vector<256x256xf32>
    %c0_3 = arith.constant 0 : index
    %c0_4 = arith.constant 0 : index
    %3 = vector.load %arg3[%c0_3, %c0_4] : memref<1x256xf32, #tpu.memory_space<vmem>>, vector<1x256xf32>
    %4 = vector.broadcast %3 : vector<1x256xf32> to vector<256x256xf32>
    %5 = arith.addf %2, %4 : vector<256x256xf32>
    %cst_5 = arith.constant 0.000000e+00 : f32
    %6 = vector.broadcast %cst_5 : f32 to vector<256x256xf32>
    %7 = arith.maximumf %5, %6 : vector<256x256xf32>
    %8 = arith.truncf %7 : vector<256x256xf32> to vector<256x256xbf16>
    %c0_6 = arith.constant 0 : index
    %c0_7 = arith.constant 0 : index
    %c0_8 = arith.constant 0 : index
    %9 = vector.load %arg4[%c0_6, %c0_7, %c0_8] : memref<7x256x256xbf16, #tpu.memory_space<vmem>>, vector<1x256x256xbf16>
    %10 = vector.shape_cast %9 : vector<1x256x256xbf16> to vector<256x256xbf16>
    %cst_9 = arith.constant dense<0.000000e+00> : vector<256x256xf32>
    %11 = tpu.matmul %8, %10, %cst_9 {dimension_numbers = #tpu.dot_dimension_numbers<[1], [0], [0], [1], [0, 0, 1, 1], [], []>} : vector<256x256xbf16>, vector<256x256xbf16>, vector<256x256xf32> -> vector<256x256xf32>
    %c0_10 = arith.constant 0 : index
    %c0_11 = arith.constant 0 : index
    %c0_12 = arith.constant 0 : index
    %12 = vector.load %arg5[%c0_10, %c0_11, %c0_12] : memref<7x1x256xf32, #tpu.memory_space<vmem>>, vector<1x1x256xf32>
    %13 = vector.shape_cast %12 : vector<1x1x256xf32> to vector<1x256xf32>
    %14 = vector.broadcast %13 : vector<1x256xf32> to vector<256x256xf32>
    %15 = arith.addf %11, %14 : vector<256x256xf32>
    %cst_13 = arith.constant 0.000000e+00 : f32
    %16 = vector.broadcast %cst_13 : f32 to vector<256x256xf32>
    %17 = arith.maximumf %15, %16 : vector<256x256xf32>
    %18 = arith.truncf %17 : vector<256x256xf32> to vector<256x256xbf16>
    %c1 = arith.constant 1 : index
    %c0_14 = arith.constant 0 : index
    %c0_15 = arith.constant 0 : index
    %19 = vector.load %arg4[%c1, %c0_14, %c0_15] : memref<7x256x256xbf16, #tpu.memory_space<vmem>>, vector<1x256x256xbf16>
    %20 = vector.shape_cast %19 : vector<1x256x256xbf16> to vector<256x256xbf16>
    %cst_16 = arith.constant dense<0.000000e+00> : vector<256x256xf32>
    %21 = tpu.matmul %18, %20, %cst_16 {dimension_numbers = #tpu.dot_dimension_numbers<[1], [0], [0], [1], [0, 0, 1, 1], [], []>} : vector<256x256xbf16>, vector<256x256xbf16>, vector<256x256xf32> -> vector<256x256xf32>
    %c1_17 = arith.constant 1 : index
    %c0_18 = arith.constant 0 : index
    %c0_19 = arith.constant 0 : index
    %22 = vector.load %arg5[%c1_17, %c0_18, %c0_19] : memref<7x1x256xf32, #tpu.memory_space<vmem>>, vector<1x1x256xf32>
    %23 = vector.shape_cast %22 : vector<1x1x256xf32> to vector<1x256xf32>
    %24 = vector.broadcast %23 : vector<1x256xf32> to vector<256x256xf32>
    %25 = arith.addf %21, %24 : vector<256x256xf32>
    %cst_20 = arith.constant 0.000000e+00 : f32
    %26 = vector.broadcast %cst_20 : f32 to vector<256x256xf32>
    %27 = arith.maximumf %25, %26 : vector<256x256xf32>
    %28 = arith.truncf %27 : vector<256x256xf32> to vector<256x256xbf16>
    %c2 = arith.constant 2 : index
    %c0_21 = arith.constant 0 : index
    %c0_22 = arith.constant 0 : index
    %29 = vector.load %arg4[%c2, %c0_21, %c0_22] : memref<7x256x256xbf16, #tpu.memory_space<vmem>>, vector<1x256x256xbf16>
    %30 = vector.shape_cast %29 : vector<1x256x256xbf16> to vector<256x256xbf16>
    %cst_23 = arith.constant dense<0.000000e+00> : vector<256x256xf32>
    %31 = tpu.matmul %28, %30, %cst_23 {dimension_numbers = #tpu.dot_dimension_numbers<[1], [0], [0], [1], [0, 0, 1, 1], [], []>} : vector<256x256xbf16>, vector<256x256xbf16>, vector<256x256xf32> -> vector<256x256xf32>
    %c2_24 = arith.constant 2 : index
    %c0_25 = arith.constant 0 : index
    %c0_26 = arith.constant 0 : index
    %32 = vector.load %arg5[%c2_24, %c0_25, %c0_26] : memref<7x1x256xf32, #tpu.memory_space<vmem>>, vector<1x1x256xf32>
    %33 = vector.shape_cast %32 : vector<1x1x256xf32> to vector<1x256xf32>
    %34 = vector.broadcast %33 : vector<1x256xf32> to vector<256x256xf32>
    %35 = arith.addf %31, %34 : vector<256x256xf32>
    %cst_27 = arith.constant 0.000000e+00 : f32
    %36 = vector.broadcast %cst_27 : f32 to vector<256x256xf32>
    %37 = arith.maximumf %35, %36 : vector<256x256xf32>
    %38 = arith.truncf %37 : vector<256x256xf32> to vector<256x256xbf16>
    %c3 = arith.constant 3 : index
    %c0_28 = arith.constant 0 : index
    %c0_29 = arith.constant 0 : index
    %39 = vector.load %arg4[%c3, %c0_28, %c0_29] : memref<7x256x256xbf16, #tpu.memory_space<vmem>>, vector<1x256x256xbf16>
    %40 = vector.shape_cast %39 : vector<1x256x256xbf16> to vector<256x256xbf16>
    %cst_30 = arith.constant dense<0.000000e+00> : vector<256x256xf32>
    %41 = tpu.matmul %38, %40, %cst_30 {dimension_numbers = #tpu.dot_dimension_numbers<[1], [0], [0], [1], [0, 0, 1, 1], [], []>} : vector<256x256xbf16>, vector<256x256xbf16>, vector<256x256xf32> -> vector<256x256xf32>
    %c3_31 = arith.constant 3 : index
    %c0_32 = arith.constant 0 : index
    %c0_33 = arith.constant 0 : index
    %42 = vector.load %arg5[%c3_31, %c0_32, %c0_33] : memref<7x1x256xf32, #tpu.memory_space<vmem>>, vector<1x1x256xf32>
    %43 = vector.shape_cast %42 : vector<1x1x256xf32> to vector<1x256xf32>
    %44 = vector.broadcast %43 : vector<1x256xf32> to vector<256x256xf32>
    %45 = arith.addf %41, %44 : vector<256x256xf32>
    %cst_34 = arith.constant 0.000000e+00 : f32
    %46 = vector.broadcast %cst_34 : f32 to vector<256x256xf32>
    %47 = arith.maximumf %45, %46 : vector<256x256xf32>
    %48 = arith.truncf %47 : vector<256x256xf32> to vector<256x256xbf16>
    %c4 = arith.constant 4 : index
    %c0_35 = arith.constant 0 : index
    %c0_36 = arith.constant 0 : index
    %49 = vector.load %arg4[%c4, %c0_35, %c0_36] : memref<7x256x256xbf16, #tpu.memory_space<vmem>>, vector<1x256x256xbf16>
    %50 = vector.shape_cast %49 : vector<1x256x256xbf16> to vector<256x256xbf16>
    %cst_37 = arith.constant dense<0.000000e+00> : vector<256x256xf32>
    %51 = tpu.matmul %48, %50, %cst_37 {dimension_numbers = #tpu.dot_dimension_numbers<[1], [0], [0], [1], [0, 0, 1, 1], [], []>} : vector<256x256xbf16>, vector<256x256xbf16>, vector<256x256xf32> -> vector<256x256xf32>
    %c4_38 = arith.constant 4 : index
    %c0_39 = arith.constant 0 : index
    %c0_40 = arith.constant 0 : index
    %52 = vector.load %arg5[%c4_38, %c0_39, %c0_40] : memref<7x1x256xf32, #tpu.memory_space<vmem>>, vector<1x1x256xf32>
    %53 = vector.shape_cast %52 : vector<1x1x256xf32> to vector<1x256xf32>
    %54 = vector.broadcast %53 : vector<1x256xf32> to vector<256x256xf32>
    %55 = arith.addf %51, %54 : vector<256x256xf32>
    %cst_41 = arith.constant 0.000000e+00 : f32
    %56 = vector.broadcast %cst_41 : f32 to vector<256x256xf32>
    %57 = arith.maximumf %55, %56 : vector<256x256xf32>
    %58 = arith.truncf %57 : vector<256x256xf32> to vector<256x256xbf16>
    %c5 = arith.constant 5 : index
    %c0_42 = arith.constant 0 : index
    %c0_43 = arith.constant 0 : index
    %59 = vector.load %arg4[%c5, %c0_42, %c0_43] : memref<7x256x256xbf16, #tpu.memory_space<vmem>>, vector<1x256x256xbf16>
    %60 = vector.shape_cast %59 : vector<1x256x256xbf16> to vector<256x256xbf16>
    %cst_44 = arith.constant dense<0.000000e+00> : vector<256x256xf32>
    %61 = tpu.matmul %58, %60, %cst_44 {dimension_numbers = #tpu.dot_dimension_numbers<[1], [0], [0], [1], [0, 0, 1, 1], [], []>} : vector<256x256xbf16>, vector<256x256xbf16>, vector<256x256xf32> -> vector<256x256xf32>
    %c5_45 = arith.constant 5 : index
    %c0_46 = arith.constant 0 : index
    %c0_47 = arith.constant 0 : index
    %62 = vector.load %arg5[%c5_45, %c0_46, %c0_47] : memref<7x1x256xf32, #tpu.memory_space<vmem>>, vector<1x1x256xf32>
    %63 = vector.shape_cast %62 : vector<1x1x256xf32> to vector<1x256xf32>
    %64 = vector.broadcast %63 : vector<1x256xf32> to vector<256x256xf32>
    %65 = arith.addf %61, %64 : vector<256x256xf32>
    %cst_48 = arith.constant 0.000000e+00 : f32
    %66 = vector.broadcast %cst_48 : f32 to vector<256x256xf32>
    %67 = arith.maximumf %65, %66 : vector<256x256xf32>
    %68 = arith.truncf %67 : vector<256x256xf32> to vector<256x256xbf16>
    %c6 = arith.constant 6 : index
    %c0_49 = arith.constant 0 : index
    %c0_50 = arith.constant 0 : index
    %69 = vector.load %arg4[%c6, %c0_49, %c0_50] : memref<7x256x256xbf16, #tpu.memory_space<vmem>>, vector<1x256x256xbf16>
    %70 = vector.shape_cast %69 : vector<1x256x256xbf16> to vector<256x256xbf16>
    %cst_51 = arith.constant dense<0.000000e+00> : vector<256x256xf32>
    %71 = tpu.matmul %68, %70, %cst_51 {dimension_numbers = #tpu.dot_dimension_numbers<[1], [0], [0], [1], [0, 0, 1, 1], [], []>} : vector<256x256xbf16>, vector<256x256xbf16>, vector<256x256xf32> -> vector<256x256xf32>
    %c6_52 = arith.constant 6 : index
    %c0_53 = arith.constant 0 : index
    %c0_54 = arith.constant 0 : index
    %72 = vector.load %arg5[%c6_52, %c0_53, %c0_54] : memref<7x1x256xf32, #tpu.memory_space<vmem>>, vector<1x1x256xf32>
    %73 = vector.shape_cast %72 : vector<1x1x256xf32> to vector<1x256xf32>
    %74 = vector.broadcast %73 : vector<1x256xf32> to vector<256x256xf32>
    %75 = arith.addf %71, %74 : vector<256x256xf32>
    %cst_55 = arith.constant 0.000000e+00 : f32
    %76 = vector.broadcast %cst_55 : f32 to vector<256x256xf32>
    %77 = arith.maximumf %75, %76 : vector<256x256xf32>
    %78 = arith.truncf %77 : vector<256x256xf32> to vector<256x256xbf16>
    %c0_56 = arith.constant 0 : index
    %c0_57 = arith.constant 0 : index
    %79 = vector.load %arg6[%c0_56, %c0_57] : memref<256x128xbf16, #tpu.memory_space<vmem>>, vector<256x128xbf16>
    %cst_58 = arith.constant dense<0.000000e+00> : vector<256x128xf32>
    %80 = tpu.matmul %78, %79, %cst_58 {dimension_numbers = #tpu.dot_dimension_numbers<[1], [0], [0], [1], [0, 0, 1, 1], [], []>} : vector<256x256xbf16>, vector<256x128xbf16>, vector<256x128xf32> -> vector<256x128xf32>
    %c0_59 = arith.constant 0 : index
    %c0_60 = arith.constant 0 : index
    %81 = vector.load %arg7[%c0_59, %c0_60] : memref<1x128xf32, #tpu.memory_space<vmem>>, vector<1x128xf32>
    %82 = vector.broadcast %81 : vector<1x128xf32> to vector<256x128xf32>
    %83 = arith.addf %80, %82 : vector<256x128xf32>
    %cst_61 = arith.constant 0.000000e+00 : f32
    %84 = vector.broadcast %cst_61 : f32 to vector<256x128xf32>
    %85 = arith.maximumf %83, %84 : vector<256x128xf32>
    %c0_62 = arith.constant 0 : index
    %c0_63 = arith.constant 0 : index
    %86 = vector.load %arg8[%c0_62, %c0_63] : memref<256x128xf32, #tpu.memory_space<vmem>>, vector<256x128xf32>
    tpu.vector_store %arg8[%c0_62, %c0_63], %85 {strides = array<i32>} : memref<256x128xf32, #tpu.memory_space<vmem>>, vector<256x128xf32>,
    return
  }
  func.func @transform_0(%arg0: i32) -> (i32, i32) {
    %c0_i32 = arith.constant 0 : i32
    %c0_i32_0 = arith.constant 0 : i32
    return %arg0, %c0_i32 : i32, i32
  }
  func.func @transform_1(%arg0: i32) -> (i32, i32) {
    %c0_i32 = arith.constant 0 : i32
    %c0_i32_0 = arith.constant 0 : i32
    %c0_i32_1 = arith.constant 0 : i32
    return %c0_i32, %c0_i32_0 : i32, i32
  }
  func.func @transform_2(%arg0: i32) -> (i32, i32) {
    %c0_i32 = arith.constant 0 : i32
    %c0_i32_0 = arith.constant 0 : i32
    %c0_i32_1 = arith.constant 0 : i32
    return %c0_i32, %c0_i32_0 : i32, i32
  }
  func.func @transform_3(%arg0: i32) -> (i32, i32, i32) {
    %c0_i32 = arith.constant 0 : i32
    %c0_i32_0 = arith.constant 0 : i32
    %c0_i32_1 = arith.constant 0 : i32
    %c0_i32_2 = arith.constant 0 : i32
    return %c0_i32, %c0_i32_0, %c0_i32_1 : i32, i32, i32
  }
  func.func @transform_4(%arg0: i32) -> (i32, i32, i32) {
    %c0_i32 = arith.constant 0 : i32
    %c0_i32_0 = arith.constant 0 : i32
    %c0_i32_1 = arith.constant 0 : i32
    %c0_i32_2 = arith.constant 0 : i32
    return %c0_i32, %c0_i32_0, %c0_i32_1 : i32, i32, i32
  }
  func.func @transform_5(%arg0: i32) -> (i32, i32) {
    %c0_i32 = arith.constant 0 : i32
    %c0_i32_0 = arith.constant 0 : i32
    %c0_i32_1 = arith.constant 0 : i32
    return %c0_i32, %c0_i32_0 : i32, i32
  }
  func.func @transform_6(%arg0: i32) -> (i32, i32) {
    %c0_i32 = arith.constant 0 : i32
    %c0_i32_0 = arith.constant 0 : i32
    %c0_i32_1 = arith.constant 0 : i32
    return %c0_i32, %c0_i32_0 : i32, i32
  }
  func.func @transform_7(%arg0: i32) -> (i32, i32) {
    %c0_i32 = arith.constant 0 : i32
    %c0_i32_0 = arith.constant 0 : i32
    return %arg0, %c0_i32 : i32, i32
  }
}

</mosaic_0001>

<llo_original>
// kernel: tpu_custom_call.1
$region0: #{tpu_custom_call.1}
  #allocation0 [shape = 'u32[]', space=smem, size = 0x4, offset = 0x4, fixed_abs, tag = 'smem constant byte address 0x4 - core index']
  #allocation1 [shape = 'u32[144,128]{1,0:T(1,128)}', space=vmem, size = 0x12000, scoped, tag = 'internal scratch']
  %s0 = inlined_call_operand.vmem [shape: bf16[512,8], index: 0, kind: input, shape index: {}]
  %s1 = inlined_call_operand.vmem [shape: bf16[8,256], index: 1, kind: input, shape index: {}]
  %s2 = inlined_call_operand.vmem [shape: f32[1,256], index: 2, kind: input, shape index: {}]
  %s3 = inlined_call_operand.hbm [shape: bf16[7,256,256], index: 3, kind: input, shape index: {}]
  %s4 = inlined_call_operand.vmem [shape: f32[7,1,256], index: 4, kind: input, shape index: {}]
  %s5 = inlined_call_operand.vmem [shape: bf16[256,128], index: 5, kind: input, shape index: {}]
  %s6 = inlined_call_operand.vmem [shape: f32[1,128], index: 6, kind: input, shape index: {}]
  %s7 = inlined_call_operand.hbm [shape: f32[512,128], index: 7, kind: output, shape index: {}]
  %s8 = sld [smem:[#allocation0]]
  $region65: #{tpu_custom_call.1} parent=0
    _
  %s10 = ssub.s32 1, %s8
  %s11 = scalar_select 0, %s10, %s8
  $region1: #{tpu_custom_call.1} parent=0
    #allocation2 [shape = 'u8[917504]{0}', space=vmem, size = 0xe0000, scoped, tag = 'input window, operand 3, single buffered']
    #allocation3 [shape = 's32[2]{0}', space=sflag, size = 0x8, scoped, tag = 'scoped memory for tpu_custom_call.1']
    #allocation4 [shape = 's32[2]{0}', space=sflag, size = 0x8, scoped, tag = 'scoped memory for tpu_custom_call.1']
    #allocation5 [shape = 'u8[262144]{0}', space=vmem, size = 0x40000, scoped, tag = 'output window, operand 0']
    %12 = vsyncpa [#allocation3], 0
    %13 = vsyncpa [#allocation4], 0
    %s14 = scalar_lea.sflag [#allocation4], 1
    %15 = vsyncpa %s14, 0
    loop: start=0, step=1, limit=4
    $region2: #{tpu_custom_call.1} parent=1 // loop_pre_header
      _
    $region3: #{tpu_custom_call.1} parent=1 // loop_header
      %s17 = sphi 0, %s21
      %p18 = scmp.ge.s32.totalorder %s17, 4
      %s27 = sphi 0, %s29
      %s30 = sphi 0, %s27
      %s31 = sphi 0, %s30
      %s47 = sphi 0, %s31
      %s51 = sphi 0, %s51
      %s53 = sphi 0, %s51
      %s54 = sphi 0, %s53
      %s68 = sphi 0, %s54
      %s72 = sphi 0, %s72
      %s74 = sphi 0, %s72
      %s75 = sphi 0, %s74
      %s89 = sphi 0, %s75
      %s93 = sphi 0, %s93
      %s95 = sphi 0, %s93
      %s96 = sphi 0, %s95
      %s110 = sphi 0, %s96
      %s114 = sphi 0, %s114
      %s116 = sphi 0, %s114
      %s117 = sphi 0, %s116
      %s131 = sphi 0, %s117
      %s135 = sphi 0, %s135
      %s137 = sphi 0, %s135
      %s138 = sphi 0, %s137
      %s152 = sphi 0, %s138
      %s156 = sphi 0, %s156
      %s158 = sphi 0, %s156
      %s159 = sphi 0, %s158
      %s173 = sphi 0, %s159
      %s179 = sphi 0, %s181
      %s182 = sphi 0, %s179
      %s183 = sphi 0, %s182
      %s199 = sphi 0, %s183
    $region4: #{tpu_custom_call.1} parent=1 // loop_header_branch
      %20 = sbr.rel (%p18) target = $region8
    $region5: #{tpu_custom_call.1} parent=1 // loop_body
      %s22 = ssub.s32 %s17, 1
      %s23 = ssub.s32 %s17, 2
      %s24 = sadd.s32 %s17, 1
      %s25 = ssub.s32 %s17, %s24
      %p26 = scmp.eq.s32.totalorder %s25, 0
      %s28 = sadd.s32 %s27, 1
      %s29 = scalar_select %p26, %s27, %s28
      %p32 = pneg %p26
      %p33 = scmp.eq.s32.totalorder %s17, 1
      %p34 = por %p32, %p33
      %p35 = scmp.ne.s32.totalorder %s27, %s30
      %p36 = scmp.eq.s32.totalorder %s17, 0
      %p37 = por %p35, %p36
      %p38 = scmp.ne.s32.totalorder %s27, %s30
      %p39 = scmp.eq.s32.totalorder %s22, 1
      %p40 = por %p38, %p39
      %p41 = scmp.ne.s32.totalorder %s30, %s31
      %p42 = scmp.eq.s32.totalorder %s22, 0
      %p43 = por %p41, %p42
      %p44 = scmp.ne.s32.totalorder %s30, %s31
      %p45 = scmp.eq.s32.totalorder %s23, 1
      %p46 = por %p44, %p45
      %p48 = scmp.ne.s32.totalorder %s31, %s47
      %p49 = scmp.eq.s32.totalorder %s23, 0
      %p50 = por %p48, %p49
      %s52 = sadd.s32 %s51, 1
      %p55 = scmp.eq.s32.totalorder %s17, 1
      %p56 = scmp.ne.s32.totalorder %s51, %s53
      %p57 = scmp.eq.s32.totalorder %s17, 0
      %p58 = por %p56, %p57
      %p59 = scmp.ne.s32.totalorder %s51, %s53
      %p60 = scmp.eq.s32.totalorder %s22, 1
      %p61 = por %p59, %p60
      %p62 = scmp.ne.s32.totalorder %s53, %s54
      %p63 = scmp.eq.s32.totalorder %s22, 0
      %p64 = por %p62, %p63
      %p65 = scmp.ne.s32.totalorder %s53, %s54
      %p66 = scmp.eq.s32.totalorder %s23, 1
      %p67 = por %p65, %p66
      %p69 = scmp.ne.s32.totalorder %s54, %s68
      %p70 = scmp.eq.s32.totalorder %s23, 0
      %p71 = por %p69, %p70
      %s73 = sadd.s32 %s72, 1
      %p76 = scmp.eq.s32.totalorder %s17, 1
      %p77 = scmp.ne.s32.totalorder %s72, %s74
      %p78 = scmp.eq.s32.totalorder %s17, 0
      %p79 = por %p77, %p78
      %p80 = scmp.ne.s32.totalorder %s72, %s74
      %p81 = scmp.eq.s32.totalorder %s22, 1
      %p82 = por %p80, %p81
      %p83 = scmp.ne.s32.totalorder %s74, %s75
      %p84 = scmp.eq.s32.totalorder %s22, 0
      %p85 = por %p83, %p84
      %p86 = scmp.ne.s32.totalorder %s74, %s75
      %p87 = scmp.eq.s32.totalorder %s23, 1
      %p88 = por %p86, %p87
      %p90 = scmp.ne.s32.totalorder %s75, %s89
      %p91 = scmp.eq.s32.totalorder %s23, 0
      %p92 = por %p90, %p91
      %s94 = sadd.s32 %s93, 1
      %p97 = scmp.eq.s32.totalorder %s17, 1
      %p98 = scmp.ne.s32.totalorder %s93, %s95
      %p99 = scmp.eq.s32.totalorder %s17, 0
      %p100 = por %p98, %p99
      %p101 = scmp.ne.s32.totalorder %s93, %s95
      %p102 = scmp.eq.s32.totalorder %s22, 1
      %p103 = por %p101, %p102
      %p104 = scmp.ne.s32.totalorder %s95, %s96
      %p105 = scmp.eq.s32.totalorder %s22, 0
      %p106 = por %p104, %p105
      %p107 = scmp.ne.s32.totalorder %s95, %s96
      %p108 = scmp.eq.s32.totalorder %s23, 1
      %p109 = por %p107, %p108
      %p111 = scmp.ne.s32.totalorder %s96, %s110
      %p112 = scmp.eq.s32.totalorder %s23, 0
      %p113 = por %p111, %p112
      %s115 = sadd.s32 %s114, 1
      %p118 = scmp.eq.s32.totalorder %s17, 1
      %p119 = scmp.ne.s32.totalorder %s114, %s116
      %p120 = scmp.eq.s32.totalorder %s17, 0
      %p121 = por %p119, %p120
      %p122 = scmp.ne.s32.totalorder %s114, %s116
      %p123 = scmp.eq.s32.totalorder %s22, 1
      %p124 = por %p122, %p123
      %p125 = scmp.ne.s32.totalorder %s116, %s117
      %p126 = scmp.eq.s32.totalorder %s22, 0
      %p127 = por %p125, %p126
      %p128 = scmp.ne.s32.totalorder %s116, %s117
      %p129 = scmp.eq.s32.totalorder %s23, 1
      %p130 = por %p128, %p129
      %p132 = scmp.ne.s32.totalorder %s117, %s131
      %p133 = scmp.eq.s32.totalorder %s23, 0
      %p134 = por %p132, %p133
      %s136 = sadd.s32 %s135, 1
      %p139 = scmp.eq.s32.totalorder %s17, 1
      %p140 = scmp.ne.s32.totalorder %s135, %s137
      %p141 = scmp.eq.s32.totalorder %s17, 0
      %p142 = por %p140, %p141
      %p143 = scmp.ne.s32.totalorder %s135, %s137
      %p144 = scmp.eq.s32.totalorder %s22, 1
      %p145 = por %p143, %p144
      %p146 = scmp.ne.s32.totalorder %s137, %s138
      %p147 = scmp.eq.s32.totalorder %s22, 0
      %p148 = por %p146, %p147
      %p149 = scmp.ne.s32.totalorder %s137, %s138
      %p150 = scmp.eq.s32.totalorder %s23, 1
      %p151 = por %p149, %p150
      %p153 = scmp.ne.s32.totalorder %s138, %s152
      %p154 = scmp.eq.s32.totalorder %s23, 0
      %p155 = por %p153, %p154
      %s157 = sadd.s32 %s156, 1
      %p160 = scmp.eq.s32.totalorder %s17, 1
      %p161 = scmp.ne.s32.totalorder %s156, %s158
      %p162 = scmp.eq.s32.totalorder %s17, 0
      %p163 = por %p161, %p162
      %p164 = scmp.ne.s32.totalorder %s156, %s158
      %p165 = scmp.eq.s32.totalorder %s22, 1
      %p166 = por %p164, %p165
      %p167 = scmp.ne.s32.totalorder %s158, %s159
      %p168 = scmp.eq.s32.totalorder %s22, 0
      %p169 = por %p167, %p168
      %p170 = scmp.ne.s32.totalorder %s158, %s159
      %p171 = scmp.eq.s32.totalorder %s23, 1
      %p172 = por %p170, %p171
      %p174 = scmp.ne.s32.totalorder %s159, %s173
      %p175 = scmp.eq.s32.totalorder %s23, 0
      %p176 = por %p174, %p175
      %s177 = ssub.s32 %s17, %s24
      %p178 = scmp.eq.s32.totalorder %s177, 0
      %s180 = sadd.s32 %s179, 1
      %s181 = scalar_select %p178, %s179, %s180
      %p184 = pneg %p178
      %p185 = scmp.eq.s32.totalorder %s17, 1
      %p186 = por %p184, %p185
      %p187 = scmp.ne.s32.totalorder %s179, %s182
      %p188 = scmp.eq.s32.totalorder %s17, 0
      %p189 = por %p187, %p188
      %p190 = scmp.ne.s32.totalorder %s179, %s182
      %p191 = scmp.eq.s32.totalorder %s22, 1
      %p192 = por %p190, %p191
      %p193 = scmp.ne.s32.totalorder %s182, %s183
      %p194 = scmp.eq.s32.totalorder %s22, 0
      %p195 = por %p193, %p194
      %p196 = scmp.ne.s32.totalorder %s182, %s183
      %p197 = scmp.eq.s32.totalorder %s23, 1
      %p198 = por %p196, %p197
      %p200 = scmp.ne.s32.totalorder %s183, %s199
      %p201 = scmp.eq.s32.totalorder %s23, 0
      %p202 = por %p200, %p201
      %p203 = scmp.le.s32.totalorder 1, %s17
      %p204 = scmp.lt.s32.totalorder %s17, 3
      %p205 = pnand %p203, %p204
      %p206 = pneg %p205
      // Predicated region
      $region9: #{tpu_custom_call.1} parent=5 // pred_check
        _
      $region10: #{tpu_custom_call.1} parent=5 // pred_check_branch
        %208 = sbr.rel (%p205) target = $region12
      $region11: #{tpu_custom_call.1} parent=5 // pred_region
        %s209 = ssub.s32 %s17, 1
        // Predicated region
        $region13: #{tpu_custom_call.1} parent=11 // pred_check
          %p210 = pneg %p64
        $region14: #{tpu_custom_call.1} parent=11 // pred_check_branch
          %212 = sbr.rel (%p210) target = $region16
        $region15: #{tpu_custom_call.1} parent=11 // pred_region
          _
        $region16: #{tpu_custom_call.1} parent=11 // pred_fallthru
          _
        // Predicated region
        $region17: #{tpu_custom_call.1} parent=11 // pred_check
          %p213 = pneg %p85
        $region18: #{tpu_custom_call.1} parent=11 // pred_check_branch
          %215 = sbr.rel (%p213) target = $region20
        $region19: #{tpu_custom_call.1} parent=11 // pred_region
          _
        $region20: #{tpu_custom_call.1} parent=11 // pred_fallthru
          _
        // Predicated region
        $region21: #{tpu_custom_call.1} parent=11 // pred_check
          %p216 = pneg %p106
        $region22: #{tpu_custom_call.1} parent=11 // pred_check_branch
          %218 = sbr.rel (%p216) target = $region24
        $region23: #{tpu_custom_call.1} parent=11 // pred_region
          %s220 = ssub.s32 28672, 28672
          %221 = vsyncadd [#allocation3], %s220
          %s222 = sshll.u32 [#allocation2], 4
          %s223 = int_to_ptr.vmem [resolvable:$true] %s222
          %228 = dma.hbm_to_vmem [thread:$0]  %s3, 28672, %s223, [#allocation3], 128, 128, 8
        $region24: #{tpu_custom_call.1} parent=11 // pred_fallthru
          _
        // Predicated region
        $region25: #{tpu_custom_call.1} parent=11 // pred_check
          %p229 = pneg %p127
        $region26: #{tpu_custom_call.1} parent=11 // pred_check_branch
          %231 = sbr.rel (%p229) target = $region28
        $region27: #{tpu_custom_call.1} parent=11 // pred_region
          _
        $region28: #{tpu_custom_call.1} parent=11 // pred_fallthru
          _
        // Predicated region
        $region29: #{tpu_custom_call.1} parent=11 // pred_check
          %p232 = pneg %p148
        $region30: #{tpu_custom_call.1} parent=11 // pred_check_branch
          %234 = sbr.rel (%p232) target = $region32
        $region31: #{tpu_custom_call.1} parent=11 // pred_region
          _
        $region32: #{tpu_custom_call.1} parent=11 // pred_fallthru
          _
        // Predicated region
        $region33: #{tpu_custom_call.1} parent=11 // pred_check
          %p235 = pneg %p169
        $region34: #{tpu_custom_call.1} parent=11 // pred_check_branch
          %237 = sbr.rel (%p235) target = $region36
        $region35: #{tpu_custom_call.1} parent=11 // pred_region
          _
        $region36: #{tpu_custom_call.1} parent=11 // pred_fallthru
          _
      $region12: #{tpu_custom_call.1} parent=5 // pred_fallthru
        _
      %p238 = scmp.lt.s32.totalorder %s17, 2
      // Predicated region
      $region37: #{tpu_custom_call.1} parent=5 // pred_check
        %p239 = pneg %p238
      $region38: #{tpu_custom_call.1} parent=5 // pred_check_branch
        %241 = sbr.rel (%p239) target = $region40
      $region39: #{tpu_custom_call.1} parent=5 // pred_region
        // Predicated region
        $region41: #{tpu_custom_call.1} parent=39 // pred_check
          %p242 = pneg %p37
        $region42: #{tpu_custom_call.1} parent=39 // pred_check_branch
          %244 = sbr.rel (%p242) target = $region44
        $region43: #{tpu_custom_call.1} parent=39 // pred_region
          %s245 = smul.u32 32, %s17
          %p246 = scmp.lt.s32.totalorder %s245, 63
          %s247 = scalar_select %p246, %s245, 63
          %s248 = smul.addr %s247, 4
          %s249 = scalar_lea.vmem %s0, %s248
          %s250 = smul.u32 32, %s17
        $region44: #{tpu_custom_call.1} parent=39 // pred_fallthru
          _
      $region40: #{tpu_custom_call.1} parent=5 // pred_fallthru
        _
      %p251 = scmp.le.s32.totalorder 1, %s17
      %p252 = scmp.lt.s32.totalorder %s17, 3
      %p253 = pnand %p251, %p252
      %p254 = pneg %p253
      // Predicated region
      $region45: #{tpu_custom_call.1} parent=5 // pred_check
        _
      $region46: #{tpu_custom_call.1} parent=5 // pred_check_branch
        %256 = sbr.rel (%p253) target = $region48
      $region47: #{tpu_custom_call.1} parent=5 // pred_region
        %s257 = ssub.s32 %s17, 1
        // Predicated region
        $region49: #{tpu_custom_call.1} parent=47 // pred_check
          %p258 = pneg %p106
        $region50: #{tpu_custom_call.1} parent=47 // pred_check_branch
          %260 = sbr.rel (%p258) target = $region52
        $region51: #{tpu_custom_call.1} parent=47 // pred_region
          %261 = dma.done [#allocation3], 28672
        $region52: #{tpu_custom_call.1} parent=47 // pred_fallthru
          _
        %s262 = smul.u32 32, %s22
        %p263 = scmp.lt.s32.totalorder %s262, 63
        %s264 = scalar_select %p263, %s262, 63
        %s265 = smul.addr %s264, 4
        %s266 = scalar_lea.vmem %s0, %s265
        %p267 = pneg %p43
        %p268 = pneg %p40
        %p269 = pneg %p64
        %p270 = pneg %p61
        %p271 = pneg %p85
        %p272 = pneg %p82
        %p273 = pneg %p106
        %p274 = pneg %p103
        %p275 = pneg %p127
        %p276 = pneg %p124
        %p277 = pneg %p148
        %p278 = pneg %p145
        %p279 = pneg %p169
        %p280 = pneg %p166
        %p281 = pneg %p195
        %p282 = pneg %p192
        %s283 = sand.u32 %s182, 1
        %s284 = scalar_lea.sflag [#allocation4], %s283
        %s285 = sand.u32 %s182, 1
        %s286 = smul.addr %s285, 256
        %s287 = scalar_lea.vmem [#allocation5], %s286
        %s288 = smul.u32 32, %s22
        %p289 = scmp.lt.s32.totalorder %s288, 63
        %s290 = scalar_select %p289, %s288, 63
        %s291 = smul.addr %s290, 4
        %s292 = scalar_lea.vmem %s0, %s291
        %s293 = smul.u32 32, %s22
        %s294 = smul.u32 32, %s22
        %v296 = vld [vmem:[%s292] sm:$0xf]
        %v297 = vld [vmem:[%s292 + $0x4] sm:$0xf]
        %v298 = vld [vmem:[%s292 + $0x8] sm:$0xf]
        %v299 = vld [vmem:[%s292 + $0xc] sm:$0xf]
        %v300 = vld [vmem:[%s292 + $0x10] sm:$0xf]
        %v301 = vld [vmem:[%s292 + $0x14] sm:$0xf]
        %v302 = vld [vmem:[%s292 + $0x18] sm:$0xf]
        %v303 = vld [vmem:[%s292 + $0x1c] sm:$0xf]
        %v304 = vld [vmem:[%s292 + $0x20] sm:$0xf]
        %v305 = vld [vmem:[%s292 + $0x24] sm:$0xf]
        %v306 = vld [vmem:[%s292 + $0x28] sm:$0xf]
        %v307 = vld [vmem:[%s292 + $0x2c] sm:$0xf]
        %v308 = vld [vmem:[%s292 + $0x30] sm:$0xf]
        %v309 = vld [vmem:[%s292 + $0x34] sm:$0xf]
        %v310 = vld [vmem:[%s292 + $0x38] sm:$0xf]
        %v311 = vld [vmem:[%s292 + $0x3c] sm:$0xf]
        %v312 = vld [vmem:[%s292 + $0x40] sm:$0xf]
        %v313 = vld [vmem:[%s292 + $0x44] sm:$0xf]
        %v314 = vld [vmem:[%s292 + $0x48] sm:$0xf]
        %v315 = vld [vmem:[%s292 + $0x4c] sm:$0xf]
        %v316 = vld [vmem:[%s292 + $0x50] sm:$0xf]
        %v317 = vld [vmem:[%s292 + $0x54] sm:$0xf]
        %v318 = vld [vmem:[%s292 + $0x58] sm:$0xf]
        %v319 = vld [vmem:[%s292 + $0x5c] sm:$0xf]
        %v320 = vld [vmem:[%s292 + $0x60] sm:$0xf]
        %v321 = vld [vmem:[%s292 + $0x64] sm:$0xf]
        %v322 = vld [vmem:[%s292 + $0x68] sm:$0xf]
        %v323 = vld [vmem:[%s292 + $0x6c] sm:$0xf]
        %v324 = vld [vmem:[%s292 + $0x70] sm:$0xf]
        %v325 = vld [vmem:[%s292 + $0x74] sm:$0xf]
        %v326 = vld [vmem:[%s292 + $0x78] sm:$0xf]
        %v327 = vld [vmem:[%s292 + $0x7c] sm:$0xf]
        %v328 = vld [vmem:[%s1] sm:$0xff]
        %v329 = vld [vmem:[%s2] sm:$0x3]
        %v331 = vlaneseq
        %v332 = vshrl.u32 %v331, 7
        %v333 = vsub.s32 0, %v332
        %v334 = vrot.slane %v329, %v333
        %v335 = vlaneseq
        %v336 = vshrl.u32 %v335, 7
        %v337 = vsub.s32 1, %v336
        %v338 = vrot.slane %v329, %v337
        %v373 = vunpack.c.l.b16 %v296
        %v374 = vunpack.c.l.b16 %v297
        %v375 = vunpack.c.l.b16 %v298
        %v376 = vunpack.c.l.b16 %v299
        %v377 = vunpack.c.l.b16 %v300
        %v378 = vunpack.c.l.b16 %v301
        %v379 = vunpack.c.l.b16 %v302
        %v380 = vunpack.c.l.b16 %v303
        %v381 = vunpack.c.l.b16 %v304
        %v382 = vunpack.c.l.b16 %v305
        %v383 = vunpack.c.l.b16 %v306
        %v384 = vunpack.c.l.b16 %v307
        %v385 = vunpack.c.l.b16 %v308
        %v386 = vunpack.c.l.b16 %v309
        %v387 = vunpack.c.l.b16 %v310
        %v388 = vunpack.c.l.b16 %v311
        %v389 = vunpack.c.l.b16 %v312
        %v390 = vunpack.c.l.b16 %v313
        %v391 = vunpack.c.l.b16 %v314
        %v392 = vunpack.c.l.b16 %v315
        %v393 = vunpack.c.l.b16 %v316
        %v394 = vunpack.c.l.b16 %v317
        %v395 = vunpack.c.l.b16 %v318
        %v396 = vunpack.c.l.b16 %v319
        %v397 = vunpack.c.l.b16 %v320
        %v398 = vunpack.c.l.b16 %v321
        %v399 = vunpack.c.l.b16 %v322
        %v400 = vunpack.c.l.b16 %v323
        %v401 = vunpack.c.l.b16 %v324
        %v402 = vunpack.c.l.b16 %v325
        %v403 = vunpack.c.l.b16 %v326
        %v404 = vunpack.c.l.b16 %v327
        %v405 = vpack.c.b16 %v374, %v373
        %v406 = vpack.c.b16 %v376, %v375
        %v407 = vpack.c.b16 %v378, %v377
        %v408 = vpack.c.b16 %v380, %v379
        %v409 = vpack.c.b16 %v382, %v381
        %v410 = vpack.c.b16 %v384, %v383
        %v411 = vpack.c.b16 %v386, %v385
        %v412 = vpack.c.b16 %v388, %v387
        %v413 = vpack.c.b16 %v390, %v389
        %v414 = vpack.c.b16 %v392, %v391
        %v415 = vpack.c.b16 %v394, %v393
        %v416 = vpack.c.b16 %v396, %v395
        %v417 = vpack.c.b16 %v398, %v397
        %v418 = vpack.c.b16 %v400, %v399
        %v419 = vpack.c.b16 %v402, %v401
        %v420 = vpack.c.b16 %v404, %v403
        %v422 = vunpack.c.l.b16 %v328
        %v423 = vunpack.c.h.b16 %v328
        %v424 = vpack.c.b16 %v422, %v422
        %v425 = vpack.c.b16 %v423, %v423
        %vm426 = vcmask 64512
        %v428 = vsel %vm426, %v405, 0
        %v431 = vsel %vm426, %v406, 0
        %v434 = vsel %vm426, %v407, 0
        %v437 = vsel %vm426, %v408, 0
        %v440 = vsel %vm426, %v409, 0
        %v443 = vsel %vm426, %v410, 0
        %v446 = vsel %vm426, %v411, 0
        %v449 = vsel %vm426, %v412, 0
        %v452 = vsel %vm426, %v413, 0
        %v455 = vsel %vm426, %v414, 0
        %v458 = vsel %vm426, %v415, 0
        %v461 = vsel %vm426, %v416, 0
        %v464 = vsel %vm426, %v417, 0
        %v467 = vsel %vm426, %v418, 0
        %v470 = vsel %vm426, %v419, 0
        %v473 = vsel %vm426, %v420, 0
        %vm475 = vcmask 1043456
        %v477 = vsel %vm475, %v424, 0
        %v480 = vsel %vm475, %v425, 0
        %482 = vmatprep.subr.bf16.mxu0 %v480
        %483 = vmatpush1.bf16.msra.mxu0 %v477
        %484 = vmatprep.subr.bf16.mxu0 0
        %485 = vmatpush1.bf16.msra.mxu0 0
        %486 = vmatprep.subr.bf16.mxu0 0
        %487 = vmatpush1.bf16.msra.mxu0 0
        %488 = vmatprep.subr.bf16.mxu0 0
        %489 = vmatpush1.bf16.msra.mxu0 0
        %490 = vmatprep.subr.bf16.mxu0 0
        %491 = vmatpush1.bf16.msra.mxu0 0
        %492 = vmatprep.subr.bf16.mxu0 0
        %493 = vmatpush1.bf16.msra.mxu0 0
        %494 = vmatprep.subr.bf16.mxu0 0
        %495 = vmatpush1.bf16.msra.mxu0 0
        %496 = vmatprep.subr.bf16.mxu0 0
        %497 = vmatpush1.bf16.msra.mxu0 0
        %498 = vmatprep.subr.bf16.mxu0 0
        %499 = vmatpush1.bf16.msra.mxu0 0
        %500 = vmatprep.subr.bf16.mxu0 0
        %501 = vmatpush1.bf16.msra.mxu0 0
        %502 = vmatprep.subr.bf16.mxu0 0
        %503 = vmatpush1.bf16.msra.mxu0 0
        %504 = vmatprep.subr.bf16.mxu0 0
        %505 = vmatpush1.bf16.msra.mxu0 0
        %506 = vmatprep.subr.bf16.mxu0 0
        %507 = vmatpush1.bf16.msra.mxu0 0
        %508 = vmatprep.subr.bf16.mxu0 0
        %509 = vmatpush1.bf16.msra.mxu0 0
        %510 = vmatprep.subr.bf16.mxu0 0
        %511 = vmatpush1.bf16.msra.mxu0 0
        %512 = vmatprep.subr.bf16.mxu0 0
        %513 = vmatpush1.bf16.msra.mxu0 0
        %514 = vmatprep.mubr.bf16.mxu0 0
        %515 = vmatmul.mubr.bf16.gmra.mrb[0].mxu0 %v428
        %v516 = vpop.f32.mrb[0].mxu0
        %v517 = vadd.f32 %v334, %v516
        %v518 = vpop.f32.mrb[0].mxu0
        %v519 = vadd.f32 %v338, %v518
        %v520 = vpop.f32.mrb[0].mxu0
        %v521 = vadd.f32 %v334, %v520
        %v522 = vpop.f32.mrb[0].mxu0
        %v523 = vadd.f32 %v338, %v522
        %524 = vmatprep.mubr.bf16.mxu0 0
        %525 = vmatmul.mubr.bf16.gmra.mrb[0].mxu0 %v431
        %v526 = vpop.f32.mrb[0].mxu0
        %v527 = vadd.f32 %v334, %v526
        %v528 = vpop.f32.mrb[0].mxu0
        %v529 = vadd.f32 %v338, %v528
        %v530 = vpop.f32.mrb[0].mxu0
        %v531 = vadd.f32 %v334, %v530
        %v532 = vpop.f32.mrb[0].mxu0
        %v533 = vadd.f32 %v338, %v532
        %534 = vmatprep.mubr.bf16.mxu0 0
        %535 = vmatmul.mubr.bf16.gmra.mrb[0].mxu0 %v434
        %v536 = vpop.f32.mrb[0].mxu0
        %v537 = vadd.f32 %v334, %v536
        %v538 = vpop.f32.mrb[0].mxu0
        %v539 = vadd.f32 %v338, %v538
        %v540 = vpop.f32.mrb[0].mxu0
        %v541 = vadd.f32 %v334, %v540
        %v542 = vpop.f32.mrb[0].mxu0
        %v543 = vadd.f32 %v338, %v542
        %544 = vmatprep.mubr.bf16.mxu0 0
        %545 = vmatmul.mubr.bf16.gmra.mrb[0].mxu0 %v437
        %v546 = vpop.f32.mrb[0].mxu0
        %v547 = vadd.f32 %v334, %v546
        %v548 = vpop.f32.mrb[0].mxu0
        %v549 = vadd.f32 %v338, %v548
        %v550 = vpop.f32.mrb[0].mxu0
        %v551 = vadd.f32 %v334, %v550
        %v552 = vpop.f32.mrb[0].mxu0
        %v553 = vadd.f32 %v338, %v552
        %554 = vmatprep.mubr.bf16.mxu0 0
        %555 = vmatmul.mubr.bf16.gmra.mrb[0].mxu0 %v440
        %v556 = vpop.f32.mrb[0].mxu0
        %v557 = vadd.f32 %v334, %v556
        %v558 = vpop.f32.mrb[0].mxu0
        %v559 = vadd.f32 %v338, %v558
        %v560 = vpop.f32.mrb[0].mxu0
        %v561 = vadd.f32 %v334, %v560
        %v562 = vpop.f32.mrb[0].mxu0
        %v563 = vadd.f32 %v338, %v562
        %564 = vmatprep.mubr.bf16.mxu0 0
        %565 = vmatmul.mubr.bf16.gmra.mrb[0].mxu0 %v443
        %v566 = vpop.f32.mrb[0].mxu0
        %v567 = vadd.f32 %v334, %v566
        %v568 = vpop.f32.mrb[0].mxu0
        %v569 = vadd.f32 %v338, %v568
        %v570 = vpop.f32.mrb[0].mxu0
        %v571 = vadd.f32 %v334, %v570
        %v572 = vpop.f32.mrb[0].mxu0
        %v573 = vadd.f32 %v338, %v572
        %574 = vmatprep.mubr.bf16.mxu0 0
        %575 = vmatmul.mubr.bf16.gmra.mrb[0].mxu0 %v446
        %v576 = vpop.f32.mrb[0].mxu0
        %v577 = vadd.f32 %v334, %v576
        %v578 = vpop.f32.mrb[0].mxu0
        %v579 = vadd.f32 %v338, %v578
        %v580 = vpop.f32.mrb[0].mxu0
        %v581 = vadd.f32 %v334, %v580
        %v582 = vpop.f32.mrb[0].mxu0
        %v583 = vadd.f32 %v338, %v582
        %584 = vmatprep.mubr.bf16.mxu0 0
        %585 = vmatmul.mubr.bf16.gmra.mrb[0].mxu0 %v449
        %v586 = vpop.f32.mrb[0].mxu0
        %v587 = vadd.f32 %v334, %v586
        %v588 = vpop.f32.mrb[0].mxu0
        %v589 = vadd.f32 %v338, %v588
        %v590 = vpop.f32.mrb[0].mxu0
        %v591 = vadd.f32 %v334, %v590
        %v592 = vpop.f32.mrb[0].mxu0
        %v593 = vadd.f32 %v338, %v592
        %594 = vmatprep.mubr.bf16.mxu0 0
        %595 = vmatmul.mubr.bf16.gmra.mrb[0].mxu0 %v452
        %v596 = vpop.f32.mrb[0].mxu0
        %v597 = vadd.f32 %v334, %v596
        %v598 = vpop.f32.mrb[0].mxu0
        %v599 = vadd.f32 %v338, %v598
        %v600 = vpop.f32.mrb[0].mxu0
        %v601 = vadd.f32 %v334, %v600
        %v602 = vpop.f32.mrb[0].mxu0
        %v603 = vadd.f32 %v338, %v602
        %604 = vmatprep.mubr.bf16.mxu0 0
        %605 = vmatmul.mubr.bf16.gmra.mrb[0].mxu0 %v455
        %v606 = vpop.f32.mrb[0].mxu0
        %v607 = vadd.f32 %v334, %v606
        %v608 = vpop.f32.mrb[0].mxu0
        %v609 = vadd.f32 %v338, %v608
        %v610 = vpop.f32.mrb[0].mxu0
        %v611 = vadd.f32 %v334, %v610
        %v612 = vpop.f32.mrb[0].mxu0
        %v613 = vadd.f32 %v338, %v612
        %614 = vmatprep.mubr.bf16.mxu0 0
        %615 = vmatmul.mubr.bf16.gmra.mrb[0].mxu0 %v458
        %v616 = vpop.f32.mrb[0].mxu0
        %v617 = vadd.f32 %v334, %v616
        %v618 = vpop.f32.mrb[0].mxu0
        %v619 = vadd.f32 %v338, %v618
        %v620 = vpop.f32.mrb[0].mxu0
        %v621 = vadd.f32 %v334, %v620
        %v622 = vpop.f32.mrb[0].mxu0
        %v623 = vadd.f32 %v338, %v622
        %624 = vmatprep.mubr.bf16.mxu0 0
        %625 = vmatmul.mubr.bf16.gmra.mrb[0].mxu0 %v461
        %v626 = vpop.f32.mrb[0].mxu0
        %v627 = vadd.f32 %v334, %v626
        %v628 = vpop.f32.mrb[0].mxu0
        %v629 = vadd.f32 %v338, %v628
        %v630 = vpop.f32.mrb[0].mxu0
        %v631 = vadd.f32 %v334, %v630
        %v632 = vpop.f32.mrb[0].mxu0
        %v633 = vadd.f32 %v338, %v632
        %634 = vmatprep.mubr.bf16.mxu0 0
        %635 = vmatmul.mubr.bf16.gmra.mrb[0].mxu0 %v464
        %v636 = vpop.f32.mrb[0].mxu0
        %v637 = vadd.f32 %v334, %v636
        %v638 = vpop.f32.mrb[0].mxu0
        %v639 = vadd.f32 %v338, %v638
        %v640 = vpop.f32.mrb[0].mxu0
        %v641 = vadd.f32 %v334, %v640
        %v642 = vpop.f32.mrb[0].mxu0
        %v643 = vadd.f32 %v338, %v642
        %644 = vmatprep.mubr.bf16.mxu0 0
        %645 = vmatmul.mubr.bf16.gmra.mrb[0].mxu0 %v467
        %v646 = vpop.f32.mrb[0].mxu0
        %v647 = vadd.f32 %v334, %v646
        %v648 = vpop.f32.mrb[0].mxu0
        %v649 = vadd.f32 %v338, %v648
        %v650 = vpop.f32.mrb[0].mxu0
        %v651 = vadd.f32 %v334, %v650
        %v652 = vpop.f32.mrb[0].mxu0
        %v653 = vadd.f32 %v338, %v652
        %654 = vmatprep.mubr.bf16.mxu0 0
        %655 = vmatmul.mubr.bf16.gmra.mrb[0].mxu0 %v470
        %v656 = vpop.f32.mrb[0].mxu0
        %v657 = vadd.f32 %v334, %v656
        %v658 = vpop.f32.mrb[0].mxu0
        %v659 = vadd.f32 %v338, %v658
        %v660 = vpop.f32.mrb[0].mxu0
        %v661 = vadd.f32 %v334, %v660
        %v662 = vpop.f32.mrb[0].mxu0
        %v663 = vadd.f32 %v338, %v662
        %664 = vmatprep.mubr.bf16.mxu0 0
        %665 = vmatmul.mubr.bf16.gmra.mrb[0].mxu0 %v473
        %v666 = vpop.f32.mrb[0].mxu0
        %v667 = vadd.f32 %v334, %v666
        %v668 = vpop.f32.mrb[0].mxu0
        %v669 = vadd.f32 %v338, %v668
        %v670 = vpop.f32.mrb[0].mxu0
        %v671 = vadd.f32 %v334, %v670
        %v672 = vpop.f32.mrb[0].mxu0
        %v673 = vadd.f32 %v338, %v672
        %674 = vdwg.mxu0
        %v675 = vmax.f32 %v517, 0.0
        %v676 = vmax.f32 %v519, 0.0
        %v677 = vmax.f32 %v521, 0.0
        %v678 = vmax.f32 %v523, 0.0
        %v679 = vmax.f32 %v527, 0.0
        %v680 = vmax.f32 %v529, 0.0
        %v681 = vmax.f32 %v531, 0.0
        %v682 = vmax.f32 %v533, 0.0
        %v683 = vmax.f32 %v537, 0.0
        %v684 = vmax.f32 %v539, 0.0
        %v685 = vmax.f32 %v541, 0.0
        %v686 = vmax.f32 %v543, 0.0
        %v687 = vmax.f32 %v547, 0.0
        %v688 = vmax.f32 %v549, 0.0
        %v689 = vmax.f32 %v551, 0.0
        %v690 = vmax.f32 %v553, 0.0
        %v691 = vmax.f32 %v557, 0.0
        %v692 = vmax.f32 %v559, 0.0
        %v693 = vmax.f32 %v561, 0.0
        %v694 = vmax.f32 %v563, 0.0
        %v695 = vmax.f32 %v567, 0.0
        %v696 = vmax.f32 %v569, 0.0
        %v697 = vmax.f32 %v571, 0.0
        %v698 = vmax.f32 %v573, 0.0
        %v699 = vmax.f32 %v577, 0.0
        %v700 = vmax.f32 %v579, 0.0
        %v701 = vmax.f32 %v581, 0.0
        %v702 = vmax.f32 %v583, 0.0
        %v703 = vmax.f32 %v587, 0.0
        %v704 = vmax.f32 %v589, 0.0
        %v705 = vmax.f32 %v591, 0.0
        %v706 = vmax.f32 %v593, 0.0
        %v707 = vmax.f32 %v597, 0.0
        %v708 = vmax.f32 %v599, 0.0
        %v709 = vmax.f32 %v601, 0.0
        %v710 = vmax.f32 %v603, 0.0
        %v711 = vmax.f32 %v607, 0.0
        %v712 = vmax.f32 %v609, 0.0
        %v713 = vmax.f32 %v611, 0.0
        %v714 = vmax.f32 %v613, 0.0
        %v715 = vmax.f32 %v617, 0.0
        %v716 = vmax.f32 %v619, 0.0
        %v717 = vmax.f32 %v621, 0.0
        %v718 = vmax.f32 %v623, 0.0
        %v719 = vmax.f32 %v627, 0.0
        %v720 = vmax.f32 %v629, 0.0
        %v721 = vmax.f32 %v631, 0.0
        %v722 = vmax.f32 %v633, 0.0
        %v723 = vmax.f32 %v637, 0.0
        %v724 = vmax.f32 %v639, 0.0
        %v725 = vmax.f32 %v641, 0.0
        %v726 = vmax.f32 %v643, 0.0
        %v727 = vmax.f32 %v647, 0.0
        %v728 = vmax.f32 %v649, 0.0
        %v729 = vmax.f32 %v651, 0.0
        %v730 = vmax.f32 %v653, 0.0
        %v731 = vmax.f32 %v657, 0.0
        %v732 = vmax.f32 %v659, 0.0
        %v733 = vmax.f32 %v661, 0.0
        %v734 = vmax.f32 %v663, 0.0
        %v735 = vmax.f32 %v667, 0.0
        %v736 = vmax.f32 %v669, 0.0
        %v737 = vmax.f32 %v671, 0.0
        %v738 = vmax.f32 %v673, 0.0
        %v739 = vpack.c.bf16 %v677, %v675
        %v740 = vpack.c.bf16 %v678, %v676
        %v741 = vpack.c.bf16 %v681, %v679
        %v742 = vpack.c.bf16 %v682, %v680
        %v743 = vpack.c.bf16 %v685, %v683
        %v744 = vpack.c.bf16 %v686, %v684
        %v745 = vpack.c.bf16 %v689, %v687
        %v746 = vpack.c.bf16 %v690, %v688
        %v747 = vpack.c.bf16 %v693, %v691
        %v748 = vpack.c.bf16 %v694, %v692
        %v749 = vpack.c.bf16 %v697, %v695
        %v750 = vpack.c.bf16 %v698, %v696
        %v751 = vpack.c.bf16 %v701, %v699
        %v752 = vpack.c.bf16 %v702, %v700
        %v753 = vpack.c.bf16 %v705, %v703
        %v754 = vpack.c.bf16 %v706, %v704
        %v755 = vpack.c.bf16 %v709, %v707
        %v756 = vpack.c.bf16 %v710, %v708
        %v757 = vpack.c.bf16 %v713, %v711
        %v758 = vpack.c.bf16 %v714, %v712
        %v759 = vpack.c.bf16 %v717, %v715
        %v760 = vpack.c.bf16 %v718, %v716
        %v761 = vpack.c.bf16 %v721, %v719
        %v762 = vpack.c.bf16 %v722, %v720
        %v763 = vpack.c.bf16 %v725, %v723
        %v764 = vpack.c.bf16 %v726, %v724
        %v765 = vpack.c.bf16 %v729, %v727
        %v766 = vpack.c.bf16 %v730, %v728
        %v767 = vpack.c.bf16 %v733, %v731
        %v768 = vpack.c.bf16 %v734, %v732
        %v769 = vpack.c.bf16 %v737, %v735
        %v770 = vpack.c.bf16 %v738, %v736
        %v771 = vld [vmem:[#allocation2] sm:$0xff]
        %v772 = vld [vmem:[#allocation2 + $0x8] sm:$0xff]
        %v773 = vld [vmem:[#allocation2 + $0x10] sm:$0xff]
        %v774 = vld [vmem:[#allocation2 + $0x18] sm:$0xff]
        %v775 = vld [vmem:[#allocation2 + $0x20] sm:$0xff]
        %v776 = vld [vmem:[#allocation2 + $0x28] sm:$0xff]
        %v777 = vld [vmem:[#allocation2 + $0x30] sm:$0xff]
        %v778 = vld [vmem:[#allocation2 + $0x38] sm:$0xff]
        %v779 = vld [vmem:[#allocation2 + $0x40] sm:$0xff]
        %v780 = vld [vmem:[#allocation2 + $0x48] sm:$0xff]
        %v781 = vld [vmem:[#allocation2 + $0x50] sm:$0xff]
        %v782 = vld [vmem:[#allocation2 + $0x58] sm:$0xff]
        %v783 = vld [vmem:[#allocation2 + $0x60] sm:$0xff]
        %v784 = vld [vmem:[#allocation2 + $0x68] sm:$0xff]
        %v785 = vld [vmem:[#allocation2 + $0x70] sm:$0xff]
        %v786 = vld [vmem:[#allocation2 + $0x78] sm:$0xff]
        %v787 = vld [vmem:[#allocation2 + $0x80] sm:$0xff]
        %v788 = vld [vmem:[#allocation2 + $0x88] sm:$0xff]
        %v789 = vld [vmem:[#allocation2 + $0x90] sm:$0xff]
        %v790 = vld [vmem:[#allocation2 + $0x98] sm:$0xff]
        %v791 = vld [vmem:[#allocation2 + $0xa0] sm:$0xff]
        %v792 = vld [vmem:[#allocation2 + $0xa8] sm:$0xff]
        %v793 = vld [vmem:[#allocation2 + $0xb0] sm:$0xff]
        %v794 = vld [vmem:[#allocation2 + $0xb8] sm:$0xff]
        %v795 = vld [vmem:[#allocation2 + $0xc0] sm:$0xff]
        %v796 = vld [vmem:[#allocation2 + $0xc8] sm:$0xff]
        %v797 = vld [vmem:[#allocation2 + $0xd0] sm:$0xff]
        %v798 = vld [vmem:[#allocation2 + $0xd8] sm:$0xff]
        %v799 = vld [vmem:[#allocation2 + $0xe0] sm:$0xff]
        %v800 = vld [vmem:[#allocation2 + $0xe8] sm:$0xff]
        %v801 = vld [vmem:[#allocation2 + $0xf0] sm:$0xff]
        %v802 = vld [vmem:[#allocation2 + $0xf8] sm:$0xff]
        %v803 = vld [vmem:[%s4] sm:$0x3]
        %v805 = vlaneseq
        %v806 = vshrl.u32 %v805, 7
        %v807 = vsub.s32 0, %v806
        %v808 = vrot.slane %v803, %v807
        %v809 = vlaneseq
        %v810 = vshrl.u32 %v809, 7
        %v811 = vsub.s32 1, %v810
        %v812 = vrot.slane %v803, %v811
        %v847 = vunpack.c.l.b16 %v771
        %v848 = vunpack.c.h.b16 %v771
        %v849 = vunpack.c.l.b16 %v772
        %v850 = vunpack.c.h.b16 %v772
        %v851 = vunpack.c.l.b16 %v773
        %v852 = vunpack.c.h.b16 %v773
        %v853 = vunpack.c.l.b16 %v774
        %v854 = vunpack.c.h.b16 %v774
        %v855 = vunpack.c.l.b16 %v775
        %v856 = vunpack.c.h.b16 %v775
        %v857 = vunpack.c.l.b16 %v776
        %v858 = vunpack.c.h.b16 %v776
        %v859 = vunpack.c.l.b16 %v777
        %v860 = vunpack.c.h.b16 %v777
        %v861 = vunpack.c.l.b16 %v778
        %v862 = vunpack.c.h.b16 %v778
        %v863 = vunpack.c.l.b16 %v779
        %v864 = vunpack.c.h.b16 %v779
        %v865 = vunpack.c.l.b16 %v780
        %v866 = vunpack.c.h.b16 %v780
        %v867 = vunpack.c.l.b16 %v781
        %v868 = vunpack.c.h.b16 %v781
        %v869 = vunpack.c.l.b16 %v782
        %v870 = vunpack.c.h.b16 %v782
        %v871 = vunpack.c.l.b16 %v783
        %v872 = vunpack.c.h.b16 %v783
        %v873 = vunpack.c.l.b16 %v784
        %v874 = vunpack.c.h.b16 %v784
        %v875 = vunpack.c.l.b16 %v785
        %v876 = vunpack.c.h.b16 %v785
        %v877 = vunpack.c.l.b16 %v786
        %v878 = vunpack.c.h.b16 %v786
        %v879 = vunpack.c.l.b16 %v787
        %v880 = vunpack.c.h.b16 %v787
        %v881 = vunpack.c.l.b16 %v788
        %v882 = vunpack.c.h.b16 %v788
        %v883 = vunpack.c.l.b16 %v789
        %v884 = vunpack.c.h.b16 %v789
        %v885 = vunpack.c.l.b16 %v790
        %v886 = vunpack.c.h.b16 %v790
        %v887 = vunpack.c.l.b16 %v791
        %v888 = vunpack.c.h.b16 %v791
        %v889 = vunpack.c.l.b16 %v792
        %v890 = vunpack.c.h.b16 %v792
        %v891 = vunpack.c.l.b16 %v793
        %v892 = vunpack.c.h.b16 %v793
        %v893 = vunpack.c.l.b16 %v794
        %v894 = vunpack.c.h.b16 %v794
        %v895 = vunpack.c.l.b16 %v795
        %v896 = vunpack.c.h.b16 %v795
        %v897 = vunpack.c.l.b16 %v796
        %v898 = vunpack.c.h.b16 %v796
        %v899 = vunpack.c.l.b16 %v797
        %v900 = vunpack.c.h.b16 %v797
        %v901 = vunpack.c.l.b16 %v798
        %v902 = vunpack.c.h.b16 %v798
        %v903 = vunpack.c.l.b16 %v799
        %v904 = vunpack.c.h.b16 %v799
        %v905 = vunpack.c.l.b16 %v800
        %v906 = vunpack.c.h.b16 %v800
        %v907 = vunpack.c.l.b16 %v801
        %v908 = vunpack.c.h.b16 %v801
        %v909 = vunpack.c.l.b16 %v802
        %v910 = vunpack.c.h.b16 %v802
        %v911 = vpack.c.b16 %v849, %v847
        %v912 = vpack.c.b16 %v850, %v848
        %v913 = vpack.c.b16 %v853, %v851
        %v914 = vpack.c.b16 %v854, %v852
        %v915 = vpack.c.b16 %v857, %v855
        %v916 = vpack.c.b16 %v858, %v856
        %v917 = vpack.c.b16 %v861, %v859
        %v918 = vpack.c.b16 %v862, %v860
        %v919 = vpack.c.b16 %v865, %v863
        %v920 = vpack.c.b16 %v866, %v864
        %v921 = vpack.c.b16 %v869, %v867
        %v922 = vpack.c.b16 %v870, %v868
        %v923 = vpack.c.b16 %v873, %v871
        %v924 = vpack.c.b16 %v874, %v872
        %v925 = vpack.c.b16 %v877, %v875
        %v926 = vpack.c.b16 %v878, %v876
        %v927 = vpack.c.b16 %v881, %v879
        %v928 = vpack.c.b16 %v882, %v880
        %v929 = vpack.c.b16 %v885, %v883
        %v930 = vpack.c.b16 %v886, %v884
        %v931 = vpack.c.b16 %v889, %v887
        %v932 = vpack.c.b16 %v890, %v888
        %v933 = vpack.c.b16 %v893, %v891
        %v934 = vpack.c.b16 %v894, %v892
        %v935 = vpack.c.b16 %v897, %v895
        %v936 = vpack.c.b16 %v898, %v896
        %v937 = vpack.c.b16 %v901, %v899
        %v938 = vpack.c.b16 %v902, %v900
        %v939 = vpack.c.b16 %v905, %v903
        %v940 = vpack.c.b16 %v906, %v904
        %v941 = vpack.c.b16 %v909, %v907
        %v942 = vpack.c.b16 %v910, %v908
        %975 = vmatprep.subr.bf16.mxu0 %v912
        %976 = vmatpush1.bf16.msra.mxu0 %v911
        %977 = vmatprep.subr.bf16.mxu0 %v914
        %978 = vmatpush1.bf16.msra.mxu0 %v913
        %979 = vmatprep.subr.bf16.mxu0 %v916
        %980 = vmatpush1.bf16.msra.mxu0 %v915
        %981 = vmatprep.subr.bf16.mxu0 %v918
        %982 = vmatpush1.bf16.msra.mxu0 %v917
        %983 = vmatprep.subr.bf16.mxu0 %v920
        %984 = vmatpush1.bf16.msra.mxu0 %v919
        %985 = vmatprep.subr.bf16.mxu0 %v922
        %986 = vmatpush1.bf16.msra.mxu0 %v921
        %987 = vmatprep.subr.bf16.mxu0 %v924
        %988 = vmatpush1.bf16.msra.mxu0 %v923
        %989 = vmatprep.subr.bf16.mxu0 %v926
        %990 = vmatpush1.bf16.msra.mxu0 %v925
        %991 = vmatprep.subr.bf16.mxu0 %v928
        %992 = vmatpush1.bf16.msra.mxu0 %v927
        %993 = vmatprep.subr.bf16.mxu0 %v930
        %994 = vmatpush1.bf16.msra.mxu0 %v929
        %995 = vmatprep.subr.bf16.mxu0 %v932
        %996 = vmatpush1.bf16.msra.mxu0 %v931
        %997 = vmatprep.subr.bf16.mxu0 %v934
        %998 = vmatpush1.bf16.msra.mxu0 %v933
        %999 = vmatprep.subr.bf16.mxu0 %v936
        %1000 = vmatpush1.bf16.msra.mxu0 %v935
        %1001 = vmatprep.subr.bf16.mxu0 %v938
        %1002 = vmatpush1.bf16.msra.mxu0 %v937
        %1003 = vmatprep.subr.bf16.mxu0 %v940
        %1004 = vmatpush1.bf16.msra.mxu0 %v939
        %1005 = vmatprep.subr.bf16.mxu0 %v942
        %1006 = vmatpush1.bf16.msra.mxu0 %v941
        %1007 = vmatprep.mubr.bf16.mxu0 %v740
        %1008 = vmatmul.mubr.bf16.gmra.mrb[0].mxu0 %v739
        %v1009 = vpop.f32.mrb[0].mxu0
        %v1010 = vadd.f32 %v808, %v1009
        %v1011 = vpop.f32.mrb[0].mxu0
        %v1012 = vadd.f32 %v812, %v1011
        %v1013 = vpop.f32.mrb[0].mxu0
        %v1014 = vadd.f32 %v808, %v1013
        %v1015 = vpop.f32.mrb[0].mxu0
        %v1016 = vadd.f32 %v812, %v1015
        %1017 = vmatprep.mubr.bf16.mxu0 %v742
        %1018 = vmatmul.mubr.bf16.gmra.mrb[0].mxu0 %v741
        %v1019 = vpop.f32.mrb[0].mxu0
        %v1020 = vadd.f32 %v808, %v1019
        %v1021 = vpop.f32.mrb[0].mxu0
        %v1022 = vadd.f32 %v812, %v1021
        %v1023 = vpop.f32.mrb[0].mxu0
        %v1024 = vadd.f32 %v808, %v1023
        %v1025 = vpop.f32.mrb[0].mxu0
        %v1026 = vadd.f32 %v812, %v1025
        %1027 = vmatprep.mubr.bf16.mxu0 %v744
        %1028 = vmatmul.mubr.bf16.gmra.mrb[0].mxu0 %v743
        %v1029 = vpop.f32.mrb[0].mxu0
        %v1030 = vadd.f32 %v808, %v1029
        %v1031 = vpop.f32.mrb[0].mxu0
        %v1032 = vadd.f32 %v812, %v1031
        %v1033 = vpop.f32.mrb[0].mxu0
        %v1034 = vadd.f32 %v808, %v1033
        %v1035 = vpop.f32.mrb[0].mxu0
        %v1036 = vadd.f32 %v812, %v1035
        %1037 = vmatprep.mubr.bf16.mxu0 %v746
        %1038 = vmatmul.mubr.bf16.gmra.mrb[0].mxu0 %v745
        %v1039 = vpop.f32.mrb[0].mxu0
        %v1040 = vadd.f32 %v808, %v1039
        %v1041 = vpop.f32.mrb[0].mxu0
        %v1042 = vadd.f32 %v812, %v1041
        %v1043 = vpop.f32.mrb[0].mxu0
        %v1044 = vadd.f32 %v808, %v1043
        %v1045 = vpop.f32.mrb[0].mxu0
        %v1046 = vadd.f32 %v812, %v1045
        %1047 = vmatprep.mubr.bf16.mxu0 %v748
        %1048 = vmatmul.mubr.bf16.gmra.mrb[0].mxu0 %v747
        %v1049 = vpop.f32.mrb[0].mxu0
        %v1050 = vadd.f32 %v808, %v1049
        %v1051 = vpop.f32.mrb[0].mxu0
        %v1052 = vadd.f32 %v812, %v1051
        %v1053 = vpop.f32.mrb[0].mxu0
        %v1054 = vadd.f32 %v808, %v1053
        %v1055 = vpop.f32.mrb[0].mxu0
        %v1056 = vadd.f32 %v812, %v1055
        %1057 = vmatprep.mubr.bf16.mxu0 %v750
        %1058 = vmatmul.mubr.bf16.gmra.mrb[0].mxu0 %v749
        %v1059 = vpop.f32.mrb[0].mxu0
        %v1060 = vadd.f32 %v808, %v1059
        %v1061 = vpop.f32.mrb[0].mxu0
        %v1062 = vadd.f32 %v812, %v1061
        %v1063 = vpop.f32.mrb[0].mxu0
        %v1064 = vadd.f32 %v808, %v1063
        %v1065 = vpop.f32.mrb[0].mxu0
        %v1066 = vadd.f32 %v812, %v1065
        %1067 = vmatprep.mubr.bf16.mxu0 %v752
        %1068 = vmatmul.mubr.bf16.gmra.mrb[0].mxu0 %v751
        %v1069 = vpop.f32.mrb[0].mxu0
        %v1070 = vadd.f32 %v808, %v1069
        %v1071 = vpop.f32.mrb[0].mxu0
        %v1072 = vadd.f32 %v812, %v1071
        %v1073 = vpop.f32.mrb[0].mxu0
        %v1074 = vadd.f32 %v808, %v1073
        %v1075 = vpop.f32.mrb[0].mxu0
        %v1076 = vadd.f32 %v812, %v1075
        %1077 = vmatprep.mubr.bf16.mxu0 %v754
        %1078 = vmatmul.mubr.bf16.gmra.mrb[0].mxu0 %v753
        %v1079 = vpop.f32.mrb[0].mxu0
        %v1080 = vadd.f32 %v808, %v1079
        %v1081 = vpop.f32.mrb[0].mxu0
        %v1082 = vadd.f32 %v812, %v1081
        %v1083 = vpop.f32.mrb[0].mxu0
        %v1084 = vadd.f32 %v808, %v1083
        %v1085 = vpop.f32.mrb[0].mxu0
        %v1086 = vadd.f32 %v812, %v1085
        %1087 = vmatprep.mubr.bf16.mxu0 %v756
        %1088 = vmatmul.mubr.bf16.gmra.mrb[0].mxu0 %v755
        %v1089 = vpop.f32.mrb[0].mxu0
        %v1090 = vadd.f32 %v808, %v1089
        %v1091 = vpop.f32.mrb[0].mxu0
        %v1092 = vadd.f32 %v812, %v1091
        %v1093 = vpop.f32.mrb[0].mxu0
        %v1094 = vadd.f32 %v808, %v1093
        %v1095 = vpop.f32.mrb[0].mxu0
        %v1096 = vadd.f32 %v812, %v1095
        %1097 = vmatprep.mubr.bf16.mxu0 %v758
        %1098 = vmatmul.mubr.bf16.gmra.mrb[0].mxu0 %v757
        %v1099 = vpop.f32.mrb[0].mxu0
        %v1100 = vadd.f32 %v808, %v1099
        %v1101 = vpop.f32.mrb[0].mxu0
        %v1102 = vadd.f32 %v812, %v1101
        %v1103 = vpop.f32.mrb[0].mxu0
        %v1104 = vadd.f32 %v808, %v1103
        %v1105 = vpop.f32.mrb[0].mxu0
        %v1106 = vadd.f32 %v812, %v1105
        %1107 = vmatprep.mubr.bf16.mxu0 %v760
        %1108 = vmatmul.mubr.bf16.gmra.mrb[0].mxu0 %v759
        %v1109 = vpop.f32.mrb[0].mxu0
        %v1110 = vadd.f32 %v808, %v1109
        %v1111 = vpop.f32.mrb[0].mxu0
        %v1112 = vadd.f32 %v812, %v1111
        %v1113 = vpop.f32.mrb[0].mxu0
        %v1114 = vadd.f32 %v808, %v1113
        %v1115 = vpop.f32.mrb[0].mxu0
        %v1116 = vadd.f32 %v812, %v1115
        %1117 = vmatprep.mubr.bf16.mxu0 %v762
        %1118 = vmatmul.mubr.bf16.gmra.mrb[0].mxu0 %v761
        %v1119 = vpop.f32.mrb[0].mxu0
        %v1120 = vadd.f32 %v808, %v1119
        %v1121 = vpop.f32.mrb[0].mxu0
        %v1122 = vadd.f32 %v812, %v1121
        %v1123 = vpop.f32.mrb[0].mxu0
        %v1124 = vadd.f32 %v808, %v1123
        %v1125 = vpop.f32.mrb[0].mxu0
        %v1126 = vadd.f32 %v812, %v1125
        %1127 = vmatprep.mubr.bf16.mxu0 %v764
        %1128 = vmatmul.mubr.bf16.gmra.mrb[0].mxu0 %v763
        %v1129 = vpop.f32.mrb[0].mxu0
        %v1130 = vadd.f32 %v808, %v1129
        %v1131 = vpop.f32.mrb[0].mxu0
        %v1132 = vadd.f32 %v812, %v1131
        %v1133 = vpop.f32.mrb[0].mxu0
        %v1134 = vadd.f32 %v808, %v1133
        %v1135 = vpop.f32.mrb[0].mxu0
        %v1136 = vadd.f32 %v812, %v1135
        %1137 = vmatprep.mubr.bf16.mxu0 %v766
        %1138 = vmatmul.mubr.bf16.gmra.mrb[0].mxu0 %v765
        %v1139 = vpop.f32.mrb[0].mxu0
        %v1140 = vadd.f32 %v808, %v1139
        %v1141 = vpop.f32.mrb[0].mxu0
        %v1142 = vadd.f32 %v812, %v1141
        %v1143 = vpop.f32.mrb[0].mxu0
        %v1144 = vadd.f32 %v808, %v1143
        %v1145 = vpop.f32.mrb[0].mxu0
        %v1146 = vadd.f32 %v812, %v1145
        %1147 = vmatprep.mubr.bf16.mxu0 %v768
        %1148 = vmatmul.mubr.bf16.gmra.mrb[0].mxu0 %v767
        %v1149 = vpop.f32.mrb[0].mxu0
        %v1150 = vadd.f32 %v808, %v1149
        %v1151 = vpop.f32.mrb[0].mxu0
        %v1152 = vadd.f32 %v812, %v1151
        %v1153 = vpop.f32.mrb[0].mxu0
        %v1154 = vadd.f32 %v808, %v1153
        %v1155 = vpop.f32.mrb[0].mxu0
        %v1156 = vadd.f32 %v812, %v1155
        %1157 = vmatprep.mubr.bf16.mxu0 %v770
        %1158 = vmatmul.mubr.bf16.gmra.mrb[0].mxu0 %v769
        %v1159 = vpop.f32.mrb[0].mxu0
        %v1160 = vadd.f32 %v808, %v1159
        %v1161 = vpop.f32.mrb[0].mxu0
        %v1162 = vadd.f32 %v812, %v1161
        %v1163 = vpop.f32.mrb[0].mxu0
        %v1164 = vadd.f32 %v808, %v1163
        %v1165 = vpop.f32.mrb[0].mxu0
        %v1166 = vadd.f32 %v812, %v1165
        %1167 = vdwg.mxu0
        %v1168 = vmax.f32 %v1010, 0.0
        %v1169 = vmax.f32 %v1012, 0.0
        %v1170 = vmax.f32 %v1014, 0.0
        %v1171 = vmax.f32 %v1016, 0.0
        %v1172 = vmax.f32 %v1020, 0.0
        %v1173 = vmax.f32 %v1022, 0.0
        %v1174 = vmax.f32 %v1024, 0.0
        %v1175 = vmax.f32 %v1026, 0.0
        %v1176 = vmax.f32 %v1030, 0.0
        %v1177 = vmax.f32 %v1032, 0.0
        %v1178 = vmax.f32 %v1034, 0.0
        %v1179 = vmax.f32 %v1036, 0.0
        %v1180 = vmax.f32 %v1040, 0.0
        %v1181 = vmax.f32 %v1042, 0.0
        %v1182 = vmax.f32 %v1044, 0.0
        %v1183 = vmax.f32 %v1046, 0.0
        %v1184 = vmax.f32 %v1050, 0.0
        %v1185 = vmax.f32 %v1052, 0.0
        %v1186 = vmax.f32 %v1054, 0.0
        %v1187 = vmax.f32 %v1056, 0.0
        %v1188 = vmax.f32 %v1060, 0.0
        %v1189 = vmax.f32 %v1062, 0.0
        %v1190 = vmax.f32 %v1064, 0.0
        %v1191 = vmax.f32 %v1066, 0.0
        %v1192 = vmax.f32 %v1070, 0.0
        %v1193 = vmax.f32 %v1072, 0.0
        %v1194 = vmax.f32 %v1074, 0.0
        %v1195 = vmax.f32 %v1076, 0.0
        %v1196 = vmax.f32 %v1080, 0.0
        %v1197 = vmax.f32 %v1082, 0.0
        %v1198 = vmax.f32 %v1084, 0.0
        %v1199 = vmax.f32 %v1086, 0.0
        %v1200 = vmax.f32 %v1090, 0.0
        %v1201 = vmax.f32 %v1092, 0.0
        %v1202 = vmax.f32 %v1094, 0.0
        %v1203 = vmax.f32 %v1096, 0.0
        %v1204 = vmax.f32 %v1100, 0.0
        %v1205 = vmax.f32 %v1102, 0.0
        %v1206 = vmax.f32 %v1104, 0.0
        %v1207 = vmax.f32 %v1106, 0.0
        %v1208 = vmax.f32 %v1110, 0.0
        %v1209 = vmax.f32 %v1112, 0.0
        %v1210 = vmax.f32 %v1114, 0.0
        %v1211 = vmax.f32 %v1116, 0.0
        %v1212 = vmax.f32 %v1120, 0.0
        %v1213 = vmax.f32 %v1122, 0.0
        %v1214 = vmax.f32 %v1124, 0.0
        %v1215 = vmax.f32 %v1126, 0.0
        %v1216 = vmax.f32 %v1130, 0.0
        %v1217 = vmax.f32 %v1132, 0.0
        %v1218 = vmax.f32 %v1134, 0.0
        %v1219 = vmax.f32 %v1136, 0.0
        %v1220 = vmax.f32 %v1140, 0.0
        %v1221 = vmax.f32 %v1142, 0.0
        %v1222 = vmax.f32 %v1144, 0.0
        %v1223 = vmax.f32 %v1146, 0.0
        %v1224 = vmax.f32 %v1150, 0.0
        %v1225 = vmax.f32 %v1152, 0.0
        %v1226 = vmax.f32 %v1154, 0.0
        %v1227 = vmax.f32 %v1156, 0.0
        %v1228 = vmax.f32 %v1160, 0.0
        %v1229 = vmax.f32 %v1162, 0.0
        %v1230 = vmax.f32 %v1164, 0.0
        %v1231 = vmax.f32 %v1166, 0.0
        %v1232 = vpack.c.bf16 %v1170, %v1168
        %v1233 = vpack.c.bf16 %v1171, %v1169
        %v1234 = vpack.c.bf16 %v1174, %v1172
        %v1235 = vpack.c.bf16 %v1175, %v1173
        %v1236 = vpack.c.bf16 %v1178, %v1176
        %v1237 = vpack.c.bf16 %v1179, %v1177
        %v1238 = vpack.c.bf16 %v1182, %v1180
        %v1239 = vpack.c.bf16 %v1183, %v1181
        %v1240 = vpack.c.bf16 %v1186, %v1184
        %v1241 = vpack.c.bf16 %v1187, %v1185
        %v1242 = vpack.c.bf16 %v1190, %v1188
        %v1243 = vpack.c.bf16 %v1191, %v1189
        %v1244 = vpack.c.bf16 %v1194, %v1192
        %v1245 = vpack.c.bf16 %v1195, %v1193
        %v1246 = vpack.c.bf16 %v1198, %v1196
        %v1247 = vpack.c.bf16 %v1199, %v1197
        %v1248 = vpack.c.bf16 %v1202, %v1200
        %v1249 = vpack.c.bf16 %v1203, %v1201
        %v1250 = vpack.c.bf16 %v1206, %v1204
        %v1251 = vpack.c.bf16 %v1207, %v1205
        %v1252 = vpack.c.bf16 %v1210, %v1208
        %v1253 = vpack.c.bf16 %v1211, %v1209
        %v1254 = vpack.c.bf16 %v1214, %v1212
        %v1255 = vpack.c.bf16 %v1215, %v1213
        %v1256 = vpack.c.bf16 %v1218, %v1216
        %v1257 = vpack.c.bf16 %v1219, %v1217
        %v1258 = vpack.c.bf16 %v1222, %v1220
        %v1259 = vpack.c.bf16 %v1223, %v1221
        %v1260 = vpack.c.bf16 %v1226, %v1224
        %v1261 = vpack.c.bf16 %v1227, %v1225
        %v1262 = vpack.c.bf16 %v1230, %v1228
        %v1263 = vpack.c.bf16 %v1231, %v1229
        %s1264 = scalar_lea.vmem [#allocation2], 256
        %v1265 = vld [vmem:[%s1264] sm:$0xff]
        %v1266 = vld [vmem:[%s1264 + $0x8] sm:$0xff]
        %v1267 = vld [vmem:[%s1264 + $0x10] sm:$0xff]
        %v1268 = vld [vmem:[%s1264 + $0x18] sm:$0xff]
        %v1269 = vld [vmem:[%s1264 + $0x20] sm:$0xff]
        %v1270 = vld [vmem:[%s1264 + $0x28] sm:$0xff]
        %v1271 = vld [vmem:[%s1264 + $0x30] sm:$0xff]
        %v1272 = vld [vmem:[%s1264 + $0x38] sm:$0xff]
        %v1273 = vld [vmem:[%s1264 + $0x40] sm:$0xff]
        %v1274 = vld [vmem:[%s1264 + $0x48] sm:$0xff]
        %v1275 = vld [vmem:[%s1264 + $0x50] sm:$0xff]
        %v1276 = vld [vmem:[%s1264 + $0x58] sm:$0xff]
        %v1277 = vld [vmem:[%s1264 + $0x60] sm:$0xff]
        %v1278 = vld [vmem:[%s1264 + $0x68] sm:$0xff]
        %v1279 = vld [vmem:[%s1264 + $0x70] sm:$0xff]
        %v1280 = vld [vmem:[%s1264 + $0x78] sm:$0xff]
        %v1281 = vld [vmem:[%s1264 + $0x80] sm:$0xff]
        %v1282 = vld [vmem:[%s1264 + $0x88] sm:$0xff]
        %v1283 = vld [vmem:[%s1264 + $0x90] sm:$0xff]
        %v1284 = vld [vmem:[%s1264 + $0x98] sm:$0xff]
        %v1285 = vld [vmem:[%s1264 + $0xa0] sm:$0xff]
        %v1286 = vld [vmem:[%s1264 + $0xa8] sm:$0xff]
        %v1287 = vld [vmem:[%s1264 + $0xb0] sm:$0xff]
        %v1288 = vld [vmem:[%s1264 + $0xb8] sm:$0xff]
        %v1289 = vld [vmem:[%s1264 + $0xc0] sm:$0xff]
        %v1290 = vld [vmem:[%s1264 + $0xc8] sm:$0xff]
        %v1291 = vld [vmem:[%s1264 + $0xd0] sm:$0xff]
        %v1292 = vld [vmem:[%s1264 + $0xd8] sm:$0xff]
        %v1293 = vld [vmem:[%s1264 + $0xe0] sm:$0xff]
        %v1294 = vld [vmem:[%s1264 + $0xe8] sm:$0xff]
        %v1295 = vld [vmem:[%s1264 + $0xf0] sm:$0xff]
        %v1296 = vld [vmem:[%s1264 + $0xf8] sm:$0xff]
        %s1297 = scalar_lea.vmem %s4, 2
        %v1298 = vld [vmem:[%s1297] sm:$0x3]
        %v1300 = vlaneseq
        %v1301 = vshrl.u32 %v1300, 7
        %v1302 = vsub.s32 0, %v1301
        %v1303 = vrot.slane %v1298, %v1302
        %v1304 = vlaneseq
        %v1305 = vshrl.u32 %v1304, 7
        %v1306 = vsub.s32 1, %v1305
        %v1307 = vrot.slane %v1298, %v1306
        %v1342 = vunpack.c.l.b16 %v1265
        %v1343 = vunpack.c.h.b16 %v1265
        %v1344 = vunpack.c.l.b16 %v1266
        %v1345 = vunpack.c.h.b16 %v1266
        %v1346 = vunpack.c.l.b16 %v1267
        %v1347 = vunpack.c.h.b16 %v1267
        %v1348 = vunpack.c.l.b16 %v1268
        %v1349 = vunpack.c.h.b16 %v1268
        %v1350 = vunpack.c.l.b16 %v1269
        %v1351 = vunpack.c.h.b16 %v1269
        %v1352 = vunpack.c.l.b16 %v1270
        %v1353 = vunpack.c.h.b16 %v1270
        %v1354 = vunpack.c.l.b16 %v1271
        %v1355 = vunpack.c.h.b16 %v1271
        %v1356 = vunpack.c.l.b16 %v1272
        %v1357 = vunpack.c.h.b16 %v1272
        %v1358 = vunpack.c.l.b16 %v1273
        %v1359 = vunpack.c.h.b16 %v1273
        %v1360 = vunpack.c.l.b16 %v1274
        %v1361 = vunpack.c.h.b16 %v1274
        %v1362 = vunpack.c.l.b16 %v1275
        %v1363 = vunpack.c.h.b16 %v1275
        %v1364 = vunpack.c.l.b16 %v1276
        %v1365 = vunpack.c.h.b16 %v1276
        %v1366 = vunpack.c.l.b16 %v1277
        %v1367 = vunpack.c.h.b16 %v1277
        %v1368 = vunpack.c.l.b16 %v1278
        %v1369 = vunpack.c.h.b16 %v1278
        %v1370 = vunpack.c.l.b16 %v1279
        %v1371 = vunpack.c.h.b16 %v1279
        %v1372 = vunpack.c.l.b16 %v1280
        %v1373 = vunpack.c.h.b16 %v1280
        %v1374 = vunpack.c.l.b16 %v1281
        %v1375 = vunpack.c.h.b16 %v1281
        %v1376 = vunpack.c.l.b16 %v1282
        %v1377 = vunpack.c.h.b16 %v1282
        %v1378 = vunpack.c.l.b16 %v1283
        %v1379 = vunpack.c.h.b16 %v1283
        %v1380 = vunpack.c.l.b16 %v1284
        %v1381 = vunpack.c.h.b16 %v1284
        %v1382 = vunpack.c.l.b16 %v1285
        %v1383 = vunpack.c.h.b16 %v1285
        %v1384 = vunpack.c.l.b16 %v1286
        %v1385 = vunpack.c.h.b16 %v1286
        %v1386 = vunpack.c.l.b16 %v1287
        %v1387 = vunpack.c.h.b16 %v1287
        %v1388 = vunpack.c.l.b16 %v1288
        %v1389 = vunpack.c.h.b16 %v1288
        %v1390 = vunpack.c.l.b16 %v1289
        %v1391 = vunpack.c.h.b16 %v1289
        %v1392 = vunpack.c.l.b16 %v1290
        %v1393 = vunpack.c.h.b16 %v1290
        %v1394 = vunpack.c.l.b16 %v1291
        %v1395 = vunpack.c.h.b16 %v1291
        %v1396 = vunpack.c.l.b16 %v1292
        %v1397 = vunpack.c.h.b16 %v1292
        %v1398 = vunpack.c.l.b16 %v1293
        %v1399 = vunpack.c.h.b16 %v1293
        %v1400 = vunpack.c.l.b16 %v1294
        %v1401 = vunpack.c.h.b16 %v1294
        %v1402 = vunpack.c.l.b16 %v1295
        %v1403 = vunpack.c.h.b16 %v1295
        %v1404 = vunpack.c.l.b16 %v1296
        %v1405 = vunpack.c.h.b16 %v1296
        %v1406 = vpack.c.b16 %v1344, %v1342
        %v1407 = vpack.c.b16 %v1345, %v1343
        %v1408 = vpack.c.b16 %v1348, %v1346
        %v1409 = vpack.c.b16 %v1349, %v1347
        %v1410 = vpack.c.b16 %v1352, %v1350
        %v1411 = vpack.c.b16 %v1353, %v1351
        %v1412 = vpack.c.b16 %v1356, %v1354
        %v1413 = vpack.c.b16 %v1357, %v1355
        %v1414 = vpack.c.b16 %v1360, %v1358
        %v1415 = vpack.c.b16 %v1361, %v1359
        %v1416 = vpack.c.b16 %v1364, %v1362
        %v1417 = vpack.c.b16 %v1365, %v1363
        %v1418 = vpack.c.b16 %v1368, %v1366
        %v1419 = vpack.c.b16 %v1369, %v1367
        %v1420 = vpack.c.b16 %v1372, %v1370
        %v1421 = vpack.c.b16 %v1373, %v1371
        %v1422 = vpack.c.b16 %v1376, %v1374
        %v1423 = vpack.c.b16 %v1377, %v1375
        %v1424 = vpack.c.b16 %v1380, %v1378
        %v1425 = vpack.c.b16 %v1381, %v1379
        %v1426 = vpack.c.b16 %v1384, %v1382
        %v1427 = vpack.c.b16 %v1385, %v1383
        %v1428 = vpack.c.b16 %v1388, %v1386
        %v1429 = vpack.c.b16 %v1389, %v1387
        %v1430 = vpack.c.b16 %v1392, %v1390
        %v1431 = vpack.c.b16 %v1393, %v1391
        %v1432 = vpack.c.b16 %v1396, %v1394
        %v1433 = vpack.c.b16 %v1397, %v1395
        %v1434 = vpack.c.b16 %v1400, %v1398
        %v1435 = vpack.c.b16 %v1401, %v1399
        %v1436 = vpack.c.b16 %v1404, %v1402
        %v1437 = vpack.c.b16 %v1405, %v1403
        %1470 = vmatprep.subr.bf16.mxu0 %v1407
        %1471 = vmatpush1.bf16.msra.mxu0 %v1406
        %1472 = vmatprep.subr.bf16.mxu0 %v1409
        %1473 = vmatpush1.bf16.msra.mxu0 %v1408
        %1474 = vmatprep.subr.bf16.mxu0 %v1411
        %1475 = vmatpush1.bf16.msra.mxu0 %v1410
        %1476 = vmatprep.subr.bf16.mxu0 %v1413
        %1477 = vmatpush1.bf16.msra.mxu0 %v1412
        %1478 = vmatprep.subr.bf16.mxu0 %v1415
        %1479 = vmatpush1.bf16.msra.mxu0 %v1414
        %1480 = vmatprep.subr.bf16.mxu0 %v1417
        %1481 = vmatpush1.bf16.msra.mxu0 %v1416
        %1482 = vmatprep.subr.bf16.mxu0 %v1419
        %1483 = vmatpush1.bf16.msra.mxu0 %v1418
        %1484 = vmatprep.subr.bf16.mxu0 %v1421
        %1485 = vmatpush1.bf16.msra.mxu0 %v1420
        %1486 = vmatprep.subr.bf16.mxu0 %v1423
        %1487 = vmatpush1.bf16.msra.mxu0 %v1422
        %1488 = vmatprep.subr.bf16.mxu0 %v1425
        %1489 = vmatpush1.bf16.msra.mxu0 %v1424
        %1490 = vmatprep.subr.bf16.mxu0 %v1427
        %1491 = vmatpush1.bf16.msra.mxu0 %v1426
        %1492 = vmatprep.subr.bf16.mxu0 %v1429
        %1493 = vmatpush1.bf16.msra.mxu0 %v1428
        %1494 = vmatprep.subr.bf16.mxu0 %v1431
        %1495 = vmatpush1.bf16.msra.mxu0 %v1430
        %1496 = vmatprep.subr.bf16.mxu0 %v1433
        %1497 = vmatpush1.bf16.msra.mxu0 %v1432
        %1498 = vmatprep.subr.bf16.mxu0 %v1435
        %1499 = vmatpush1.bf16.msra.mxu0 %v1434
        %1500 = vmatprep.subr.bf16.mxu0 %v1437
        %1501 = vmatpush1.bf16.msra.mxu0 %v1436
        %1502 = vmatprep.mubr.bf16.mxu0 %v1233
        %1503 = vmatmul.mubr.bf16.gmra.mrb[0].mxu0 %v1232
        %v1504 = vpop.f32.mrb[0].mxu0
        %v1505 = vadd.f32 %v1303, %v1504
        %v1506 = vpop.f32.mrb[0].mxu0
        %v1507 = vadd.f32 %v1307, %v1506
        %v1508 = vpop.f32.mrb[0].mxu0
        %v1509 = vadd.f32 %v1303, %v1508
        %v1510 = vpop.f32.mrb[0].mxu0
        %v1511 = vadd.f32 %v1307, %v1510
        %1512 = vmatprep.mubr.bf16.mxu0 %v1235
        %1513 = vmatmul.mubr.bf16.gmra.mrb[0].mxu0 %v1234
        %v1514 = vpop.f32.mrb[0].mxu0
        %v1515 = vadd.f32 %v1303, %v1514
        %v1516 = vpop.f32.mrb[0].mxu0
        %v1517 = vadd.f32 %v1307, %v1516
        %v1518 = vpop.f32.mrb[0].mxu0
        %v1519 = vadd.f32 %v1303, %v1518
        %v1520 = vpop.f32.mrb[0].mxu0
        %v1521 = vadd.f32 %v1307, %v1520
        %1522 = vmatprep.mubr.bf16.mxu0 %v1237
        %1523 = vmatmul.mubr.bf16.gmra.mrb[0].mxu0 %v1236
        %v1524 = vpop.f32.mrb[0].mxu0
        %v1525 = vadd.f32 %v1303, %v1524
        %v1526 = vpop.f32.mrb[0].mxu0
        %v1527 = vadd.f32 %v1307, %v1526
        %v1528 = vpop.f32.mrb[0].mxu0
        %v1529 = vadd.f32 %v1303, %v1528
        %v1530 = vpop.f32.mrb[0].mxu0
        %v1531 = vadd.f32 %v1307, %v1530
        %1532 = vmatprep.mubr.bf16.mxu0 %v1239
        %1533 = vmatmul.mubr.bf16.gmra.mrb[0].mxu0 %v1238
        %v1534 = vpop.f32.mrb[0].mxu0
        %v1535 = vadd.f32 %v1303, %v1534
        %v1536 = vpop.f32.mrb[0].mxu0
        %v1537 = vadd.f32 %v1307, %v1536
        %v1538 = vpop.f32.mrb[0].mxu0
        %v1539 = vadd.f32 %v1303, %v1538
        %v1540 = vpop.f32.mrb[0].mxu0
        %v1541 = vadd.f32 %v1307, %v1540
        %1542 = vmatprep.mubr.bf16.mxu0 %v1241
        %1543 = vmatmul.mubr.bf16.gmra.mrb[0].mxu0 %v1240
        %v1544 = vpop.f32.mrb[0].mxu0
        %v1545 = vadd.f32 %v1303, %v1544
        %v1546 = vpop.f32.mrb[0].mxu0
        %v1547 = vadd.f32 %v1307, %v1546
        %v1548 = vpop.f32.mrb[0].mxu0
        %v1549 = vadd.f32 %v1303, %v1548
        %v1550 = vpop.f32.mrb[0].mxu0
        %v1551 = vadd.f32 %v1307, %v1550
        %1552 = vmatprep.mubr.bf16.mxu0 %v1243
        %1553 = vmatmul.mubr.bf16.gmra.mrb[0].mxu0 %v1242
        %v1554 = vpop.f32.mrb[0].mxu0
        %v1555 = vadd.f32 %v1303, %v1554
        %v1556 = vpop.f32.mrb[0].mxu0
        %v1557 = vadd.f32 %v1307, %v1556
        %v1558 = vpop.f32.mrb[0].mxu0
        %v1559 = vadd.f32 %v1303, %v1558
        %v1560 = vpop.f32.mrb[0].mxu0
        %v1561 = vadd.f32 %v1307, %v1560
        %1562 = vmatprep.mubr.bf16.mxu0 %v1245
        %1563 = vmatmul.mubr.bf16.gmra.mrb[0].mxu0 %v1244
        %v1564 = vpop.f32.mrb[0].mxu0
        %v1565 = vadd.f32 %v1303, %v1564
        %v1566 = vpop.f32.mrb[0].mxu0
        %v1567 = vadd.f32 %v1307, %v1566
        %v1568 = vpop.f32.mrb[0].mxu0
        %v1569 = vadd.f32 %v1303, %v1568
        %v1570 = vpop.f32.mrb[0].mxu0
        %v1571 = vadd.f32 %v1307, %v1570
        %1572 = vmatprep.mubr.bf16.mxu0 %v1247
        %1573 = vmatmul.mubr.bf16.gmra.mrb[0].mxu0 %v1246
        %v1574 = vpop.f32.mrb[0].mxu0
        %v1575 = vadd.f32 %v1303, %v1574
        %v1576 = vpop.f32.mrb[0].mxu0
        %v1577 = vadd.f32 %v1307, %v1576
        %v1578 = vpop.f32.mrb[0].mxu0
        %v1579 = vadd.f32 %v1303, %v1578
        %v1580 = vpop.f32.mrb[0].mxu0
        %v1581 = vadd.f32 %v1307, %v1580
        %1582 = vmatprep.mubr.bf16.mxu0 %v1249
        %1583 = vmatmul.mubr.bf16.gmra.mrb[0].mxu0 %v1248
        %v1584 = vpop.f32.mrb[0].mxu0
        %v1585 = vadd.f32 %v1303, %v1584
        %v1586 = vpop.f32.mrb[0].mxu0
        %v1587 = vadd.f32 %v1307, %v1586
        %v1588 = vpop.f32.mrb[0].mxu0
        %v1589 = vadd.f32 %v1303, %v1588
        %v1590 = vpop.f32.mrb[0].mxu0
        %v1591 = vadd.f32 %v1307, %v1590
        %1592 = vmatprep.mubr.bf16.mxu0 %v1251
        %1593 = vmatmul.mubr.bf16.gmra.mrb[0].mxu0 %v1250
        %v1594 = vpop.f32.mrb[0].mxu0
        %v1595 = vadd.f32 %v1303, %v1594
        %v1596 = vpop.f32.mrb[0].mxu0
        %v1597 = vadd.f32 %v1307, %v1596
        %v1598 = vpop.f32.mrb[0].mxu0
        %v1599 = vadd.f32 %v1303, %v1598
        %v1600 = vpop.f32.mrb[0].mxu0
        %v1601 = vadd.f32 %v1307, %v1600
        %1602 = vmatprep.mubr.bf16.mxu0 %v1253
        %1603 = vmatmul.mubr.bf16.gmra.mrb[0].mxu0 %v1252
        %v1604 = vpop.f32.mrb[0].mxu0
        %v1605 = vadd.f32 %v1303, %v1604
        %v1606 = vpop.f32.mrb[0].mxu0
        %v1607 = vadd.f32 %v1307, %v1606
        %v1608 = vpop.f32.mrb[0].mxu0
        %v1609 = vadd.f32 %v1303, %v1608
        %v1610 = vpop.f32.mrb[0].mxu0
        %v1611 = vadd.f32 %v1307, %v1610
        %1612 = vmatprep.mubr.bf16.mxu0 %v1255
        %1613 = vmatmul.mubr.bf16.gmra.mrb[0].mxu0 %v1254
        %v1614 = vpop.f32.mrb[0].mxu0
        %v1615 = vadd.f32 %v1303, %v1614
        %v1616 = vpop.f32.mrb[0].mxu0
        %v1617 = vadd.f32 %v1307, %v1616
        %v1618 = vpop.f32.mrb[0].mxu0
        %v1619 = vadd.f32 %v1303, %v1618
        %v1620 = vpop.f32.mrb[0].mxu0
        %v1621 = vadd.f32 %v1307, %v1620
        %1622 = vmatprep.mubr.bf16.mxu0 %v1257
        %1623 = vmatmul.mubr.bf16.gmra.mrb[0].mxu0 %v1256
        %v1624 = vpop.f32.mrb[0].mxu0
        %v1625 = vadd.f32 %v1303, %v1624
        %v1626 = vpop.f32.mrb[0].mxu0
        %v1627 = vadd.f32 %v1307, %v1626
        %v1628 = vpop.f32.mrb[0].mxu0
        %v1629 = vadd.f32 %v1303, %v1628
        %v1630 = vpop.f32.mrb[0].mxu0
        %v1631 = vadd.f32 %v1307, %v1630
        %1632 = vmatprep.mubr.bf16.mxu0 %v1259
        %1633 = vmatmul.mubr.bf16.gmra.mrb[0].mxu0 %v1258
        %v1634 = vpop.f32.mrb[0].mxu0
        %v1635 = vadd.f32 %v1303, %v1634
        %v1636 = vpop.f32.mrb[0].mxu0
        %v1637 = vadd.f32 %v1307, %v1636
        %v1638 = vpop.f32.mrb[0].mxu0
        %v1639 = vadd.f32 %v1303, %v1638
        %v1640 = vpop.f32.mrb[0].mxu0
        %v1641 = vadd.f32 %v1307, %v1640
        %1642 = vmatprep.mubr.bf16.mxu0 %v1261
        %1643 = vmatmul.mubr.bf16.gmra.mrb[0].mxu0 %v1260
        %v1644 = vpop.f32.mrb[0].mxu0
        %v1645 = vadd.f32 %v1303, %v1644
        %v1646 = vpop.f32.mrb[0].mxu0
        %v1647 = vadd.f32 %v1307, %v1646
        %v1648 = vpop.f32.mrb[0].mxu0
        %v1649 = vadd.f32 %v1303, %v1648
        %v1650 = vpop.f32.mrb[0].mxu0
        %v1651 = vadd.f32 %v1307, %v1650
        %1652 = vmatprep.mubr.bf16.mxu0 %v1263
        %1653 = vmatmul.mubr.bf16.gmra.mrb[0].mxu0 %v1262
        %v1654 = vpop.f32.mrb[0].mxu0
        %v1655 = vadd.f32 %v1303, %v1654
        %v1656 = vpop.f32.mrb[0].mxu0
        %v1657 = vadd.f32 %v1307, %v1656
        %v1658 = vpop.f32.mrb[0].mxu0
        %v1659 = vadd.f32 %v1303, %v1658
        %v1660 = vpop.f32.mrb[0].mxu0
        %v1661 = vadd.f32 %v1307, %v1660
        %1662 = vdwg.mxu0
        %v1663 = vmax.f32 %v1505, 0.0
        %v1664 = vmax.f32 %v1507, 0.0
        %v1665 = vmax.f32 %v1509, 0.0
        %v1666 = vmax.f32 %v1511, 0.0
        %v1667 = vmax.f32 %v1515, 0.0
        %v1668 = vmax.f32 %v1517, 0.0
        %v1669 = vmax.f32 %v1519, 0.0
        %v1670 = vmax.f32 %v1521, 0.0
        %v1671 = vmax.f32 %v1525, 0.0
        %v1672 = vmax.f32 %v1527, 0.0
        %v1673 = vmax.f32 %v1529, 0.0
        %v1674 = vmax.f32 %v1531, 0.0
        %v1675 = vmax.f32 %v1535, 0.0
        %v1676 = vmax.f32 %v1537, 0.0
        %v1677 = vmax.f32 %v1539, 0.0
        %v1678 = vmax.f32 %v1541, 0.0
        %v1679 = vmax.f32 %v1545, 0.0
        %v1680 = vmax.f32 %v1547, 0.0
        %v1681 = vmax.f32 %v1549, 0.0
        %v1682 = vmax.f32 %v1551, 0.0
        %v1683 = vmax.f32 %v1555, 0.0
        %v1684 = vmax.f32 %v1557, 0.0
        %v1685 = vmax.f32 %v1559, 0.0
        %v1686 = vmax.f32 %v1561, 0.0
        %v1687 = vmax.f32 %v1565, 0.0
        %v1688 = vmax.f32 %v1567, 0.0
        %v1689 = vmax.f32 %v1569, 0.0
        %v1690 = vmax.f32 %v1571, 0.0
        %v1691 = vmax.f32 %v1575, 0.0
        %v1692 = vmax.f32 %v1577, 0.0
        %v1693 = vmax.f32 %v1579, 0.0
        %v1694 = vmax.f32 %v1581, 0.0
        %v1695 = vmax.f32 %v1585, 0.0
        %v1696 = vmax.f32 %v1587, 0.0
        %v1697 = vmax.f32 %v1589, 0.0
        %v1698 = vmax.f32 %v1591, 0.0
        %v1699 = vmax.f32 %v1595, 0.0
        %v1700 = vmax.f32 %v1597, 0.0
        %v1701 = vmax.f32 %v1599, 0.0
        %v1702 = vmax.f32 %v1601, 0.0
        %v1703 = vmax.f32 %v1605, 0.0
        %v1704 = vmax.f32 %v1607, 0.0
        %v1705 = vmax.f32 %v1609, 0.0
        %v1706 = vmax.f32 %v1611, 0.0
        %v1707 = vmax.f32 %v1615, 0.0
        %v1708 = vmax.f32 %v1617, 0.0
        %v1709 = vmax.f32 %v1619, 0.0
        %v1710 = vmax.f32 %v1621, 0.0
        %v1711 = vmax.f32 %v1625, 0.0
        %v1712 = vmax.f32 %v1627, 0.0
        %v1713 = vmax.f32 %v1629, 0.0
        %v1714 = vmax.f32 %v1631, 0.0
        %v1715 = vmax.f32 %v1635, 0.0
        %v1716 = vmax.f32 %v1637, 0.0
        %v1717 = vmax.f32 %v1639, 0.0
        %v1718 = vmax.f32 %v1641, 0.0
        %v1719 = vmax.f32 %v1645, 0.0
        %v1720 = vmax.f32 %v1647, 0.0
        %v1721 = vmax.f32 %v1649, 0.0
        %v1722 = vmax.f32 %v1651, 0.0
        %v1723 = vmax.f32 %v1655, 0.0
        %v1724 = vmax.f32 %v1657, 0.0
        %v1725 = vmax.f32 %v1659, 0.0
        %v1726 = vmax.f32 %v1661, 0.0
        %v1727 = vpack.c.bf16 %v1665, %v1663
        %v1728 = vpack.c.bf16 %v1666, %v1664
        %v1729 = vpack.c.bf16 %v1669, %v1667
        %v1730 = vpack.c.bf16 %v1670, %v1668
        %v1731 = vpack.c.bf16 %v1673, %v1671
        %v1732 = vpack.c.bf16 %v1674, %v1672
        %v1733 = vpack.c.bf16 %v1677, %v1675
        %v1734 = vpack.c.bf16 %v1678, %v1676
        %v1735 = vpack.c.bf16 %v1681, %v1679
        %v1736 = vpack.c.bf16 %v1682, %v1680
        %v1737 = vpack.c.bf16 %v1685, %v1683
        %v1738 = vpack.c.bf16 %v1686, %v1684
        %v1739 = vpack.c.bf16 %v1689, %v1687
        %v1740 = vpack.c.bf16 %v1690, %v1688
        %v1741 = vpack.c.bf16 %v1693, %v1691
        %v1742 = vpack.c.bf16 %v1694, %v1692
        %v1743 = vpack.c.bf16 %v1697, %v1695
        %v1744 = vpack.c.bf16 %v1698, %v1696
        %v1745 = vpack.c.bf16 %v1701, %v1699
        %v1746 = vpack.c.bf16 %v1702, %v1700
        %v1747 = vpack.c.bf16 %v1705, %v1703
        %v1748 = vpack.c.bf16 %v1706, %v1704
        %v1749 = vpack.c.bf16 %v1709, %v1707
        %v1750 = vpack.c.bf16 %v1710, %v1708
        %v1751 = vpack.c.bf16 %v1713, %v1711
        %v1752 = vpack.c.bf16 %v1714, %v1712
        %v1753 = vpack.c.bf16 %v1717, %v1715
        %v1754 = vpack.c.bf16 %v1718, %v1716
        %v1755 = vpack.c.bf16 %v1721, %v1719
        %v1756 = vpack.c.bf16 %v1722, %v1720
        %v1757 = vpack.c.bf16 %v1725, %v1723
        %v1758 = vpack.c.bf16 %v1726, %v1724
        %s1759 = scalar_lea.vmem [#allocation2], 512
        %v1760 = vld [vmem:[%s1759] sm:$0xff]
        %v1761 = vld [vmem:[%s1759 + $0x8] sm:$0xff]
        %v1762 = vld [vmem:[%s1759 + $0x10] sm:$0xff]
        %v1763 = vld [vmem:[%s1759 + $0x18] sm:$0xff]
        %v1764 = vld [vmem:[%s1759 + $0x20] sm:$0xff]
        %v1765 = vld [vmem:[%s1759 + $0x28] sm:$0xff]
        %v1766 = vld [vmem:[%s1759 + $0x30] sm:$0xff]
        %v1767 = vld [vmem:[%s1759 + $0x38] sm:$0xff]
        %v1768 = vld [vmem:[%s1759 + $0x40] sm:$0xff]
        %v1769 = vld [vmem:[%s1759 + $0x48] sm:$0xff]
        %v1770 = vld [vmem:[%s1759 + $0x50] sm:$0xff]
        %v1771 = vld [vmem:[%s1759 + $0x58] sm:$0xff]
        %v1772 = vld [vmem:[%s1759 + $0x60] sm:$0xff]
        %v1773 = vld [vmem:[%s1759 + $0x68] sm:$0xff]
        %v1774 = vld [vmem:[%s1759 + $0x70] sm:$0xff]
        %v1775 = vld [vmem:[%s1759 + $0x78] sm:$0xff]
        %v1776 = vld [vmem:[%s1759 + $0x80] sm:$0xff]
        %v1777 = vld [vmem:[%s1759 + $0x88] sm:$0xff]
        %v1778 = vld [vmem:[%s1759 + $0x90] sm:$0xff]
        %v1779 = vld [vmem:[%s1759 + $0x98] sm:$0xff]
        %v1780 = vld [vmem:[%s1759 + $0xa0] sm:$0xff]
        %v1781 = vld [vmem:[%s1759 + $0xa8] sm:$0xff]
        %v1782 = vld [vmem:[%s1759 + $0xb0] sm:$0xff]
        %v1783 = vld [vmem:[%s1759 + $0xb8] sm:$0xff]
        %v1784 = vld [vmem:[%s1759 + $0xc0] sm:$0xff]
        %v1785 = vld [vmem:[%s1759 + $0xc8] sm:$0xff]
        %v1786 = vld [vmem:[%s1759 + $0xd0] sm:$0xff]
        %v1787 = vld [vmem:[%s1759 + $0xd8] sm:$0xff]
        %v1788 = vld [vmem:[%s1759 + $0xe0] sm:$0xff]
        %v1789 = vld [vmem:[%s1759 + $0xe8] sm:$0xff]
        %v1790 = vld [vmem:[%s1759 + $0xf0] sm:$0xff]
        %v1791 = vld [vmem:[%s1759 + $0xf8] sm:$0xff]
        %s1792 = scalar_lea.vmem %s4, 4
        %v1793 = vld [vmem:[%s1792] sm:$0x3]
        %v1795 = vlaneseq
        %v1796 = vshrl.u32 %v1795, 7
        %v1797 = vsub.s32 0, %v1796
        %v1798 = vrot.slane %v1793, %v1797
        %v1799 = vlaneseq
        %v1800 = vshrl.u32 %v1799, 7
        %v1801 = vsub.s32 1, %v1800
        %v1802 = vrot.slane %v1793, %v1801
        %v1837 = vunpack.c.l.b16 %v1760
        %v1838 = vunpack.c.h.b16 %v1760
        %v1839 = vunpack.c.l.b16 %v1761
        %v1840 = vunpack.c.h.b16 %v1761
        %v1841 = vunpack.c.l.b16 %v1762
        %v1842 = vunpack.c.h.b16 %v1762
        %v1843 = vunpack.c.l.b16 %v1763
        %v1844 = vunpack.c.h.b16 %v1763
        %v1845 = vunpack.c.l.b16 %v1764
        %v1846 = vunpack.c.h.b16 %v1764
        %v1847 = vunpack.c.l.b16 %v1765
        %v1848 = vunpack.c.h.b16 %v1765
        %v1849 = vunpack.c.l.b16 %v1766
        %v1850 = vunpack.c.h.b16 %v1766
        %v1851 = vunpack.c.l.b16 %v1767
        %v1852 = vunpack.c.h.b16 %v1767
        %v1853 = vunpack.c.l.b16 %v1768
        %v1854 = vunpack.c.h.b16 %v1768
        %v1855 = vunpack.c.l.b16 %v1769
        %v1856 = vunpack.c.h.b16 %v1769
        %v1857 = vunpack.c.l.b16 %v1770
        %v1858 = vunpack.c.h.b16 %v1770
        %v1859 = vunpack.c.l.b16 %v1771
        %v1860 = vunpack.c.h.b16 %v1771
        %v1861 = vunpack.c.l.b16 %v1772
        %v1862 = vunpack.c.h.b16 %v1772
        %v1863 = vunpack.c.l.b16 %v1773
        %v1864 = vunpack.c.h.b16 %v1773
        %v1865 = vunpack.c.l.b16 %v1774
        %v1866 = vunpack.c.h.b16 %v1774
        %v1867 = vunpack.c.l.b16 %v1775
        %v1868 = vunpack.c.h.b16 %v1775
        %v1869 = vunpack.c.l.b16 %v1776
        %v1870 = vunpack.c.h.b16 %v1776
        %v1871 = vunpack.c.l.b16 %v1777
        %v1872 = vunpack.c.h.b16 %v1777
        %v1873 = vunpack.c.l.b16 %v1778
        %v1874 = vunpack.c.h.b16 %v1778
        %v1875 = vunpack.c.l.b16 %v1779
        %v1876 = vunpack.c.h.b16 %v1779
        %v1877 = vunpack.c.l.b16 %v1780
        %v1878 = vunpack.c.h.b16 %v1780
        %v1879 = vunpack.c.l.b16 %v1781
        %v1880 = vunpack.c.h.b16 %v1781
        %v1881 = vunpack.c.l.b16 %v1782
        %v1882 = vunpack.c.h.b16 %v1782
        %v1883 = vunpack.c.l.b16 %v1783
        %v1884 = vunpack.c.h.b16 %v1783
        %v1885 = vunpack.c.l.b16 %v1784
        %v1886 = vunpack.c.h.b16 %v1784
        %v1887 = vunpack.c.l.b16 %v1785
        %v1888 = vunpack.c.h.b16 %v1785
        %v1889 = vunpack.c.l.b16 %v1786
        %v1890 = vunpack.c.h.b16 %v1786
        %v1891 = vunpack.c.l.b16 %v1787
        %v1892 = vunpack.c.h.b16 %v1787
        %v1893 = vunpack.c.l.b16 %v1788
        %v1894 = vunpack.c.h.b16 %v1788
        %v1895 = vunpack.c.l.b16 %v1789
        %v1896 = vunpack.c.h.b16 %v1789
        %v1897 = vunpack.c.l.b16 %v1790
        %v1898 = vunpack.c.h.b16 %v1790
        %v1899 = vunpack.c.l.b16 %v1791
        %v1900 = vunpack.c.h.b16 %v1791
        %v1901 = vpack.c.b16 %v1839, %v1837
        %v1902 = vpack.c.b16 %v1840, %v1838
        %v1903 = vpack.c.b16 %v1843, %v1841
        %v1904 = vpack.c.b16 %v1844, %v1842
        %v1905 = vpack.c.b16 %v1847, %v1845
        %v1906 = vpack.c.b16 %v1848, %v1846
        %v1907 = vpack.c.b16 %v1851, %v1849
        %v1908 = vpack.c.b16 %v1852, %v1850
        %v1909 = vpack.c.b16 %v1855, %v1853
        %v1910 = vpack.c.b16 %v1856, %v1854
        %v1911 = vpack.c.b16 %v1859, %v1857
        %v1912 = vpack.c.b16 %v1860, %v1858
        %v1913 = vpack.c.b16 %v1863, %v1861
        %v1914 = vpack.c.b16 %v1864, %v1862
        %v1915 = vpack.c.b16 %v1867, %v1865
        %v1916 = vpack.c.b16 %v1868, %v1866
        %v1917 = vpack.c.b16 %v1871, %v1869
        %v1918 = vpack.c.b16 %v1872, %v1870
        %v1919 = vpack.c.b16 %v1875, %v1873
        %v1920 = vpack.c.b16 %v1876, %v1874
        %v1921 = vpack.c.b16 %v1879, %v1877
        %v1922 = vpack.c.b16 %v1880, %v1878
        %v1923 = vpack.c.b16 %v1883, %v1881
        %v1924 = vpack.c.b16 %v1884, %v1882
        %v1925 = vpack.c.b16 %v1887, %v1885
        %v1926 = vpack.c.b16 %v1888, %v1886
        %v1927 = vpack.c.b16 %v1891, %v1889
        %v1928 = vpack.c.b16 %v1892, %v1890
        %v1929 = vpack.c.b16 %v1895, %v1893
        %v1930 = vpack.c.b16 %v1896, %v1894
        %v1931 = vpack.c.b16 %v1899, %v1897
        %v1932 = vpack.c.b16 %v1900, %v1898
        %1965 = vmatprep.subr.bf16.mxu0 %v1902
        %1966 = vmatpush1.bf16.msra.mxu0 %v1901
        %1967 = vmatprep.subr.bf16.mxu0 %v1904
        %1968 = vmatpush1.bf16.msra.mxu0 %v1903
        %1969 = vmatprep.subr.bf16.mxu0 %v1906
        %1970 = vmatpush1.bf16.msra.mxu0 %v1905
        %1971 = vmatprep.subr.bf16.mxu0 %v1908
        %1972 = vmatpush1.bf16.msra.mxu0 %v1907
        %1973 = vmatprep.subr.bf16.mxu0 %v1910
        %1974 = vmatpush1.bf16.msra.mxu0 %v1909
        %1975 = vmatprep.subr.bf16.mxu0 %v1912
        %1976 = vmatpush1.bf16.msra.mxu0 %v1911
        %1977 = vmatprep.subr.bf16.mxu0 %v1914
        %1978 = vmatpush1.bf16.msra.mxu0 %v1913
        %1979 = vmatprep.subr.bf16.mxu0 %v1916
        %1980 = vmatpush1.bf16.msra.mxu0 %v1915
        %1981 = vmatprep.subr.bf16.mxu0 %v1918
        %1982 = vmatpush1.bf16.msra.mxu0 %v1917
        %1983 = vmatprep.subr.bf16.mxu0 %v1920
        %1984 = vmatpush1.bf16.msra.mxu0 %v1919
        %1985 = vmatprep.subr.bf16.mxu0 %v1922
        %1986 = vmatpush1.bf16.msra.mxu0 %v1921
        %1987 = vmatprep.subr.bf16.mxu0 %v1924
        %1988 = vmatpush1.bf16.msra.mxu0 %v1923
        %1989 = vmatprep.subr.bf16.mxu0 %v1926
        %1990 = vmatpush1.bf16.msra.mxu0 %v1925
        %1991 = vmatprep.subr.bf16.mxu0 %v1928
        %1992 = vmatpush1.bf16.msra.mxu0 %v1927
        %1993 = vmatprep.subr.bf16.mxu0 %v1930
        %1994 = vmatpush1.bf16.msra.mxu0 %v1929
        %1995 = vmatprep.subr.bf16.mxu0 %v1932
        %1996 = vmatpush1.bf16.msra.mxu0 %v1931
        %1997 = vmatprep.mubr.bf16.mxu0 %v1728
        %1998 = vmatmul.mubr.bf16.gmra.mrb[0].mxu0 %v1727
        %v1999 = vpop.f32.mrb[0].mxu0
        %v2000 = vadd.f32 %v1798, %v1999
        %v2001 = vpop.f32.mrb[0].mxu0
        %v2002 = vadd.f32 %v1802, %v2001
        %v2003 = vpop.f32.mrb[0].mxu0
        %v2004 = vadd.f32 %v1798, %v2003
        %v2005 = vpop.f32.mrb[0].mxu0
        %v2006 = vadd.f32 %v1802, %v2005
        %2007 = vmatprep.mubr.bf16.mxu0 %v1730
        %2008 = vmatmul.mubr.bf16.gmra.mrb[0].mxu0 %v1729
        %v2009 = vpop.f32.mrb[0].mxu0
        %v2010 = vadd.f32 %v1798, %v2009
        %v2011 = vpop.f32.mrb[0].mxu0
        %v2012 = vadd.f32 %v1802, %v2011
        %v2013 = vpop.f32.mrb[0].mxu0
        %v2014 = vadd.f32 %v1798, %v2013
        %v2015 = vpop.f32.mrb[0].mxu0
        %v2016 = vadd.f32 %v1802, %v2015
        %2017 = vmatprep.mubr.bf16.mxu0 %v1732
        %2018 = vmatmul.mubr.bf16.gmra.mrb[0].mxu0 %v1731
        %v2019 = vpop.f32.mrb[0].mxu0
        %v2020 = vadd.f32 %v1798, %v2019
        %v2021 = vpop.f32.mrb[0].mxu0
        %v2022 = vadd.f32 %v1802, %v2021
        %v2023 = vpop.f32.mrb[0].mxu0
        %v2024 = vadd.f32 %v1798, %v2023
        %v2025 = vpop.f32.mrb[0].mxu0
        %v2026 = vadd.f32 %v1802, %v2025
        %2027 = vmatprep.mubr.bf16.mxu0 %v1734
        %2028 = vmatmul.mubr.bf16.gmra.mrb[0].mxu0 %v1733
        %v2029 = vpop.f32.mrb[0].mxu0
        %v2030 = vadd.f32 %v1798, %v2029
        %v2031 = vpop.f32.mrb[0].mxu0
        %v2032 = vadd.f32 %v1802, %v2031
        %v2033 = vpop.f32.mrb[0].mxu0
        %v2034 = vadd.f32 %v1798, %v2033
        %v2035 = vpop.f32.mrb[0].mxu0
        %v2036 = vadd.f32 %v1802, %v2035
        %2037 = vmatprep.mubr.bf16.mxu0 %v1736
        %2038 = vmatmul.mubr.bf16.gmra.mrb[0].mxu0 %v1735
        %v2039 = vpop.f32.mrb[0].mxu0
        %v2040 = vadd.f32 %v1798, %v2039
        %v2041 = vpop.f32.mrb[0].mxu0
        %v2042 = vadd.f32 %v1802, %v2041
        %v2043 = vpop.f32.mrb[0].mxu0
        %v2044 = vadd.f32 %v1798, %v2043
        %v2045 = vpop.f32.mrb[0].mxu0
        %v2046 = vadd.f32 %v1802, %v2045
        %2047 = vmatprep.mubr.bf16.mxu0 %v1738
        %2048 = vmatmul.mubr.bf16.gmra.mrb[0].mxu0 %v1737
        %v2049 = vpop.f32.mrb[0].mxu0
        %v2050 = vadd.f32 %v1798, %v2049
        %v2051 = vpop.f32.mrb[0].mxu0
        %v2052 = vadd.f32 %v1802, %v2051
        %v2053 = vpop.f32.mrb[0].mxu0
        %v2054 = vadd.f32 %v1798, %v2053
        %v2055 = vpop.f32.mrb[0].mxu0
        %v2056 = vadd.f32 %v1802, %v2055
        %2057 = vmatprep.mubr.bf16.mxu0 %v1740
        %2058 = vmatmul.mubr.bf16.gmra.mrb[0].mxu0 %v1739
        %v2059 = vpop.f32.mrb[0].mxu0
        %v2060 = vadd.f32 %v1798, %v2059
        %v2061 = vpop.f32.mrb[0].mxu0
        %v2062 = vadd.f32 %v1802, %v2061
        %v2063 = vpop.f32.mrb[0].mxu0
        %v2064 = vadd.f32 %v1798, %v2063
        %v2065 = vpop.f32.mrb[0].mxu0
        %v2066 = vadd.f32 %v1802, %v2065
        %2067 = vmatprep.mubr.bf16.mxu0 %v1742
        %2068 = vmatmul.mubr.bf16.gmra.mrb[0].mxu0 %v1741
        %v2069 = vpop.f32.mrb[0].mxu0
        %v2070 = vadd.f32 %v1798, %v2069
        %v2071 = vpop.f32.mrb[0].mxu0
        %v2072 = vadd.f32 %v1802, %v2071
        %v2073 = vpop.f32.mrb[0].mxu0
        %v2074 = vadd.f32 %v1798, %v2073
        %v2075 = vpop.f32.mrb[0].mxu0
        %v2076 = vadd.f32 %v1802, %v2075
        %2077 = vmatprep.mubr.bf16.mxu0 %v1744
        %2078 = vmatmul.mubr.bf16.gmra.mrb[0].mxu0 %v1743
        %v2079 = vpop.f32.mrb[0].mxu0
        %v2080 = vadd.f32 %v1798, %v2079
        %v2081 = vpop.f32.mrb[0].mxu0
        %v2082 = vadd.f32 %v1802, %v2081
        %v2083 = vpop.f32.mrb[0].mxu0
        %v2084 = vadd.f32 %v1798, %v2083
        %v2085 = vpop.f32.mrb[0].mxu0
        %v2086 = vadd.f32 %v1802, %v2085
        %2087 = vmatprep.mubr.bf16.mxu0 %v1746
        %2088 = vmatmul.mubr.bf16.gmra.mrb[0].mxu0 %v1745
        %v2089 = vpop.f32.mrb[0].mxu0
        %v2090 = vadd.f32 %v1798, %v2089
        %v2091 = vpop.f32.mrb[0].mxu0
        %v2092 = vadd.f32 %v1802, %v2091
        %v2093 = vpop.f32.mrb[0].mxu0
        %v2094 = vadd.f32 %v1798, %v2093
        %v2095 = vpop.f32.mrb[0].mxu0
        %v2096 = vadd.f32 %v1802, %v2095
        %2097 = vmatprep.mubr.bf16.mxu0 %v1748
        %2098 = vmatmul.mubr.bf16.gmra.mrb[0].mxu0 %v1747
        %v2099 = vpop.f32.mrb[0].mxu0
        %v2100 = vadd.f32 %v1798, %v2099
        %v2101 = vpop.f32.mrb[0].mxu0
        %v2102 = vadd.f32 %v1802, %v2101
        %v2103 = vpop.f32.mrb[0].mxu0
        %v2104 = vadd.f32 %v1798, %v2103
        %v2105 = vpop.f32.mrb[0].mxu0
        %v2106 = vadd.f32 %v1802, %v2105
        %2107 = vmatprep.mubr.bf16.mxu0 %v1750
        %2108 = vmatmul.mubr.bf16.gmra.mrb[0].mxu0 %v1749
        %v2109 = vpop.f32.mrb[0].mxu0
        %v2110 = vadd.f32 %v1798, %v2109
        %v2111 = vpop.f32.mrb[0].mxu0
        %v2112 = vadd.f32 %v1802, %v2111
        %v2113 = vpop.f32.mrb[0].mxu0
        %v2114 = vadd.f32 %v1798, %v2113
        %v2115 = vpop.f32.mrb[0].mxu0
        %v2116 = vadd.f32 %v1802, %v2115
        %2117 = vmatprep.mubr.bf16.mxu0 %v1752
        %2118 = vmatmul.mubr.bf16.gmra.mrb[0].mxu0 %v1751
        %v2119 = vpop.f32.mrb[0].mxu0
        %v2120 = vadd.f32 %v1798, %v2119
        %v2121 = vpop.f32.mrb[0].mxu0
        %v2122 = vadd.f32 %v1802, %v2121
        %v2123 = vpop.f32.mrb[0].mxu0
        %v2124 = vadd.f32 %v1798, %v2123
        %v2125 = vpop.f32.mrb[0].mxu0
        %v2126 = vadd.f32 %v1802, %v2125
        %2127 = vmatprep.mubr.bf16.mxu0 %v1754
        %2128 = vmatmul.mubr.bf16.gmra.mrb[0].mxu0 %v1753
        %v2129 = vpop.f32.mrb[0].mxu0
        %v2130 = vadd.f32 %v1798, %v2129
        %v2131 = vpop.f32.mrb[0].mxu0
        %v2132 = vadd.f32 %v1802, %v2131
        %v2133 = vpop.f32.mrb[0].mxu0
        %v2134 = vadd.f32 %v1798, %v2133
        %v2135 = vpop.f32.mrb[0].mxu0
        %v2136 = vadd.f32 %v1802, %v2135
        %2137 = vmatprep.mubr.bf16.mxu0 %v1756
        %2138 = vmatmul.mubr.bf16.gmra.mrb[0].mxu0 %v1755
        %v2139 = vpop.f32.mrb[0].mxu0
        %v2140 = vadd.f32 %v1798, %v2139
        %v2141 = vpop.f32.mrb[0].mxu0
        %v2142 = vadd.f32 %v1802, %v2141
        %v2143 = vpop.f32.mrb[0].mxu0
        %v2144 = vadd.f32 %v1798, %v2143
        %v2145 = vpop.f32.mrb[0].mxu0
        %v2146 = vadd.f32 %v1802, %v2145
        %2147 = vmatprep.mubr.bf16.mxu0 %v1758
        %2148 = vmatmul.mubr.bf16.gmra.mrb[0].mxu0 %v1757
        %v2149 = vpop.f32.mrb[0].mxu0
        %v2150 = vadd.f32 %v1798, %v2149
        %v2151 = vpop.f32.mrb[0].mxu0
        %v2152 = vadd.f32 %v1802, %v2151
        %v2153 = vpop.f32.mrb[0].mxu0
        %v2154 = vadd.f32 %v1798, %v2153
        %v2155 = vpop.f32.mrb[0].mxu0
        %v2156 = vadd.f32 %v1802, %v2155
        %2157 = vdwg.mxu0
        %v2158 = vmax.f32 %v2000, 0.0
        %v2159 = vmax.f32 %v2002, 0.0
        %v2160 = vmax.f32 %v2004, 0.0
        %v2161 = vmax.f32 %v2006, 0.0
        %v2162 = vmax.f32 %v2010, 0.0
        %v2163 = vmax.f32 %v2012, 0.0
        %v2164 = vmax.f32 %v2014, 0.0
        %v2165 = vmax.f32 %v2016, 0.0
        %v2166 = vmax.f32 %v2020, 0.0
        %v2167 = vmax.f32 %v2022, 0.0
        %v2168 = vmax.f32 %v2024, 0.0
        %v2169 = vmax.f32 %v2026, 0.0
        %v2170 = vmax.f32 %v2030, 0.0
        %v2171 = vmax.f32 %v2032, 0.0
        %v2172 = vmax.f32 %v2034, 0.0
        %v2173 = vmax.f32 %v2036, 0.0
        %v2174 = vmax.f32 %v2040, 0.0
        %v2175 = vmax.f32 %v2042, 0.0
        %v2176 = vmax.f32 %v2044, 0.0
        %v2177 = vmax.f32 %v2046, 0.0
        %v2178 = vmax.f32 %v2050, 0.0
        %v2179 = vmax.f32 %v2052, 0.0
        %v2180 = vmax.f32 %v2054, 0.0
        %v2181 = vmax.f32 %v2056, 0.0
        %v2182 = vmax.f32 %v2060, 0.0
        %v2183 = vmax.f32 %v2062, 0.0
        %v2184 = vmax.f32 %v2064, 0.0
        %v2185 = vmax.f32 %v2066, 0.0
        %v2186 = vmax.f32 %v2070, 0.0
        %v2187 = vmax.f32 %v2072, 0.0
        %v2188 = vmax.f32 %v2074, 0.0
        %v2189 = vmax.f32 %v2076, 0.0
        %v2190 = vmax.f32 %v2080, 0.0
        %v2191 = vmax.f32 %v2082, 0.0
        %v2192 = vmax.f32 %v2084, 0.0
        %v2193 = vmax.f32 %v2086, 0.0
        %v2194 = vmax.f32 %v2090, 0.0
        %v2195 = vmax.f32 %v2092, 0.0
        %v2196 = vmax.f32 %v2094, 0.0
        %v2197 = vmax.f32 %v2096, 0.0
        %v2198 = vmax.f32 %v2100, 0.0
        %v2199 = vmax.f32 %v2102, 0.0
        %v2200 = vmax.f32 %v2104, 0.0
        %v2201 = vmax.f32 %v2106, 0.0
        %v2202 = vmax.f32 %v2110, 0.0
        %v2203 = vmax.f32 %v2112, 0.0
        %v2204 = vmax.f32 %v2114, 0.0
        %v2205 = vmax.f32 %v2116, 0.0
        %v2206 = vmax.f32 %v2120, 0.0
        %v2207 = vmax.f32 %v2122, 0.0
        %v2208 = vmax.f32 %v2124, 0.0
        %v2209 = vmax.f32 %v2126, 0.0
        %v2210 = vmax.f32 %v2130, 0.0
        %v2211 = vmax.f32 %v2132, 0.0
        %v2212 = vmax.f32 %v2134, 0.0
        %v2213 = vmax.f32 %v2136, 0.0
        %v2214 = vmax.f32 %v2140, 0.0
        %v2215 = vmax.f32 %v2142, 0.0
        %v2216 = vmax.f32 %v2144, 0.0
        %v2217 = vmax.f32 %v2146, 0.0
        %v2218 = vmax.f32 %v2150, 0.0
        %v2219 = vmax.f32 %v2152, 0.0
        %v2220 = vmax.f32 %v2154, 0.0
        %v2221 = vmax.f32 %v2156, 0.0
        %v2222 = vpack.c.bf16 %v2160, %v2158
        %v2223 = vpack.c.bf16 %v2161, %v2159
        %v2224 = vpack.c.bf16 %v2164, %v2162
        %v2225 = vpack.c.bf16 %v2165, %v2163
        %v2226 = vpack.c.bf16 %v2168, %v2166
        %v2227 = vpack.c.bf16 %v2169, %v2167
        %v2228 = vpack.c.bf16 %v2172, %v2170
        %v2229 = vpack.c.bf16 %v2173, %v2171
        %v2230 = vpack.c.bf16 %v2176, %v2174
        %v2231 = vpack.c.bf16 %v2177, %v2175
        %v2232 = vpack.c.bf16 %v2180, %v2178
        %v2233 = vpack.c.bf16 %v2181, %v2179
        %v2234 = vpack.c.bf16 %v2184, %v2182
        %v2235 = vpack.c.bf16 %v2185, %v2183
        %v2236 = vpack.c.bf16 %v2188, %v2186
        %v2237 = vpack.c.bf16 %v2189, %v2187
        %v2238 = vpack.c.bf16 %v2192, %v2190
        %v2239 = vpack.c.bf16 %v2193, %v2191
        %v2240 = vpack.c.bf16 %v2196, %v2194
        %v2241 = vpack.c.bf16 %v2197, %v2195
        %v2242 = vpack.c.bf16 %v2200, %v2198
        %v2243 = vpack.c.bf16 %v2201, %v2199
        %v2244 = vpack.c.bf16 %v2204, %v2202
        %v2245 = vpack.c.bf16 %v2205, %v2203
        %v2246 = vpack.c.bf16 %v2208, %v2206
        %v2247 = vpack.c.bf16 %v2209, %v2207
        %v2248 = vpack.c.bf16 %v2212, %v2210
        %v2249 = vpack.c.bf16 %v2213, %v2211
        %v2250 = vpack.c.bf16 %v2216, %v2214
        %v2251 = vpack.c.bf16 %v2217, %v2215
        %v2252 = vpack.c.bf16 %v2220, %v2218
        %v2253 = vpack.c.bf16 %v2221, %v2219
        %s2254 = scalar_lea.vmem [#allocation2], 768
        %v2255 = vld [vmem:[%s2254] sm:$0xff]
        %v2256 = vld [vmem:[%s2254 + $0x8] sm:$0xff]
        %v2257 = vld [vmem:[%s2254 + $0x10] sm:$0xff]
        %v2258 = vld [vmem:[%s2254 + $0x18] sm:$0xff]
        %v2259 = vld [vmem:[%s2254 + $0x20] sm:$0xff]
        %v2260 = vld [vmem:[%s2254 + $0x28] sm:$0xff]
        %v2261 = vld [vmem:[%s2254 + $0x30] sm:$0xff]
        %v2262 = vld [vmem:[%s2254 + $0x38] sm:$0xff]
        %v2263 = vld [vmem:[%s2254 + $0x40] sm:$0xff]
        %v2264 = vld [vmem:[%s2254 + $0x48] sm:$0xff]
        %v2265 = vld [vmem:[%s2254 + $0x50] sm:$0xff]
        %v2266 = vld [vmem:[%s2254 + $0x58] sm:$0xff]
        %v2267 = vld [vmem:[%s2254 + $0x60] sm:$0xff]
        %v2268 = vld [vmem:[%s2254 + $0x68] sm:$0xff]
        %v2269 = vld [vmem:[%s2254 + $0x70] sm:$0xff]
        %v2270 = vld [vmem:[%s2254 + $0x78] sm:$0xff]
        %v2271 = vld [vmem:[%s2254 + $0x80] sm:$0xff]
        %v2272 = vld [vmem:[%s2254 + $0x88] sm:$0xff]
        %v2273 = vld [vmem:[%s2254 + $0x90] sm:$0xff]
        %v2274 = vld [vmem:[%s2254 + $0x98] sm:$0xff]
        %v2275 = vld [vmem:[%s2254 + $0xa0] sm:$0xff]
        %v2276 = vld [vmem:[%s2254 + $0xa8] sm:$0xff]
        %v2277 = vld [vmem:[%s2254 + $0xb0] sm:$0xff]
        %v2278 = vld [vmem:[%s2254 + $0xb8] sm:$0xff]
        %v2279 = vld [vmem:[%s2254 + $0xc0] sm:$0xff]
        %v2280 = vld [vmem:[%s2254 + $0xc8] sm:$0xff]
        %v2281 = vld [vmem:[%s2254 + $0xd0] sm:$0xff]
        %v2282 = vld [vmem:[%s2254 + $0xd8] sm:$0xff]
        %v2283 = vld [vmem:[%s2254 + $0xe0] sm:$0xff]
        %v2284 = vld [vmem:[%s2254 + $0xe8] sm:$0xff]
        %v2285 = vld [vmem:[%s2254 + $0xf0] sm:$0xff]
        %v2286 = vld [vmem:[%s2254 + $0xf8] sm:$0xff]
        %s2287 = scalar_lea.vmem %s4, 6
        %v2288 = vld [vmem:[%s2287] sm:$0x3]
        %v2290 = vlaneseq
        %v2291 = vshrl.u32 %v2290, 7
        %v2292 = vsub.s32 0, %v2291
        %v2293 = vrot.slane %v2288, %v2292
        %v2294 = vlaneseq
        %v2295 = vshrl.u32 %v2294, 7
        %v2296 = vsub.s32 1, %v2295
        %v2297 = vrot.slane %v2288, %v2296
        %v2332 = vunpack.c.l.b16 %v2255
        %v2333 = vunpack.c.h.b16 %v2255
        %v2334 = vunpack.c.l.b16 %v2256
        %v2335 = vunpack.c.h.b16 %v2256
        %v2336 = vunpack.c.l.b16 %v2257
        %v2337 = vunpack.c.h.b16 %v2257
        %v2338 = vunpack.c.l.b16 %v2258
        %v2339 = vunpack.c.h.b16 %v2258
        %v2340 = vunpack.c.l.b16 %v2259
        %v2341 = vunpack.c.h.b16 %v2259
        %v2342 = vunpack.c.l.b16 %v2260
        %v2343 = vunpack.c.h.b16 %v2260
        %v2344 = vunpack.c.l.b16 %v2261
        %v2345 = vunpack.c.h.b16 %v2261
        %v2346 = vunpack.c.l.b16 %v2262
        %v2347 = vunpack.c.h.b16 %v2262
        %v2348 = vunpack.c.l.b16 %v2263
        %v2349 = vunpack.c.h.b16 %v2263
        %v2350 = vunpack.c.l.b16 %v2264
        %v2351 = vunpack.c.h.b16 %v2264
        %v2352 = vunpack.c.l.b16 %v2265
        %v2353 = vunpack.c.h.b16 %v2265
        %v2354 = vunpack.c.l.b16 %v2266
        %v2355 = vunpack.c.h.b16 %v2266
        %v2356 = vunpack.c.l.b16 %v2267
        %v2357 = vunpack.c.h.b16 %v2267
        %v2358 = vunpack.c.l.b16 %v2268
        %v2359 = vunpack.c.h.b16 %v2268
        %v2360 = vunpack.c.l.b16 %v2269
        %v2361 = vunpack.c.h.b16 %v2269
        %v2362 = vunpack.c.l.b16 %v2270
        %v2363 = vunpack.c.h.b16 %v2270
        %v2364 = vunpack.c.l.b16 %v2271
        %v2365 = vunpack.c.h.b16 %v2271
        %v2366 = vunpack.c.l.b16 %v2272
        %v2367 = vunpack.c.h.b16 %v2272
        %v2368 = vunpack.c.l.b16 %v2273
        %v2369 = vunpack.c.h.b16 %v2273
        %v2370 = vunpack.c.l.b16 %v2274
        %v2371 = vunpack.c.h.b16 %v2274
        %v2372 = vunpack.c.l.b16 %v2275
        %v2373 = vunpack.c.h.b16 %v2275
        %v2374 = vunpack.c.l.b16 %v2276
        %v2375 = vunpack.c.h.b16 %v2276
        %v2376 = vunpack.c.l.b16 %v2277
        %v2377 = vunpack.c.h.b16 %v2277
        %v2378 = vunpack.c.l.b16 %v2278
        %v2379 = vunpack.c.h.b16 %v2278
        %v2380 = vunpack.c.l.b16 %v2279
        %v2381 = vunpack.c.h.b16 %v2279
        %v2382 = vunpack.c.l.b16 %v2280
        %v2383 = vunpack.c.h.b16 %v2280
        %v2384 = vunpack.c.l.b16 %v2281
        %v2385 = vunpack.c.h.b16 %v2281
        %v2386 = vunpack.c.l.b16 %v2282
        %v2387 = vunpack.c.h.b16 %v2282
        %v2388 = vunpack.c.l.b16 %v2283
        %v2389 = vunpack.c.h.b16 %v2283
        %v2390 = vunpack.c.l.b16 %v2284
        %v2391 = vunpack.c.h.b16 %v2284
        %v2392 = vunpack.c.l.b16 %v2285
        %v2393 = vunpack.c.h.b16 %v2285
        %v2394 = vunpack.c.l.b16 %v2286
        %v2395 = vunpack.c.h.b16 %v2286
        %v2396 = vpack.c.b16 %v2334, %v2332
        %v2397 = vpack.c.b16 %v2335, %v2333
        %v2398 = vpack.c.b16 %v2338, %v2336
        %v2399 = vpack.c.b16 %v2339, %v2337
        %v2400 = vpack.c.b16 %v2342, %v2340
        %v2401 = vpack.c.b16 %v2343, %v2341
        %v2402 = vpack.c.b16 %v2346, %v2344
        %v2403 = vpack.c.b16 %v2347, %v2345
        %v2404 = vpack.c.b16 %v2350, %v2348
        %v2405 = vpack.c.b16 %v2351, %v2349
        %v2406 = vpack.c.b16 %v2354, %v2352
        %v2407 = vpack.c.b16 %v2355, %v2353
        %v2408 = vpack.c.b16 %v2358, %v2356
        %v2409 = vpack.c.b16 %v2359, %v2357
        %v2410 = vpack.c.b16 %v2362, %v2360
        %v2411 = vpack.c.b16 %v2363, %v2361
        %v2412 = vpack.c.b16 %v2366, %v2364
        %v2413 = vpack.c.b16 %v2367, %v2365
        %v2414 = vpack.c.b16 %v2370, %v2368
        %v2415 = vpack.c.b16 %v2371, %v2369
        %v2416 = vpack.c.b16 %v2374, %v2372
        %v2417 = vpack.c.b16 %v2375, %v2373
        %v2418 = vpack.c.b16 %v2378, %v2376
        %v2419 = vpack.c.b16 %v2379, %v2377
        %v2420 = vpack.c.b16 %v2382, %v2380
        %v2421 = vpack.c.b16 %v2383, %v2381
        %v2422 = vpack.c.b16 %v2386, %v2384
        %v2423 = vpack.c.b16 %v2387, %v2385
        %v2424 = vpack.c.b16 %v2390, %v2388
        %v2425 = vpack.c.b16 %v2391, %v2389
        %v2426 = vpack.c.b16 %v2394, %v2392
        %v2427 = vpack.c.b16 %v2395, %v2393
        %2460 = vmatprep.subr.bf16.mxu0 %v2397
        %2461 = vmatpush1.bf16.msra.mxu0 %v2396
        %2462 = vmatprep.subr.bf16.mxu0 %v2399
        %2463 = vmatpush1.bf16.msra.mxu0 %v2398
        %2464 = vmatprep.subr.bf16.mxu0 %v2401
        %2465 = vmatpush1.bf16.msra.mxu0 %v2400
        %2466 = vmatprep.subr.bf16.mxu0 %v2403
        %2467 = vmatpush1.bf16.msra.mxu0 %v2402
        %2468 = vmatprep.subr.bf16.mxu0 %v2405
        %2469 = vmatpush1.bf16.msra.mxu0 %v2404
        %2470 = vmatprep.subr.bf16.mxu0 %v2407
        %2471 = vmatpush1.bf16.msra.mxu0 %v2406
        %2472 = vmatprep.subr.bf16.mxu0 %v2409
        %2473 = vmatpush1.bf16.msra.mxu0 %v2408
        %2474 = vmatprep.subr.bf16.mxu0 %v2411
        %2475 = vmatpush1.bf16.msra.mxu0 %v2410
        %2476 = vmatprep.subr.bf16.mxu0 %v2413
        %2477 = vmatpush1.bf16.msra.mxu0 %v2412
        %2478 = vmatprep.subr.bf16.mxu0 %v2415
        %2479 = vmatpush1.bf16.msra.mxu0 %v2414
        %2480 = vmatprep.subr.bf16.mxu0 %v2417
        %2481 = vmatpush1.bf16.msra.mxu0 %v2416
        %2482 = vmatprep.subr.bf16.mxu0 %v2419
        %2483 = vmatpush1.bf16.msra.mxu0 %v2418
        %2484 = vmatprep.subr.bf16.mxu0 %v2421
        %2485 = vmatpush1.bf16.msra.mxu0 %v2420
        %2486 = vmatprep.subr.bf16.mxu0 %v2423
        %2487 = vmatpush1.bf16.msra.mxu0 %v2422
        %2488 = vmatprep.subr.bf16.mxu0 %v2425
        %2489 = vmatpush1.bf16.msra.mxu0 %v2424
        %2490 = vmatprep.subr.bf16.mxu0 %v2427
        %2491 = vmatpush1.bf16.msra.mxu0 %v2426
        %2492 = vmatprep.mubr.bf16.mxu0 %v2223
        %2493 = vmatmul.mubr.bf16.gmra.mrb[0].mxu0 %v2222
        %v2494 = vpop.f32.mrb[0].mxu0
        %v2495 = vadd.f32 %v2293, %v2494
        %v2496 = vpop.f32.mrb[0].mxu0
        %v2497 = vadd.f32 %v2297, %v2496
        %v2498 = vpop.f32.mrb[0].mxu0
        %v2499 = vadd.f32 %v2293, %v2498
        %v2500 = vpop.f32.mrb[0].mxu0
        %v2501 = vadd.f32 %v2297, %v2500
        %2502 = vmatprep.mubr.bf16.mxu0 %v2225
        %2503 = vmatmul.mubr.bf16.gmra.mrb[0].mxu0 %v2224
        %v2504 = vpop.f32.mrb[0].mxu0
        %v2505 = vadd.f32 %v2293, %v2504
        %v2506 = vpop.f32.mrb[0].mxu0
        %v2507 = vadd.f32 %v2297, %v2506
        %v2508 = vpop.f32.mrb[0].mxu0
        %v2509 = vadd.f32 %v2293, %v2508
        %v2510 = vpop.f32.mrb[0].mxu0
        %v2511 = vadd.f32 %v2297, %v2510
        %2512 = vmatprep.mubr.bf16.mxu0 %v2227
        %2513 = vmatmul.mubr.bf16.gmra.mrb[0].mxu0 %v2226
        %v2514 = vpop.f32.mrb[0].mxu0
        %v2515 = vadd.f32 %v2293, %v2514
        %v2516 = vpop.f32.mrb[0].mxu0
        %v2517 = vadd.f32 %v2297, %v2516
        %v2518 = vpop.f32.mrb[0].mxu0
        %v2519 = vadd.f32 %v2293, %v2518
        %v2520 = vpop.f32.mrb[0].mxu0
        %v2521 = vadd.f32 %v2297, %v2520
        %2522 = vmatprep.mubr.bf16.mxu0 %v2229
        %2523 = vmatmul.mubr.bf16.gmra.mrb[0].mxu0 %v2228
        %v2524 = vpop.f32.mrb[0].mxu0
        %v2525 = vadd.f32 %v2293, %v2524
        %v2526 = vpop.f32.mrb[0].mxu0
        %v2527 = vadd.f32 %v2297, %v2526
        %v2528 = vpop.f32.mrb[0].mxu0
        %v2529 = vadd.f32 %v2293, %v2528
        %v2530 = vpop.f32.mrb[0].mxu0
        %v2531 = vadd.f32 %v2297, %v2530
        %2532 = vmatprep.mubr.bf16.mxu0 %v2231
        %2533 = vmatmul.mubr.bf16.gmra.mrb[0].mxu0 %v2230
        %v2534 = vpop.f32.mrb[0].mxu0
        %v2535 = vadd.f32 %v2293, %v2534
        %v2536 = vpop.f32.mrb[0].mxu0
        %v2537 = vadd.f32 %v2297, %v2536
        %v2538 = vpop.f32.mrb[0].mxu0
        %v2539 = vadd.f32 %v2293, %v2538
        %v2540 = vpop.f32.mrb[0].mxu0
        %v2541 = vadd.f32 %v2297, %v2540
        %2542 = vmatprep.mubr.bf16.mxu0 %v2233
        %2543 = vmatmul.mubr.bf16.gmra.mrb[0].mxu0 %v2232
        %v2544 = vpop.f32.mrb[0].mxu0
        %v2545 = vadd.f32 %v2293, %v2544
        %v2546 = vpop.f32.mrb[0].mxu0
        %v2547 = vadd.f32 %v2297, %v2546
        %v2548 = vpop.f32.mrb[0].mxu0
        %v2549 = vadd.f32 %v2293, %v2548
        %v2550 = vpop.f32.mrb[0].mxu0
        %v2551 = vadd.f32 %v2297, %v2550
        %2552 = vmatprep.mubr.bf16.mxu0 %v2235
        %2553 = vmatmul.mubr.bf16.gmra.mrb[0].mxu0 %v2234
        %v2554 = vpop.f32.mrb[0].mxu0
        %v2555 = vadd.f32 %v2293, %v2554
        %v2556 = vpop.f32.mrb[0].mxu0
        %v2557 = vadd.f32 %v2297, %v2556
        %v2558 = vpop.f32.mrb[0].mxu0
        %v2559 = vadd.f32 %v2293, %v2558
        %v2560 = vpop.f32.mrb[0].mxu0
        %v2561 = vadd.f32 %v2297, %v2560
        %2562 = vmatprep.mubr.bf16.mxu0 %v2237
        %2563 = vmatmul.mubr.bf16.gmra.mrb[0].mxu0 %v2236
        %v2564 = vpop.f32.mrb[0].mxu0
        %v2565 = vadd.f32 %v2293, %v2564
        %v2566 = vpop.f32.mrb[0].mxu0
        %v2567 = vadd.f32 %v2297, %v2566
        %v2568 = vpop.f32.mrb[0].mxu0
        %v2569 = vadd.f32 %v2293, %v2568
        %v2570 = vpop.f32.mrb[0].mxu0
        %v2571 = vadd.f32 %v2297, %v2570
        %2572 = vmatprep.mubr.bf16.mxu0 %v2239
        %2573 = vmatmul.mubr.bf16.gmra.mrb[0].mxu0 %v2238
        %v2574 = vpop.f32.mrb[0].mxu0
        %v2575 = vadd.f32 %v2293, %v2574
        %v2576 = vpop.f32.mrb[0].mxu0
        %v2577 = vadd.f32 %v2297, %v2576
        %v2578 = vpop.f32.mrb[0].mxu0
        %v2579 = vadd.f32 %v2293, %v2578
        %v2580 = vpop.f32.mrb[0].mxu0
        %v2581 = vadd.f32 %v2297, %v2580
        %2582 = vmatprep.mubr.bf16.mxu0 %v2241
        %2583 = vmatmul.mubr.bf16.gmra.mrb[0].mxu0 %v2240
        %v2584 = vpop.f32.mrb[0].mxu0
        %v2585 = vadd.f32 %v2293, %v2584
        %v2586 = vpop.f32.mrb[0].mxu0
        %v2587 = vadd.f32 %v2297, %v2586
        %v2588 = vpop.f32.mrb[0].mxu0
        %v2589 = vadd.f32 %v2293, %v2588
        %v2590 = vpop.f32.mrb[0].mxu0
        %v2591 = vadd.f32 %v2297, %v2590
        %2592 = vmatprep.mubr.bf16.mxu0 %v2243
        %2593 = vmatmul.mubr.bf16.gmra.mrb[0].mxu0 %v2242
        %v2594 = vpop.f32.mrb[0].mxu0
        %v2595 = vadd.f32 %v2293, %v2594
        %v2596 = vpop.f32.mrb[0].mxu0
        %v2597 = vadd.f32 %v2297, %v2596
        %v2598 = vpop.f32.mrb[0].mxu0
        %v2599 = vadd.f32 %v2293, %v2598
        %v2600 = vpop.f32.mrb[0].mxu0
        %v2601 = vadd.f32 %v2297, %v2600
        %2602 = vmatprep.mubr.bf16.mxu0 %v2245
        %2603 = vmatmul.mubr.bf16.gmra.mrb[0].mxu0 %v2244
        %v2604 = vpop.f32.mrb[0].mxu0
        %v2605 = vadd.f32 %v2293, %v2604
        %v2606 = vpop.f32.mrb[0].mxu0
        %v2607 = vadd.f32 %v2297, %v2606
        %v2608 = vpop.f32.mrb[0].mxu0
        %v2609 = vadd.f32 %v2293, %v2608
        %v2610 = vpop.f32.mrb[0].mxu0
        %v2611 = vadd.f32 %v2297, %v2610
        %2612 = vmatprep.mubr.bf16.mxu0 %v2247
        %2613 = vmatmul.mubr.bf16.gmra.mrb[0].mxu0 %v2246
        %v2614 = vpop.f32.mrb[0].mxu0
        %v2615 = vadd.f32 %v2293, %v2614
        %v2616 = vpop.f32.mrb[0].mxu0
        %v2617 = vadd.f32 %v2297, %v2616
        %v2618 = vpop.f32.mrb[0].mxu0
        %v2619 = vadd.f32 %v2293, %v2618
        %v2620 = vpop.f32.mrb[0].mxu0
        %v2621 = vadd.f32 %v2297, %v2620
        %2622 = vmatprep.mubr.bf16.mxu0 %v2249
        %2623 = vmatmul.mubr.bf16.gmra.mrb[0].mxu0 %v2248
        %v2624 = vpop.f32.mrb[0].mxu0
        %v2625 = vadd.f32 %v2293, %v2624
        %v2626 = vpop.f32.mrb[0].mxu0
        %v2627 = vadd.f32 %v2297, %v2626
        %v2628 = vpop.f32.mrb[0].mxu0
        %v2629 = vadd.f32 %v2293, %v2628
        %v2630 = vpop.f32.mrb[0].mxu0
        %v2631 = vadd.f32 %v2297, %v2630
        %2632 = vmatprep.mubr.bf16.mxu0 %v2251
        %2633 = vmatmul.mubr.bf16.gmra.mrb[0].mxu0 %v2250
        %v2634 = vpop.f32.mrb[0].mxu0
        %v2635 = vadd.f32 %v2293, %v2634
        %v2636 = vpop.f32.mrb[0].mxu0
        %v2637 = vadd.f32 %v2297, %v2636
        %v2638 = vpop.f32.mrb[0].mxu0
        %v2639 = vadd.f32 %v2293, %v2638
        %v2640 = vpop.f32.mrb[0].mxu0
        %v2641 = vadd.f32 %v2297, %v2640
        %2642 = vmatprep.mubr.bf16.mxu0 %v2253
        %2643 = vmatmul.mubr.bf16.gmra.mrb[0].mxu0 %v2252
        %v2644 = vpop.f32.mrb[0].mxu0
        %v2645 = vadd.f32 %v2293, %v2644
        %v2646 = vpop.f32.mrb[0].mxu0
        %v2647 = vadd.f32 %v2297, %v2646
        %v2648 = vpop.f32.mrb[0].mxu0
        %v2649 = vadd.f32 %v2293, %v2648
        %v2650 = vpop.f32.mrb[0].mxu0
        %v2651 = vadd.f32 %v2297, %v2650
        %2652 = vdwg.mxu0
        %v2653 = vmax.f32 %v2495, 0.0
        %v2654 = vmax.f32 %v2497, 0.0
        %v2655 = vmax.f32 %v2499, 0.0
        %v2656 = vmax.f32 %v2501, 0.0
        %v2657 = vmax.f32 %v2505, 0.0
        %v2658 = vmax.f32 %v2507, 0.0
        %v2659 = vmax.f32 %v2509, 0.0
        %v2660 = vmax.f32 %v2511, 0.0
        %v2661 = vmax.f32 %v2515, 0.0
        %v2662 = vmax.f32 %v2517, 0.0
        %v2663 = vmax.f32 %v2519, 0.0
        %v2664 = vmax.f32 %v2521, 0.0
        %v2665 = vmax.f32 %v2525, 0.0
        %v2666 = vmax.f32 %v2527, 0.0
        %v2667 = vmax.f32 %v2529, 0.0
        %v2668 = vmax.f32 %v2531, 0.0
        %v2669 = vmax.f32 %v2535, 0.0
        %v2670 = vmax.f32 %v2537, 0.0
        %v2671 = vmax.f32 %v2539, 0.0
        %v2672 = vmax.f32 %v2541, 0.0
        %v2673 = vmax.f32 %v2545, 0.0
        %v2674 = vmax.f32 %v2547, 0.0
        %v2675 = vmax.f32 %v2549, 0.0
        %v2676 = vmax.f32 %v2551, 0.0
        %v2677 = vmax.f32 %v2555, 0.0
        %v2678 = vmax.f32 %v2557, 0.0
        %v2679 = vmax.f32 %v2559, 0.0
        %v2680 = vmax.f32 %v2561, 0.0
        %v2681 = vmax.f32 %v2565, 0.0
        %v2682 = vmax.f32 %v2567, 0.0
        %v2683 = vmax.f32 %v2569, 0.0
        %v2684 = vmax.f32 %v2571, 0.0
        %v2685 = vmax.f32 %v2575, 0.0
        %v2686 = vmax.f32 %v2577, 0.0
        %v2687 = vmax.f32 %v2579, 0.0
        %v2688 = vmax.f32 %v2581, 0.0
        %v2689 = vmax.f32 %v2585, 0.0
        %v2690 = vmax.f32 %v2587, 0.0
        %v2691 = vmax.f32 %v2589, 0.0
        %v2692 = vmax.f32 %v2591, 0.0
        %v2693 = vmax.f32 %v2595, 0.0
        %v2694 = vmax.f32 %v2597, 0.0
        %v2695 = vmax.f32 %v2599, 0.0
        %v2696 = vmax.f32 %v2601, 0.0
        %v2697 = vmax.f32 %v2605, 0.0
        %v2698 = vmax.f32 %v2607, 0.0
        %v2699 = vmax.f32 %v2609, 0.0
        %v2700 = vmax.f32 %v2611, 0.0
        %v2701 = vmax.f32 %v2615, 0.0
        %v2702 = vmax.f32 %v2617, 0.0
        %v2703 = vmax.f32 %v2619, 0.0
        %v2704 = vmax.f32 %v2621, 0.0
        %v2705 = vmax.f32 %v2625, 0.0
        %v2706 = vmax.f32 %v2627, 0.0
        %v2707 = vmax.f32 %v2629, 0.0
        %v2708 = vmax.f32 %v2631, 0.0
        %v2709 = vmax.f32 %v2635, 0.0
        %v2710 = vmax.f32 %v2637, 0.0
        %v2711 = vmax.f32 %v2639, 0.0
        %v2712 = vmax.f32 %v2641, 0.0
        %v2713 = vmax.f32 %v2645, 0.0
        %v2714 = vmax.f32 %v2647, 0.0
        %v2715 = vmax.f32 %v2649, 0.0
        %v2716 = vmax.f32 %v2651, 0.0
        %v2717 = vpack.c.bf16 %v2655, %v2653
        %v2718 = vpack.c.bf16 %v2656, %v2654
        %v2719 = vpack.c.bf16 %v2659, %v2657
        %v2720 = vpack.c.bf16 %v2660, %v2658
        %v2721 = vpack.c.bf16 %v2663, %v2661
        %v2722 = vpack.c.bf16 %v2664, %v2662
        %v2723 = vpack.c.bf16 %v2667, %v2665
        %v2724 = vpack.c.bf16 %v2668, %v2666
        %v2725 = vpack.c.bf16 %v2671, %v2669
        %v2726 = vpack.c.bf16 %v2672, %v2670
        %v2727 = vpack.c.bf16 %v2675, %v2673
        %v2728 = vpack.c.bf16 %v2676, %v2674
        %v2729 = vpack.c.bf16 %v2679, %v2677
        %v2730 = vpack.c.bf16 %v2680, %v2678
        %v2731 = vpack.c.bf16 %v2683, %v2681
        %v2732 = vpack.c.bf16 %v2684, %v2682
        %v2733 = vpack.c.bf16 %v2687, %v2685
        %v2734 = vpack.c.bf16 %v2688, %v2686
        %v2735 = vpack.c.bf16 %v2691, %v2689
        %v2736 = vpack.c.bf16 %v2692, %v2690
        %v2737 = vpack.c.bf16 %v2695, %v2693
        %v2738 = vpack.c.bf16 %v2696, %v2694
        %v2739 = vpack.c.bf16 %v2699, %v2697
        %v2740 = vpack.c.bf16 %v2700, %v2698
        %v2741 = vpack.c.bf16 %v2703, %v2701
        %v2742 = vpack.c.bf16 %v2704, %v2702
        %v2743 = vpack.c.bf16 %v2707, %v2705
        %v2744 = vpack.c.bf16 %v2708, %v2706
        %v2745 = vpack.c.bf16 %v2711, %v2709
        %v2746 = vpack.c.bf16 %v2712, %v2710
        %v2747 = vpack.c.bf16 %v2715, %v2713
        %v2748 = vpack.c.bf16 %v2716, %v2714
        %s2749 = scalar_lea.vmem [#allocation2], 1024
        %v2750 = vld [vmem:[%s2749] sm:$0xff]
        %v2751 = vld [vmem:[%s2749 + $0x8] sm:$0xff]
        %v2752 = vld [vmem:[%s2749 + $0x10] sm:$0xff]
        %v2753 = vld [vmem:[%s2749 + $0x18] sm:$0xff]
        %v2754 = vld [vmem:[%s2749 + $0x20] sm:$0xff]
        %v2755 = vld [vmem:[%s2749 + $0x28] sm:$0xff]
        %v2756 = vld [vmem:[%s2749 + $0x30] sm:$0xff]
        %v2757 = vld [vmem:[%s2749 + $0x38] sm:$0xff]
        %v2758 = vld [vmem:[%s2749 + $0x40] sm:$0xff]
        %v2759 = vld [vmem:[%s2749 + $0x48] sm:$0xff]
        %v2760 = vld [vmem:[%s2749 + $0x50] sm:$0xff]
        %v2761 = vld [vmem:[%s2749 + $0x58] sm:$0xff]
        %v2762 = vld [vmem:[%s2749 + $0x60] sm:$0xff]
        %v2763 = vld [vmem:[%s2749 + $0x68] sm:$0xff]
        %v2764 = vld [vmem:[%s2749 + $0x70] sm:$0xff]
        %v2765 = vld [vmem:[%s2749 + $0x78] sm:$0xff]
        %v2766 = vld [vmem:[%s2749 + $0x80] sm:$0xff]
        %v2767 = vld [vmem:[%s2749 + $0x88] sm:$0xff]
        %v2768 = vld [vmem:[%s2749 + $0x90] sm:$0xff]
        %v2769 = vld [vmem:[%s2749 + $0x98] sm:$0xff]
        %v2770 = vld [vmem:[%s2749 + $0xa0] sm:$0xff]
        %v2771 = vld [vmem:[%s2749 + $0xa8] sm:$0xff]
        %v2772 = vld [vmem:[%s2749 + $0xb0] sm:$0xff]
        %v2773 = vld [vmem:[%s2749 + $0xb8] sm:$0xff]
        %v2774 = vld [vmem:[%s2749 + $0xc0] sm:$0xff]
        %v2775 = vld [vmem:[%s2749 + $0xc8] sm:$0xff]
        %v2776 = vld [vmem:[%s2749 + $0xd0] sm:$0xff]
        %v2777 = vld [vmem:[%s2749 + $0xd8] sm:$0xff]
        %v2778 = vld [vmem:[%s2749 + $0xe0] sm:$0xff]
        %v2779 = vld [vmem:[%s2749 + $0xe8] sm:$0xff]
        %v2780 = vld [vmem:[%s2749 + $0xf0] sm:$0xff]
        %v2781 = vld [vmem:[%s2749 + $0xf8] sm:$0xff]
        %s2782 = scalar_lea.vmem %s4, 8
        %v2783 = vld [vmem:[%s2782] sm:$0x3]
        %v2785 = vlaneseq
        %v2786 = vshrl.u32 %v2785, 7
        %v2787 = vsub.s32 0, %v2786
        %v2788 = vrot.slane %v2783, %v2787
        %v2789 = vlaneseq
        %v2790 = vshrl.u32 %v2789, 7
        %v2791 = vsub.s32 1, %v2790
        %v2792 = vrot.slane %v2783, %v2791
        %v2827 = vunpack.c.l.b16 %v2750
        %v2828 = vunpack.c.h.b16 %v2750
        %v2829 = vunpack.c.l.b16 %v2751
        %v2830 = vunpack.c.h.b16 %v2751
        %v2831 = vunpack.c.l.b16 %v2752
        %v2832 = vunpack.c.h.b16 %v2752
        %v2833 = vunpack.c.l.b16 %v2753
        %v2834 = vunpack.c.h.b16 %v2753
        %v2835 = vunpack.c.l.b16 %v2754
        %v2836 = vunpack.c.h.b16 %v2754
        %v2837 = vunpack.c.l.b16 %v2755
        %v2838 = vunpack.c.h.b16 %v2755
        %v2839 = vunpack.c.l.b16 %v2756
        %v2840 = vunpack.c.h.b16 %v2756
        %v2841 = vunpack.c.l.b16 %v2757
        %v2842 = vunpack.c.h.b16 %v2757
        %v2843 = vunpack.c.l.b16 %v2758
        %v2844 = vunpack.c.h.b16 %v2758
        %v2845 = vunpack.c.l.b16 %v2759
        %v2846 = vunpack.c.h.b16 %v2759
        %v2847 = vunpack.c.l.b16 %v2760
        %v2848 = vunpack.c.h.b16 %v2760
        %v2849 = vunpack.c.l.b16 %v2761
        %v2850 = vunpack.c.h.b16 %v2761
        %v2851 = vunpack.c.l.b16 %v2762
        %v2852 = vunpack.c.h.b16 %v2762
        %v2853 = vunpack.c.l.b16 %v2763
        %v2854 = vunpack.c.h.b16 %v2763
        %v2855 = vunpack.c.l.b16 %v2764
        %v2856 = vunpack.c.h.b16 %v2764
        %v2857 = vunpack.c.l.b16 %v2765
        %v2858 = vunpack.c.h.b16 %v2765
        %v2859 = vunpack.c.l.b16 %v2766
        %v2860 = vunpack.c.h.b16 %v2766
        %v2861 = vunpack.c.l.b16 %v2767
        %v2862 = vunpack.c.h.b16 %v2767
        %v2863 = vunpack.c.l.b16 %v2768
        %v2864 = vunpack.c.h.b16 %v2768
        %v2865 = vunpack.c.l.b16 %v2769
        %v2866 = vunpack.c.h.b16 %v2769
        %v2867 = vunpack.c.l.b16 %v2770
        %v2868 = vunpack.c.h.b16 %v2770
        %v2869 = vunpack.c.l.b16 %v2771
        %v2870 = vunpack.c.h.b16 %v2771
        %v2871 = vunpack.c.l.b16 %v2772
        %v2872 = vunpack.c.h.b16 %v2772
        %v2873 = vunpack.c.l.b16 %v2773
        %v2874 = vunpack.c.h.b16 %v2773
        %v2875 = vunpack.c.l.b16 %v2774
        %v2876 = vunpack.c.h.b16 %v2774
        %v2877 = vunpack.c.l.b16 %v2775
        %v2878 = vunpack.c.h.b16 %v2775
        %v2879 = vunpack.c.l.b16 %v2776
        %v2880 = vunpack.c.h.b16 %v2776
        %v2881 = vunpack.c.l.b16 %v2777
        %v2882 = vunpack.c.h.b16 %v2777
        %v2883 = vunpack.c.l.b16 %v2778
        %v2884 = vunpack.c.h.b16 %v2778
        %v2885 = vunpack.c.l.b16 %v2779
        %v2886 = vunpack.c.h.b16 %v2779
        %v2887 = vunpack.c.l.b16 %v2780
        %v2888 = vunpack.c.h.b16 %v2780
        %v2889 = vunpack.c.l.b16 %v2781
        %v2890 = vunpack.c.h.b16 %v2781
        %v2891 = vpack.c.b16 %v2829, %v2827
        %v2892 = vpack.c.b16 %v2830, %v2828
        %v2893 = vpack.c.b16 %v2833, %v2831
        %v2894 = vpack.c.b16 %v2834, %v2832
        %v2895 = vpack.c.b16 %v2837, %v2835
        %v2896 = vpack.c.b16 %v2838, %v2836
        %v2897 = vpack.c.b16 %v2841, %v2839
        %v2898 = vpack.c.b16 %v2842, %v2840
        %v2899 = vpack.c.b16 %v2845, %v2843
        %v2900 = vpack.c.b16 %v2846, %v2844
        %v2901 = vpack.c.b16 %v2849, %v2847
        %v2902 = vpack.c.b16 %v2850, %v2848
        %v2903 = vpack.c.b16 %v2853, %v2851
        %v2904 = vpack.c.b16 %v2854, %v2852
        %v2905 = vpack.c.b16 %v2857, %v2855
        %v2906 = vpack.c.b16 %v2858, %v2856
        %v2907 = vpack.c.b16 %v2861, %v2859
        %v2908 = vpack.c.b16 %v2862, %v2860
        %v2909 = vpack.c.b16 %v2865, %v2863
        %v2910 = vpack.c.b16 %v2866, %v2864
        %v2911 = vpack.c.b16 %v2869, %v2867
        %v2912 = vpack.c.b16 %v2870, %v2868
        %v2913 = vpack.c.b16 %v2873, %v2871
        %v2914 = vpack.c.b16 %v2874, %v2872
        %v2915 = vpack.c.b16 %v2877, %v2875
        %v2916 = vpack.c.b16 %v2878, %v2876
        %v2917 = vpack.c.b16 %v2881, %v2879
        %v2918 = vpack.c.b16 %v2882, %v2880
        %v2919 = vpack.c.b16 %v2885, %v2883
        %v2920 = vpack.c.b16 %v2886, %v2884
        %v2921 = vpack.c.b16 %v2889, %v2887
        %v2922 = vpack.c.b16 %v2890, %v2888
        %2955 = vmatprep.subr.bf16.mxu0 %v2892
        %2956 = vmatpush1.bf16.msra.mxu0 %v2891
        %2957 = vmatprep.subr.bf16.mxu0 %v2894
        %2958 = vmatpush1.bf16.msra.mxu0 %v2893
        %2959 = vmatprep.subr.bf16.mxu0 %v2896
        %2960 = vmatpush1.bf16.msra.mxu0 %v2895
        %2961 = vmatprep.subr.bf16.mxu0 %v2898
        %2962 = vmatpush1.bf16.msra.mxu0 %v2897
        %2963 = vmatprep.subr.bf16.mxu0 %v2900
        %2964 = vmatpush1.bf16.msra.mxu0 %v2899
        %2965 = vmatprep.subr.bf16.mxu0 %v2902
        %2966 = vmatpush1.bf16.msra.mxu0 %v2901
        %2967 = vmatprep.subr.bf16.mxu0 %v2904
        %2968 = vmatpush1.bf16.msra.mxu0 %v2903
        %2969 = vmatprep.subr.bf16.mxu0 %v2906
        %2970 = vmatpush1.bf16.msra.mxu0 %v2905
        %2971 = vmatprep.subr.bf16.mxu0 %v2908
        %2972 = vmatpush1.bf16.msra.mxu0 %v2907
        %2973 = vmatprep.subr.bf16.mxu0 %v2910
        %2974 = vmatpush1.bf16.msra.mxu0 %v2909
        %2975 = vmatprep.subr.bf16.mxu0 %v2912
        %2976 = vmatpush1.bf16.msra.mxu0 %v2911
        %2977 = vmatprep.subr.bf16.mxu0 %v2914
        %2978 = vmatpush1.bf16.msra.mxu0 %v2913
        %2979 = vmatprep.subr.bf16.mxu0 %v2916
        %2980 = vmatpush1.bf16.msra.mxu0 %v2915
        %2981 = vmatprep.subr.bf16.mxu0 %v2918
        %2982 = vmatpush1.bf16.msra.mxu0 %v2917
        %2983 = vmatprep.subr.bf16.mxu0 %v2920
        %2984 = vmatpush1.bf16.msra.mxu0 %v2919
        %2985 = vmatprep.subr.bf16.mxu0 %v2922
        %2986 = vmatpush1.bf16.msra.mxu0 %v2921
        %2987 = vmatprep.mubr.bf16.mxu0 %v2718
        %2988 = vmatmul.mubr.bf16.gmra.mrb[0].mxu0 %v2717
        %v2989 = vpop.f32.mrb[0].mxu0
        %v2990 = vadd.f32 %v2788, %v2989
        %v2991 = vpop.f32.mrb[0].mxu0
        %v2992 = vadd.f32 %v2792, %v2991
        %v2993 = vpop.f32.mrb[0].mxu0
        %v2994 = vadd.f32 %v2788, %v2993
        %v2995 = vpop.f32.mrb[0].mxu0
        %v2996 = vadd.f32 %v2792, %v2995
        %2997 = vmatprep.mubr.bf16.mxu0 %v2720
        %2998 = vmatmul.mubr.bf16.gmra.mrb[0].mxu0 %v2719
        %v2999 = vpop.f32.mrb[0].mxu0
        %v3000 = vadd.f32 %v2788, %v2999
        %v3001 = vpop.f32.mrb[0].mxu0
        %v3002 = vadd.f32 %v2792, %v3001
        %v3003 = vpop.f32.mrb[0].mxu0
        %v3004 = vadd.f32 %v2788, %v3003
        %v3005 = vpop.f32.mrb[0].mxu0
        %v3006 = vadd.f32 %v2792, %v3005
        %3007 = vmatprep.mubr.bf16.mxu0 %v2722
        %3008 = vmatmul.mubr.bf16.gmra.mrb[0].mxu0 %v2721
        %v3009 = vpop.f32.mrb[0].mxu0
        %v3010 = vadd.f32 %v2788, %v3009
        %v3011 = vpop.f32.mrb[0].mxu0
        %v3012 = vadd.f32 %v2792, %v3011
        %v3013 = vpop.f32.mrb[0].mxu0
        %v3014 = vadd.f32 %v2788, %v3013
        %v3015 = vpop.f32.mrb[0].mxu0
        %v3016 = vadd.f32 %v2792, %v3015
        %3017 = vmatprep.mubr.bf16.mxu0 %v2724
        %3018 = vmatmul.mubr.bf16.gmra.mrb[0].mxu0 %v2723
        %v3019 = vpop.f32.mrb[0].mxu0
        %v3020 = vadd.f32 %v2788, %v3019
        %v3021 = vpop.f32.mrb[0].mxu0
        %v3022 = vadd.f32 %v2792, %v3021
        %v3023 = vpop.f32.mrb[0].mxu0
        %v3024 = vadd.f32 %v2788, %v3023
        %v3025 = vpop.f32.mrb[0].mxu0
        %v3026 = vadd.f32 %v2792, %v3025
        %3027 = vmatprep.mubr.bf16.mxu0 %v2726
        %3028 = vmatmul.mubr.bf16.gmra.mrb[0].mxu0 %v2725
        %v3029 = vpop.f32.mrb[0].mxu0
        %v3030 = vadd.f32 %v2788, %v3029
        %v3031 = vpop.f32.mrb[0].mxu0
        %v3032 = vadd.f32 %v2792, %v3031
        %v3033 = vpop.f32.mrb[0].mxu0
        %v3034 = vadd.f32 %v2788, %v3033
        %v3035 = vpop.f32.mrb[0].mxu0
        %v3036 = vadd.f32 %v2792, %v3035
        %3037 = vmatprep.mubr.bf16.mxu0 %v2728
        %3038 = vmatmul.mubr.bf16.gmra.mrb[0].mxu0 %v2727
        %v3039 = vpop.f32.mrb[0].mxu0
        %v3040 = vadd.f32 %v2788, %v3039
        %v3041 = vpop.f32.mrb[0].mxu0
        %v3042 = vadd.f32 %v2792, %v3041
        %v3043 = vpop.f32.mrb[0].mxu0
        %v3044 = vadd.f32 %v2788, %v3043
        %v3045 = vpop.f32.mrb[0].mxu0
        %v3046 = vadd.f32 %v2792, %v3045
        %3047 = vmatprep.mubr.bf16.mxu0 %v2730
        %3048 = vmatmul.mubr.bf16.gmra.mrb[0].mxu0 %v2729
        %v3049 = vpop.f32.mrb[0].mxu0
        %v3050 = vadd.f32 %v2788, %v3049
        %v3051 = vpop.f32.mrb[0].mxu0
        %v3052 = vadd.f32 %v2792, %v3051
        %v3053 = vpop.f32.mrb[0].mxu0
        %v3054 = vadd.f32 %v2788, %v3053
        %v3055 = vpop.f32.mrb[0].mxu0
        %v3056 = vadd.f32 %v2792, %v3055
        %3057 = vmatprep.mubr.bf16.mxu0 %v2732
        %3058 = vmatmul.mubr.bf16.gmra.mrb[0].mxu0 %v2731
        %v3059 = vpop.f32.mrb[0].mxu0
        %v3060 = vadd.f32 %v2788, %v3059
        %v3061 = vpop.f32.mrb[0].mxu0
        %v3062 = vadd.f32 %v2792, %v3061
        %v3063 = vpop.f32.mrb[0].mxu0
        %v3064 = vadd.f32 %v2788, %v3063
        %v3065 = vpop.f32.mrb[0].mxu0
        %v3066 = vadd.f32 %v2792, %v3065
        %3067 = vmatprep.mubr.bf16.mxu0 %v2734
        %3068 = vmatmul.mubr.bf16.gmra.mrb[0].mxu0 %v2733
        %v3069 = vpop.f32.mrb[0].mxu0
        %v3070 = vadd.f32 %v2788, %v3069
        %v3071 = vpop.f32.mrb[0].mxu0
        %v3072 = vadd.f32 %v2792, %v3071
        %v3073 = vpop.f32.mrb[0].mxu0
        %v3074 = vadd.f32 %v2788, %v3073
        %v3075 = vpop.f32.mrb[0].mxu0
        %v3076 = vadd.f32 %v2792, %v3075
        %3077 = vmatprep.mubr.bf16.mxu0 %v2736
        %3078 = vmatmul.mubr.bf16.gmra.mrb[0].mxu0 %v2735
        %v3079 = vpop.f32.mrb[0].mxu0
        %v3080 = vadd.f32 %v2788, %v3079
        %v3081 = vpop.f32.mrb[0].mxu0
        %v3082 = vadd.f32 %v2792, %v3081
        %v3083 = vpop.f32.mrb[0].mxu0
        %v3084 = vadd.f32 %v2788, %v3083
        %v3085 = vpop.f32.mrb[0].mxu0
        %v3086 = vadd.f32 %v2792, %v3085
        %3087 = vmatprep.mubr.bf16.mxu0 %v2738
        %3088 = vmatmul.mubr.bf16.gmra.mrb[0].mxu0 %v2737
        %v3089 = vpop.f32.mrb[0].mxu0
        %v3090 = vadd.f32 %v2788, %v3089
        %v3091 = vpop.f32.mrb[0].mxu0
        %v3092 = vadd.f32 %v2792, %v3091
        %v3093 = vpop.f32.mrb[0].mxu0
        %v3094 = vadd.f32 %v2788, %v3093
        %v3095 = vpop.f32.mrb[0].mxu0
        %v3096 = vadd.f32 %v2792, %v3095
        %3097 = vmatprep.mubr.bf16.mxu0 %v2740
        %3098 = vmatmul.mubr.bf16.gmra.mrb[0].mxu0 %v2739
        %v3099 = vpop.f32.mrb[0].mxu0
        %v3100 = vadd.f32 %v2788, %v3099
        %v3101 = vpop.f32.mrb[0].mxu0
        %v3102 = vadd.f32 %v2792, %v3101
        %v3103 = vpop.f32.mrb[0].mxu0
        %v3104 = vadd.f32 %v2788, %v3103
        %v3105 = vpop.f32.mrb[0].mxu0
        %v3106 = vadd.f32 %v2792, %v3105
        %3107 = vmatprep.mubr.bf16.mxu0 %v2742
        %3108 = vmatmul.mubr.bf16.gmra.mrb[0].mxu0 %v2741
        %v3109 = vpop.f32.mrb[0].mxu0
        %v3110 = vadd.f32 %v2788, %v3109
        %v3111 = vpop.f32.mrb[0].mxu0
        %v3112 = vadd.f32 %v2792, %v3111
        %v3113 = vpop.f32.mrb[0].mxu0
        %v3114 = vadd.f32 %v2788, %v3113
        %v3115 = vpop.f32.mrb[0].mxu0
        %v3116 = vadd.f32 %v2792, %v3115
        %3117 = vmatprep.mubr.bf16.mxu0 %v2744
        %3118 = vmatmul.mubr.bf16.gmra.mrb[0].mxu0 %v2743
        %v3119 = vpop.f32.mrb[0].mxu0
        %v3120 = vadd.f32 %v2788, %v3119
        %v3121 = vpop.f32.mrb[0].mxu0
        %v3122 = vadd.f32 %v2792, %v3121
        %v3123 = vpop.f32.mrb[0].mxu0
        %v3124 = vadd.f32 %v2788, %v3123
        %v3125 = vpop.f32.mrb[0].mxu0
        %v3126 = vadd.f32 %v2792, %v3125
        %3127 = vmatprep.mubr.bf16.mxu0 %v2746
        %3128 = vmatmul.mubr.bf16.gmra.mrb[0].mxu0 %v2745
        %v3129 = vpop.f32.mrb[0].mxu0
        %v3130 = vadd.f32 %v2788, %v3129
        %v3131 = vpop.f32.mrb[0].mxu0
        %v3132 = vadd.f32 %v2792, %v3131
        %v3133 = vpop.f32.mrb[0].mxu0
        %v3134 = vadd.f32 %v2788, %v3133
        %v3135 = vpop.f32.mrb[0].mxu0
        %v3136 = vadd.f32 %v2792, %v3135
        %3137 = vmatprep.mubr.bf16.mxu0 %v2748
        %3138 = vmatmul.mubr.bf16.gmra.mrb[0].mxu0 %v2747
        %v3139 = vpop.f32.mrb[0].mxu0
        %v3140 = vadd.f32 %v2788, %v3139
        %v3141 = vpop.f32.mrb[0].mxu0
        %v3142 = vadd.f32 %v2792, %v3141
        %v3143 = vpop.f32.mrb[0].mxu0
        %v3144 = vadd.f32 %v2788, %v3143
        %v3145 = vpop.f32.mrb[0].mxu0
        %v3146 = vadd.f32 %v2792, %v3145
        %3147 = vdwg.mxu0
        %v3148 = vmax.f32 %v2990, 0.0
        %v3149 = vmax.f32 %v2992, 0.0
        %v3150 = vmax.f32 %v2994, 0.0
        %v3151 = vmax.f32 %v2996, 0.0
        %v3152 = vmax.f32 %v3000, 0.0
        %v3153 = vmax.f32 %v3002, 0.0
        %v3154 = vmax.f32 %v3004, 0.0
        %v3155 = vmax.f32 %v3006, 0.0
        %v3156 = vmax.f32 %v3010, 0.0
        %v3157 = vmax.f32 %v3012, 0.0
        %v3158 = vmax.f32 %v3014, 0.0
        %v3159 = vmax.f32 %v3016, 0.0
        %v3160 = vmax.f32 %v3020, 0.0
        %v3161 = vmax.f32 %v3022, 0.0
        %v3162 = vmax.f32 %v3024, 0.0
        %v3163 = vmax.f32 %v3026, 0.0
        %v3164 = vmax.f32 %v3030, 0.0
        %v3165 = vmax.f32 %v3032, 0.0
        %v3166 = vmax.f32 %v3034, 0.0
        %v3167 = vmax.f32 %v3036, 0.0
        %v3168 = vmax.f32 %v3040, 0.0
        %v3169 = vmax.f32 %v3042, 0.0
        %v3170 = vmax.f32 %v3044, 0.0
        %v3171 = vmax.f32 %v3046, 0.0
        %v3172 = vmax.f32 %v3050, 0.0
        %v3173 = vmax.f32 %v3052, 0.0
        %v3174 = vmax.f32 %v3054, 0.0
        %v3175 = vmax.f32 %v3056, 0.0
        %v3176 = vmax.f32 %v3060, 0.0
        %v3177 = vmax.f32 %v3062, 0.0
        %v3178 = vmax.f32 %v3064, 0.0
        %v3179 = vmax.f32 %v3066, 0.0
        %v3180 = vmax.f32 %v3070, 0.0
        %v3181 = vmax.f32 %v3072, 0.0
        %v3182 = vmax.f32 %v3074, 0.0
        %v3183 = vmax.f32 %v3076, 0.0
        %v3184 = vmax.f32 %v3080, 0.0
        %v3185 = vmax.f32 %v3082, 0.0
        %v3186 = vmax.f32 %v3084, 0.0
        %v3187 = vmax.f32 %v3086, 0.0
        %v3188 = vmax.f32 %v3090, 0.0
        %v3189 = vmax.f32 %v3092, 0.0
        %v3190 = vmax.f32 %v3094, 0.0
        %v3191 = vmax.f32 %v3096, 0.0
        %v3192 = vmax.f32 %v3100, 0.0
        %v3193 = vmax.f32 %v3102, 0.0
        %v3194 = vmax.f32 %v3104, 0.0
        %v3195 = vmax.f32 %v3106, 0.0
        %v3196 = vmax.f32 %v3110, 0.0
        %v3197 = vmax.f32 %v3112, 0.0
        %v3198 = vmax.f32 %v3114, 0.0
        %v3199 = vmax.f32 %v3116, 0.0
        %v3200 = vmax.f32 %v3120, 0.0
        %v3201 = vmax.f32 %v3122, 0.0
        %v3202 = vmax.f32 %v3124, 0.0
        %v3203 = vmax.f32 %v3126, 0.0
        %v3204 = vmax.f32 %v3130, 0.0
        %v3205 = vmax.f32 %v3132, 0.0
        %v3206 = vmax.f32 %v3134, 0.0
        %v3207 = vmax.f32 %v3136, 0.0
        %v3208 = vmax.f32 %v3140, 0.0
        %v3209 = vmax.f32 %v3142, 0.0
        %v3210 = vmax.f32 %v3144, 0.0
        %v3211 = vmax.f32 %v3146, 0.0
        %v3212 = vpack.c.bf16 %v3150, %v3148
        %v3213 = vpack.c.bf16 %v3151, %v3149
        %v3214 = vpack.c.bf16 %v3154, %v3152
        %v3215 = vpack.c.bf16 %v3155, %v3153
        %v3216 = vpack.c.bf16 %v3158, %v3156
        %v3217 = vpack.c.bf16 %v3159, %v3157
        %v3218 = vpack.c.bf16 %v3162, %v3160
        %v3219 = vpack.c.bf16 %v3163, %v3161
        %v3220 = vpack.c.bf16 %v3166, %v3164
        %v3221 = vpack.c.bf16 %v3167, %v3165
        %v3222 = vpack.c.bf16 %v3170, %v3168
        %v3223 = vpack.c.bf16 %v3171, %v3169
        %v3224 = vpack.c.bf16 %v3174, %v3172
        %v3225 = vpack.c.bf16 %v3175, %v3173
        %v3226 = vpack.c.bf16 %v3178, %v3176
        %v3227 = vpack.c.bf16 %v3179, %v3177
        %v3228 = vpack.c.bf16 %v3182, %v3180
        %v3229 = vpack.c.bf16 %v3183, %v3181
        %v3230 = vpack.c.bf16 %v3186, %v3184
        %v3231 = vpack.c.bf16 %v3187, %v3185
        %v3232 = vpack.c.bf16 %v3190, %v3188
        %v3233 = vpack.c.bf16 %v3191, %v3189
        %v3234 = vpack.c.bf16 %v3194, %v3192
        %v3235 = vpack.c.bf16 %v3195, %v3193
        %v3236 = vpack.c.bf16 %v3198, %v3196
        %v3237 = vpack.c.bf16 %v3199, %v3197
        %v3238 = vpack.c.bf16 %v3202, %v3200
        %v3239 = vpack.c.bf16 %v3203, %v3201
        %v3240 = vpack.c.bf16 %v3206, %v3204
        %v3241 = vpack.c.bf16 %v3207, %v3205
        %v3242 = vpack.c.bf16 %v3210, %v3208
        %v3243 = vpack.c.bf16 %v3211, %v3209
        %s3244 = scalar_lea.vmem [#allocation2], 1280
        %v3245 = vld [vmem:[%s3244] sm:$0xff]
        %v3246 = vld [vmem:[%s3244 + $0x8] sm:$0xff]
        %v3247 = vld [vmem:[%s3244 + $0x10] sm:$0xff]
        %v3248 = vld [vmem:[%s3244 + $0x18] sm:$0xff]
        %v3249 = vld [vmem:[%s3244 + $0x20] sm:$0xff]
        %v3250 = vld [vmem:[%s3244 + $0x28] sm:$0xff]
        %v3251 = vld [vmem:[%s3244 + $0x30] sm:$0xff]
        %v3252 = vld [vmem:[%s3244 + $0x38] sm:$0xff]
        %v3253 = vld [vmem:[%s3244 + $0x40] sm:$0xff]
        %v3254 = vld [vmem:[%s3244 + $0x48] sm:$0xff]
        %v3255 = vld [vmem:[%s3244 + $0x50] sm:$0xff]
        %v3256 = vld [vmem:[%s3244 + $0x58] sm:$0xff]
        %v3257 = vld [vmem:[%s3244 + $0x60] sm:$0xff]
        %v3258 = vld [vmem:[%s3244 + $0x68] sm:$0xff]
        %v3259 = vld [vmem:[%s3244 + $0x70] sm:$0xff]
        %v3260 = vld [vmem:[%s3244 + $0x78] sm:$0xff]
        %v3261 = vld [vmem:[%s3244 + $0x80] sm:$0xff]
        %v3262 = vld [vmem:[%s3244 + $0x88] sm:$0xff]
        %v3263 = vld [vmem:[%s3244 + $0x90] sm:$0xff]
        %v3264 = vld [vmem:[%s3244 + $0x98] sm:$0xff]
        %v3265 = vld [vmem:[%s3244 + $0xa0] sm:$0xff]
        %v3266 = vld [vmem:[%s3244 + $0xa8] sm:$0xff]
        %v3267 = vld [vmem:[%s3244 + $0xb0] sm:$0xff]
        %v3268 = vld [vmem:[%s3244 + $0xb8] sm:$0xff]
        %v3269 = vld [vmem:[%s3244 + $0xc0] sm:$0xff]
        %v3270 = vld [vmem:[%s3244 + $0xc8] sm:$0xff]
        %v3271 = vld [vmem:[%s3244 + $0xd0] sm:$0xff]
        %v3272 = vld [vmem:[%s3244 + $0xd8] sm:$0xff]
        %v3273 = vld [vmem:[%s3244 + $0xe0] sm:$0xff]
        %v3274 = vld [vmem:[%s3244 + $0xe8] sm:$0xff]
        %v3275 = vld [vmem:[%s3244 + $0xf0] sm:$0xff]
        %v3276 = vld [vmem:[%s3244 + $0xf8] sm:$0xff]
        %s3277 = scalar_lea.vmem %s4, 10
        %v3278 = vld [vmem:[%s3277] sm:$0x3]
        %v3280 = vlaneseq
        %v3281 = vshrl.u32 %v3280, 7
        %v3282 = vsub.s32 0, %v3281
        %v3283 = vrot.slane %v3278, %v3282
        %v3284 = vlaneseq
        %v3285 = vshrl.u32 %v3284, 7
        %v3286 = vsub.s32 1, %v3285
        %v3287 = vrot.slane %v3278, %v3286
        %v3322 = vunpack.c.l.b16 %v3245
        %v3323 = vunpack.c.h.b16 %v3245
        %v3324 = vunpack.c.l.b16 %v3246
        %v3325 = vunpack.c.h.b16 %v3246
        %v3326 = vunpack.c.l.b16 %v3247
        %v3327 = vunpack.c.h.b16 %v3247
        %v3328 = vunpack.c.l.b16 %v3248
        %v3329 = vunpack.c.h.b16 %v3248
        %v3330 = vunpack.c.l.b16 %v3249
        %v3331 = vunpack.c.h.b16 %v3249
        %v3332 = vunpack.c.l.b16 %v3250
        %v3333 = vunpack.c.h.b16 %v3250
        %v3334 = vunpack.c.l.b16 %v3251
        %v3335 = vunpack.c.h.b16 %v3251
        %v3336 = vunpack.c.l.b16 %v3252
        %v3337 = vunpack.c.h.b16 %v3252
        %v3338 = vunpack.c.l.b16 %v3253
        %v3339 = vunpack.c.h.b16 %v3253
        %v3340 = vunpack.c.l.b16 %v3254
        %v3341 = vunpack.c.h.b16 %v3254
        %v3342 = vunpack.c.l.b16 %v3255
        %v3343 = vunpack.c.h.b16 %v3255
        %v3344 = vunpack.c.l.b16 %v3256
        %v3345 = vunpack.c.h.b16 %v3256
        %v3346 = vunpack.c.l.b16 %v3257
        %v3347 = vunpack.c.h.b16 %v3257
        %v3348 = vunpack.c.l.b16 %v3258
        %v3349 = vunpack.c.h.b16 %v3258
        %v3350 = vunpack.c.l.b16 %v3259
        %v3351 = vunpack.c.h.b16 %v3259
        %v3352 = vunpack.c.l.b16 %v3260
        %v3353 = vunpack.c.h.b16 %v3260
        %v3354 = vunpack.c.l.b16 %v3261
        %v3355 = vunpack.c.h.b16 %v3261
        %v3356 = vunpack.c.l.b16 %v3262
        %v3357 = vunpack.c.h.b16 %v3262
        %v3358 = vunpack.c.l.b16 %v3263
        %v3359 = vunpack.c.h.b16 %v3263
        %v3360 = vunpack.c.l.b16 %v3264
        %v3361 = vunpack.c.h.b16 %v3264
        %v3362 = vunpack.c.l.b16 %v3265
        %v3363 = vunpack.c.h.b16 %v3265
        %v3364 = vunpack.c.l.b16 %v3266
        %v3365 = vunpack.c.h.b16 %v3266
        %v3366 = vunpack.c.l.b16 %v3267
        %v3367 = vunpack.c.h.b16 %v3267
        %v3368 = vunpack.c.l.b16 %v3268
        %v3369 = vunpack.c.h.b16 %v3268
        %v3370 = vunpack.c.l.b16 %v3269
        %v3371 = vunpack.c.h.b16 %v3269
        %v3372 = vunpack.c.l.b16 %v3270
        %v3373 = vunpack.c.h.b16 %v3270
        %v3374 = vunpack.c.l.b16 %v3271
        %v3375 = vunpack.c.h.b16 %v3271
        %v3376 = vunpack.c.l.b16 %v3272
        %v3377 = vunpack.c.h.b16 %v3272
        %v3378 = vunpack.c.l.b16 %v3273
        %v3379 = vunpack.c.h.b16 %v3273
        %v3380 = vunpack.c.l.b16 %v3274
        %v3381 = vunpack.c.h.b16 %v3274
        %v3382 = vunpack.c.l.b16 %v3275
        %v3383 = vunpack.c.h.b16 %v3275
        %v3384 = vunpack.c.l.b16 %v3276
        %v3385 = vunpack.c.h.b16 %v3276
        %v3386 = vpack.c.b16 %v3324, %v3322
        %v3387 = vpack.c.b16 %v3325, %v3323
        %v3388 = vpack.c.b16 %v3328, %v3326
        %v3389 = vpack.c.b16 %v3329, %v3327
        %v3390 = vpack.c.b16 %v3332, %v3330
        %v3391 = vpack.c.b16 %v3333, %v3331
        %v3392 = vpack.c.b16 %v3336, %v3334
        %v3393 = vpack.c.b16 %v3337, %v3335
        %v3394 = vpack.c.b16 %v3340, %v3338
        %v3395 = vpack.c.b16 %v3341, %v3339
        %v3396 = vpack.c.b16 %v3344, %v3342
        %v3397 = vpack.c.b16 %v3345, %v3343
        %v3398 = vpack.c.b16 %v3348, %v3346
        %v3399 = vpack.c.b16 %v3349, %v3347
        %v3400 = vpack.c.b16 %v3352, %v3350
        %v3401 = vpack.c.b16 %v3353, %v3351
        %v3402 = vpack.c.b16 %v3356, %v3354
        %v3403 = vpack.c.b16 %v3357, %v3355
        %v3404 = vpack.c.b16 %v3360, %v3358
        %v3405 = vpack.c.b16 %v3361, %v3359
        %v3406 = vpack.c.b16 %v3364, %v3362
        %v3407 = vpack.c.b16 %v3365, %v3363
        %v3408 = vpack.c.b16 %v3368, %v3366
        %v3409 = vpack.c.b16 %v3369, %v3367
        %v3410 = vpack.c.b16 %v3372, %v3370
        %v3411 = vpack.c.b16 %v3373, %v3371
        %v3412 = vpack.c.b16 %v3376, %v3374
        %v3413 = vpack.c.b16 %v3377, %v3375
        %v3414 = vpack.c.b16 %v3380, %v3378
        %v3415 = vpack.c.b16 %v3381, %v3379
        %v3416 = vpack.c.b16 %v3384, %v3382
        %v3417 = vpack.c.b16 %v3385, %v3383
        %3450 = vmatprep.subr.bf16.mxu0 %v3387
        %3451 = vmatpush1.bf16.msra.mxu0 %v3386
        %3452 = vmatprep.subr.bf16.mxu0 %v3389
        %3453 = vmatpush1.bf16.msra.mxu0 %v3388
        %3454 = vmatprep.subr.bf16.mxu0 %v3391
        %3455 = vmatpush1.bf16.msra.mxu0 %v3390
        %3456 = vmatprep.subr.bf16.mxu0 %v3393
        %3457 = vmatpush1.bf16.msra.mxu0 %v3392
        %3458 = vmatprep.subr.bf16.mxu0 %v3395
        %3459 = vmatpush1.bf16.msra.mxu0 %v3394
        %3460 = vmatprep.subr.bf16.mxu0 %v3397
        %3461 = vmatpush1.bf16.msra.mxu0 %v3396
        %3462 = vmatprep.subr.bf16.mxu0 %v3399
        %3463 = vmatpush1.bf16.msra.mxu0 %v3398
        %3464 = vmatprep.subr.bf16.mxu0 %v3401
        %3465 = vmatpush1.bf16.msra.mxu0 %v3400
        %3466 = vmatprep.subr.bf16.mxu0 %v3403
        %3467 = vmatpush1.bf16.msra.mxu0 %v3402
        %3468 = vmatprep.subr.bf16.mxu0 %v3405
        %3469 = vmatpush1.bf16.msra.mxu0 %v3404
        %3470 = vmatprep.subr.bf16.mxu0 %v3407
        %3471 = vmatpush1.bf16.msra.mxu0 %v3406
        %3472 = vmatprep.subr.bf16.mxu0 %v3409
        %3473 = vmatpush1.bf16.msra.mxu0 %v3408
        %3474 = vmatprep.subr.bf16.mxu0 %v3411
        %3475 = vmatpush1.bf16.msra.mxu0 %v3410
        %3476 = vmatprep.subr.bf16.mxu0 %v3413
        %3477 = vmatpush1.bf16.msra.mxu0 %v3412
        %3478 = vmatprep.subr.bf16.mxu0 %v3415
        %3479 = vmatpush1.bf16.msra.mxu0 %v3414
        %3480 = vmatprep.subr.bf16.mxu0 %v3417
        %3481 = vmatpush1.bf16.msra.mxu0 %v3416
        %3482 = vmatprep.mubr.bf16.mxu0 %v3213
        %3483 = vmatmul.mubr.bf16.gmra.mrb[0].mxu0 %v3212
        %v3484 = vpop.f32.mrb[0].mxu0
        %v3485 = vadd.f32 %v3283, %v3484
        %v3486 = vpop.f32.mrb[0].mxu0
        %v3487 = vadd.f32 %v3287, %v3486
        %v3488 = vpop.f32.mrb[0].mxu0
        %v3489 = vadd.f32 %v3283, %v3488
        %v3490 = vpop.f32.mrb[0].mxu0
        %v3491 = vadd.f32 %v3287, %v3490
        %3492 = vmatprep.mubr.bf16.mxu0 %v3215
        %3493 = vmatmul.mubr.bf16.gmra.mrb[0].mxu0 %v3214
        %v3494 = vpop.f32.mrb[0].mxu0
        %v3495 = vadd.f32 %v3283, %v3494
        %v3496 = vpop.f32.mrb[0].mxu0
        %v3497 = vadd.f32 %v3287, %v3496
        %v3498 = vpop.f32.mrb[0].mxu0
        %v3499 = vadd.f32 %v3283, %v3498
        %v3500 = vpop.f32.mrb[0].mxu0
        %v3501 = vadd.f32 %v3287, %v3500
        %3502 = vmatprep.mubr.bf16.mxu0 %v3217
        %3503 = vmatmul.mubr.bf16.gmra.mrb[0].mxu0 %v3216
        %v3504 = vpop.f32.mrb[0].mxu0
        %v3505 = vadd.f32 %v3283, %v3504
        %v3506 = vpop.f32.mrb[0].mxu0
        %v3507 = vadd.f32 %v3287, %v3506
        %v3508 = vpop.f32.mrb[0].mxu0
        %v3509 = vadd.f32 %v3283, %v3508
        %v3510 = vpop.f32.mrb[0].mxu0
        %v3511 = vadd.f32 %v3287, %v3510
        %3512 = vmatprep.mubr.bf16.mxu0 %v3219
        %3513 = vmatmul.mubr.bf16.gmra.mrb[0].mxu0 %v3218
        %v3514 = vpop.f32.mrb[0].mxu0
        %v3515 = vadd.f32 %v3283, %v3514
        %v3516 = vpop.f32.mrb[0].mxu0
        %v3517 = vadd.f32 %v3287, %v3516
        %v3518 = vpop.f32.mrb[0].mxu0
        %v3519 = vadd.f32 %v3283, %v3518
        %v3520 = vpop.f32.mrb[0].mxu0
        %v3521 = vadd.f32 %v3287, %v3520
        %3522 = vmatprep.mubr.bf16.mxu0 %v3221
        %3523 = vmatmul.mubr.bf16.gmra.mrb[0].mxu0 %v3220
        %v3524 = vpop.f32.mrb[0].mxu0
        %v3525 = vadd.f32 %v3283, %v3524
        %v3526 = vpop.f32.mrb[0].mxu0
        %v3527 = vadd.f32 %v3287, %v3526
        %v3528 = vpop.f32.mrb[0].mxu0
        %v3529 = vadd.f32 %v3283, %v3528
        %v3530 = vpop.f32.mrb[0].mxu0
        %v3531 = vadd.f32 %v3287, %v3530
        %3532 = vmatprep.mubr.bf16.mxu0 %v3223
        %3533 = vmatmul.mubr.bf16.gmra.mrb[0].mxu0 %v3222
        %v3534 = vpop.f32.mrb[0].mxu0
        %v3535 = vadd.f32 %v3283, %v3534
        %v3536 = vpop.f32.mrb[0].mxu0
        %v3537 = vadd.f32 %v3287, %v3536
        %v3538 = vpop.f32.mrb[0].mxu0
        %v3539 = vadd.f32 %v3283, %v3538
        %v3540 = vpop.f32.mrb[0].mxu0
        %v3541 = vadd.f32 %v3287, %v3540
        %3542 = vmatprep.mubr.bf16.mxu0 %v3225
        %3543 = vmatmul.mubr.bf16.gmra.mrb[0].mxu0 %v3224
        %v3544 = vpop.f32.mrb[0].mxu0
        %v3545 = vadd.f32 %v3283, %v3544
        %v3546 = vpop.f32.mrb[0].mxu0
        %v3547 = vadd.f32 %v3287, %v3546
        %v3548 = vpop.f32.mrb[0].mxu0
        %v3549 = vadd.f32 %v3283, %v3548
        %v3550 = vpop.f32.mrb[0].mxu0
        %v3551 = vadd.f32 %v3287, %v3550
        %3552 = vmatprep.mubr.bf16.mxu0 %v3227
        %3553 = vmatmul.mubr.bf16.gmra.mrb[0].mxu0 %v3226
        %v3554 = vpop.f32.mrb[0].mxu0
        %v3555 = vadd.f32 %v3283, %v3554
        %v3556 = vpop.f32.mrb[0].mxu0
        %v3557 = vadd.f32 %v3287, %v3556
        %v3558 = vpop.f32.mrb[0].mxu0
        %v3559 = vadd.f32 %v3283, %v3558
        %v3560 = vpop.f32.mrb[0].mxu0
        %v3561 = vadd.f32 %v3287, %v3560
        %3562 = vmatprep.mubr.bf16.mxu0 %v3229
        %3563 = vmatmul.mubr.bf16.gmra.mrb[0].mxu0 %v3228
        %v3564 = vpop.f32.mrb[0].mxu0
        %v3565 = vadd.f32 %v3283, %v3564
        %v3566 = vpop.f32.mrb[0].mxu0
        %v3567 = vadd.f32 %v3287, %v3566
        %v3568 = vpop.f32.mrb[0].mxu0
        %v3569 = vadd.f32 %v3283, %v3568
        %v3570 = vpop.f32.mrb[0].mxu0
        %v3571 = vadd.f32 %v3287, %v3570
        %3572 = vmatprep.mubr.bf16.mxu0 %v3231
        %3573 = vmatmul.mubr.bf16.gmra.mrb[0].mxu0 %v3230
        %v3574 = vpop.f32.mrb[0].mxu0
        %v3575 = vadd.f32 %v3283, %v3574
        %v3576 = vpop.f32.mrb[0].mxu0
        %v3577 = vadd.f32 %v3287, %v3576
        %v3578 = vpop.f32.mrb[0].mxu0
        %v3579 = vadd.f32 %v3283, %v3578
        %v3580 = vpop.f32.mrb[0].mxu0
        %v3581 = vadd.f32 %v3287, %v3580
        %3582 = vmatprep.mubr.bf16.mxu0 %v3233
        %3583 = vmatmul.mubr.bf16.gmra.mrb[0].mxu0 %v3232
        %v3584 = vpop.f32.mrb[0].mxu0
        %v3585 = vadd.f32 %v3283, %v3584
        %v3586 = vpop.f32.mrb[0].mxu0
        %v3587 = vadd.f32 %v3287, %v3586
        %v3588 = vpop.f32.mrb[0].mxu0
        %v3589 = vadd.f32 %v3283, %v3588
        %v3590 = vpop.f32.mrb[0].mxu0
        %v3591 = vadd.f32 %v3287, %v3590
        %3592 = vmatprep.mubr.bf16.mxu0 %v3235
        %3593 = vmatmul.mubr.bf16.gmra.mrb[0].mxu0 %v3234
        %v3594 = vpop.f32.mrb[0].mxu0
        %v3595 = vadd.f32 %v3283, %v3594
        %v3596 = vpop.f32.mrb[0].mxu0
        %v3597 = vadd.f32 %v3287, %v3596
        %v3598 = vpop.f32.mrb[0].mxu0
        %v3599 = vadd.f32 %v3283, %v3598
        %v3600 = vpop.f32.mrb[0].mxu0
        %v3601 = vadd.f32 %v3287, %v3600
        %3602 = vmatprep.mubr.bf16.mxu0 %v3237
        %3603 = vmatmul.mubr.bf16.gmra.mrb[0].mxu0 %v3236
        %v3604 = vpop.f32.mrb[0].mxu0
        %v3605 = vadd.f32 %v3283, %v3604
        %v3606 = vpop.f32.mrb[0].mxu0
        %v3607 = vadd.f32 %v3287, %v3606
        %v3608 = vpop.f32.mrb[0].mxu0
        %v3609 = vadd.f32 %v3283, %v3608
        %v3610 = vpop.f32.mrb[0].mxu0
        %v3611 = vadd.f32 %v3287, %v3610
        %3612 = vmatprep.mubr.bf16.mxu0 %v3239
        %3613 = vmatmul.mubr.bf16.gmra.mrb[0].mxu0 %v3238
        %v3614 = vpop.f32.mrb[0].mxu0
        %v3615 = vadd.f32 %v3283, %v3614
        %v3616 = vpop.f32.mrb[0].mxu0
        %v3617 = vadd.f32 %v3287, %v3616
        %v3618 = vpop.f32.mrb[0].mxu0
        %v3619 = vadd.f32 %v3283, %v3618
        %v3620 = vpop.f32.mrb[0].mxu0
        %v3621 = vadd.f32 %v3287, %v3620
        %3622 = vmatprep.mubr.bf16.mxu0 %v3241
        %3623 = vmatmul.mubr.bf16.gmra.mrb[0].mxu0 %v3240
        %v3624 = vpop.f32.mrb[0].mxu0
        %v3625 = vadd.f32 %v3283, %v3624
        %v3626 = vpop.f32.mrb[0].mxu0
        %v3627 = vadd.f32 %v3287, %v3626
        %v3628 = vpop.f32.mrb[0].mxu0
        %v3629 = vadd.f32 %v3283, %v3628
        %v3630 = vpop.f32.mrb[0].mxu0
        %v3631 = vadd.f32 %v3287, %v3630
        %3632 = vmatprep.mubr.bf16.mxu0 %v3243
        %3633 = vmatmul.mubr.bf16.gmra.mrb[0].mxu0 %v3242
        %v3634 = vpop.f32.mrb[0].mxu0
        %v3635 = vadd.f32 %v3283, %v3634
        %v3636 = vpop.f32.mrb[0].mxu0
        %v3637 = vadd.f32 %v3287, %v3636
        %v3638 = vpop.f32.mrb[0].mxu0
        %v3639 = vadd.f32 %v3283, %v3638
        %v3640 = vpop.f32.mrb[0].mxu0
        %v3641 = vadd.f32 %v3287, %v3640
        %3642 = vdwg.mxu0
        %v3643 = vmax.f32 %v3485, 0.0
        %v3644 = vmax.f32 %v3487, 0.0
        %v3645 = vmax.f32 %v3489, 0.0
        %v3646 = vmax.f32 %v3491, 0.0
        %v3647 = vmax.f32 %v3495, 0.0
        %v3648 = vmax.f32 %v3497, 0.0
        %v3649 = vmax.f32 %v3499, 0.0
        %v3650 = vmax.f32 %v3501, 0.0
        %v3651 = vmax.f32 %v3505, 0.0
        %v3652 = vmax.f32 %v3507, 0.0
        %v3653 = vmax.f32 %v3509, 0.0
        %v3654 = vmax.f32 %v3511, 0.0
        %v3655 = vmax.f32 %v3515, 0.0
        %v3656 = vmax.f32 %v3517, 0.0
        %v3657 = vmax.f32 %v3519, 0.0
        %v3658 = vmax.f32 %v3521, 0.0
        %v3659 = vmax.f32 %v3525, 0.0
        %v3660 = vmax.f32 %v3527, 0.0
        %v3661 = vmax.f32 %v3529, 0.0
        %v3662 = vmax.f32 %v3531, 0.0
        %v3663 = vmax.f32 %v3535, 0.0
        %v3664 = vmax.f32 %v3537, 0.0
        %v3665 = vmax.f32 %v3539, 0.0
        %v3666 = vmax.f32 %v3541, 0.0
        %v3667 = vmax.f32 %v3545, 0.0
        %v3668 = vmax.f32 %v3547, 0.0
        %v3669 = vmax.f32 %v3549, 0.0
        %v3670 = vmax.f32 %v3551, 0.0
        %v3671 = vmax.f32 %v3555, 0.0
        %v3672 = vmax.f32 %v3557, 0.0
        %v3673 = vmax.f32 %v3559, 0.0
        %v3674 = vmax.f32 %v3561, 0.0
        %v3675 = vmax.f32 %v3565, 0.0
        %v3676 = vmax.f32 %v3567, 0.0
        %v3677 = vmax.f32 %v3569, 0.0
        %v3678 = vmax.f32 %v3571, 0.0
        %v3679 = vmax.f32 %v3575, 0.0
        %v3680 = vmax.f32 %v3577, 0.0
        %v3681 = vmax.f32 %v3579, 0.0
        %v3682 = vmax.f32 %v3581, 0.0
        %v3683 = vmax.f32 %v3585, 0.0
        %v3684 = vmax.f32 %v3587, 0.0
        %v3685 = vmax.f32 %v3589, 0.0
        %v3686 = vmax.f32 %v3591, 0.0
        %v3687 = vmax.f32 %v3595, 0.0
        %v3688 = vmax.f32 %v3597, 0.0
        %v3689 = vmax.f32 %v3599, 0.0
        %v3690 = vmax.f32 %v3601, 0.0
        %v3691 = vmax.f32 %v3605, 0.0
        %v3692 = vmax.f32 %v3607, 0.0
        %v3693 = vmax.f32 %v3609, 0.0
        %v3694 = vmax.f32 %v3611, 0.0
        %v3695 = vmax.f32 %v3615, 0.0
        %v3696 = vmax.f32 %v3617, 0.0
        %v3697 = vmax.f32 %v3619, 0.0
        %v3698 = vmax.f32 %v3621, 0.0
        %v3699 = vmax.f32 %v3625, 0.0
        %v3700 = vmax.f32 %v3627, 0.0
        %v3701 = vmax.f32 %v3629, 0.0
        %v3702 = vmax.f32 %v3631, 0.0
        %v3703 = vmax.f32 %v3635, 0.0
        %v3704 = vmax.f32 %v3637, 0.0
        %v3705 = vmax.f32 %v3639, 0.0
        %v3706 = vmax.f32 %v3641, 0.0
        %v3707 = vpack.c.bf16 %v3645, %v3643
        %v3708 = vpack.c.bf16 %v3646, %v3644
        %v3709 = vpack.c.bf16 %v3649, %v3647
        %v3710 = vpack.c.bf16 %v3650, %v3648
        %v3711 = vpack.c.bf16 %v3653, %v3651
        %v3712 = vpack.c.bf16 %v3654, %v3652
        %v3713 = vpack.c.bf16 %v3657, %v3655
        %v3714 = vpack.c.bf16 %v3658, %v3656
        %v3715 = vpack.c.bf16 %v3661, %v3659
        %v3716 = vpack.c.bf16 %v3662, %v3660
        %v3717 = vpack.c.bf16 %v3665, %v3663
        %v3718 = vpack.c.bf16 %v3666, %v3664
        %v3719 = vpack.c.bf16 %v3669, %v3667
        %v3720 = vpack.c.bf16 %v3670, %v3668
        %v3721 = vpack.c.bf16 %v3673, %v3671
        %v3722 = vpack.c.bf16 %v3674, %v3672
        %v3723 = vpack.c.bf16 %v3677, %v3675
        %v3724 = vpack.c.bf16 %v3678, %v3676
        %v3725 = vpack.c.bf16 %v3681, %v3679
        %v3726 = vpack.c.bf16 %v3682, %v3680
        %v3727 = vpack.c.bf16 %v3685, %v3683
        %v3728 = vpack.c.bf16 %v3686, %v3684
        %v3729 = vpack.c.bf16 %v3689, %v3687
        %v3730 = vpack.c.bf16 %v3690, %v3688
        %v3731 = vpack.c.bf16 %v3693, %v3691
        %v3732 = vpack.c.bf16 %v3694, %v3692
        %v3733 = vpack.c.bf16 %v3697, %v3695
        %v3734 = vpack.c.bf16 %v3698, %v3696
        %v3735 = vpack.c.bf16 %v3701, %v3699
        %v3736 = vpack.c.bf16 %v3702, %v3700
        %v3737 = vpack.c.bf16 %v3705, %v3703
        %v3738 = vpack.c.bf16 %v3706, %v3704
        %s3739 = scalar_lea.vmem [#allocation2], 1536
        %v3740 = vld [vmem:[%s3739] sm:$0xff]
        %v3741 = vld [vmem:[%s3739 + $0x8] sm:$0xff]
        %v3742 = vld [vmem:[%s3739 + $0x10] sm:$0xff]
        %v3743 = vld [vmem:[%s3739 + $0x18] sm:$0xff]
        %v3744 = vld [vmem:[%s3739 + $0x20] sm:$0xff]
        %v3745 = vld [vmem:[%s3739 + $0x28] sm:$0xff]
        %v3746 = vld [vmem:[%s3739 + $0x30] sm:$0xff]
        %v3747 = vld [vmem:[%s3739 + $0x38] sm:$0xff]
        %v3748 = vld [vmem:[%s3739 + $0x40] sm:$0xff]
        %v3749 = vld [vmem:[%s3739 + $0x48] sm:$0xff]
        %v3750 = vld [vmem:[%s3739 + $0x50] sm:$0xff]
        %v3751 = vld [vmem:[%s3739 + $0x58] sm:$0xff]
        %v3752 = vld [vmem:[%s3739 + $0x60] sm:$0xff]
        %v3753 = vld [vmem:[%s3739 + $0x68] sm:$0xff]
        %v3754 = vld [vmem:[%s3739 + $0x70] sm:$0xff]
        %v3755 = vld [vmem:[%s3739 + $0x78] sm:$0xff]
        %v3756 = vld [vmem:[%s3739 + $0x80] sm:$0xff]
        %v3757 = vld [vmem:[%s3739 + $0x88] sm:$0xff]
        %v3758 = vld [vmem:[%s3739 + $0x90] sm:$0xff]
        %v3759 = vld [vmem:[%s3739 + $0x98] sm:$0xff]
        %v3760 = vld [vmem:[%s3739 + $0xa0] sm:$0xff]
        %v3761 = vld [vmem:[%s3739 + $0xa8] sm:$0xff]
        %v3762 = vld [vmem:[%s3739 + $0xb0] sm:$0xff]
        %v3763 = vld [vmem:[%s3739 + $0xb8] sm:$0xff]
        %v3764 = vld [vmem:[%s3739 + $0xc0] sm:$0xff]
        %v3765 = vld [vmem:[%s3739 + $0xc8] sm:$0xff]
        %v3766 = vld [vmem:[%s3739 + $0xd0] sm:$0xff]
        %v3767 = vld [vmem:[%s3739 + $0xd8] sm:$0xff]
        %v3768 = vld [vmem:[%s3739 + $0xe0] sm:$0xff]
        %v3769 = vld [vmem:[%s3739 + $0xe8] sm:$0xff]
        %v3770 = vld [vmem:[%s3739 + $0xf0] sm:$0xff]
        %v3771 = vld [vmem:[%s3739 + $0xf8] sm:$0xff]
        %s3772 = scalar_lea.vmem %s4, 12
        %v3773 = vld [vmem:[%s3772] sm:$0x3]
        %v3775 = vlaneseq
        %v3776 = vshrl.u32 %v3775, 7
        %v3777 = vsub.s32 0, %v3776
        %v3778 = vrot.slane %v3773, %v3777
        %v3779 = vlaneseq
        %v3780 = vshrl.u32 %v3779, 7
        %v3781 = vsub.s32 1, %v3780
        %v3782 = vrot.slane %v3773, %v3781
        %v3817 = vunpack.c.l.b16 %v3740
        %v3818 = vunpack.c.h.b16 %v3740
        %v3819 = vunpack.c.l.b16 %v3741
        %v3820 = vunpack.c.h.b16 %v3741
        %v3821 = vunpack.c.l.b16 %v3742
        %v3822 = vunpack.c.h.b16 %v3742
        %v3823 = vunpack.c.l.b16 %v3743
        %v3824 = vunpack.c.h.b16 %v3743
        %v3825 = vunpack.c.l.b16 %v3744
        %v3826 = vunpack.c.h.b16 %v3744
        %v3827 = vunpack.c.l.b16 %v3745
        %v3828 = vunpack.c.h.b16 %v3745
        %v3829 = vunpack.c.l.b16 %v3746
        %v3830 = vunpack.c.h.b16 %v3746
        %v3831 = vunpack.c.l.b16 %v3747
        %v3832 = vunpack.c.h.b16 %v3747
        %v3833 = vunpack.c.l.b16 %v3748
        %v3834 = vunpack.c.h.b16 %v3748
        %v3835 = vunpack.c.l.b16 %v3749
        %v3836 = vunpack.c.h.b16 %v3749
        %v3837 = vunpack.c.l.b16 %v3750
        %v3838 = vunpack.c.h.b16 %v3750
        %v3839 = vunpack.c.l.b16 %v3751
        %v3840 = vunpack.c.h.b16 %v3751
        %v3841 = vunpack.c.l.b16 %v3752
        %v3842 = vunpack.c.h.b16 %v3752
        %v3843 = vunpack.c.l.b16 %v3753
        %v3844 = vunpack.c.h.b16 %v3753
        %v3845 = vunpack.c.l.b16 %v3754
        %v3846 = vunpack.c.h.b16 %v3754
        %v3847 = vunpack.c.l.b16 %v3755
        %v3848 = vunpack.c.h.b16 %v3755
        %v3849 = vunpack.c.l.b16 %v3756
        %v3850 = vunpack.c.h.b16 %v3756
        %v3851 = vunpack.c.l.b16 %v3757
        %v3852 = vunpack.c.h.b16 %v3757
        %v3853 = vunpack.c.l.b16 %v3758
        %v3854 = vunpack.c.h.b16 %v3758
        %v3855 = vunpack.c.l.b16 %v3759
        %v3856 = vunpack.c.h.b16 %v3759
        %v3857 = vunpack.c.l.b16 %v3760
        %v3858 = vunpack.c.h.b16 %v3760
        %v3859 = vunpack.c.l.b16 %v3761
        %v3860 = vunpack.c.h.b16 %v3761
        %v3861 = vunpack.c.l.b16 %v3762
        %v3862 = vunpack.c.h.b16 %v3762
        %v3863 = vunpack.c.l.b16 %v3763
        %v3864 = vunpack.c.h.b16 %v3763
        %v3865 = vunpack.c.l.b16 %v3764
        %v3866 = vunpack.c.h.b16 %v3764
        %v3867 = vunpack.c.l.b16 %v3765
        %v3868 = vunpack.c.h.b16 %v3765
        %v3869 = vunpack.c.l.b16 %v3766
        %v3870 = vunpack.c.h.b16 %v3766
        %v3871 = vunpack.c.l.b16 %v3767
        %v3872 = vunpack.c.h.b16 %v3767
        %v3873 = vunpack.c.l.b16 %v3768
        %v3874 = vunpack.c.h.b16 %v3768
        %v3875 = vunpack.c.l.b16 %v3769
        %v3876 = vunpack.c.h.b16 %v3769
        %v3877 = vunpack.c.l.b16 %v3770
        %v3878 = vunpack.c.h.b16 %v3770
        %v3879 = vunpack.c.l.b16 %v3771
        %v3880 = vunpack.c.h.b16 %v3771
        %v3881 = vpack.c.b16 %v3819, %v3817
        %v3882 = vpack.c.b16 %v3820, %v3818
        %v3883 = vpack.c.b16 %v3823, %v3821
        %v3884 = vpack.c.b16 %v3824, %v3822
        %v3885 = vpack.c.b16 %v3827, %v3825
        %v3886 = vpack.c.b16 %v3828, %v3826
        %v3887 = vpack.c.b16 %v3831, %v3829
        %v3888 = vpack.c.b16 %v3832, %v3830
        %v3889 = vpack.c.b16 %v3835, %v3833
        %v3890 = vpack.c.b16 %v3836, %v3834
        %v3891 = vpack.c.b16 %v3839, %v3837
        %v3892 = vpack.c.b16 %v3840, %v3838
        %v3893 = vpack.c.b16 %v3843, %v3841
        %v3894 = vpack.c.b16 %v3844, %v3842
        %v3895 = vpack.c.b16 %v3847, %v3845
        %v3896 = vpack.c.b16 %v3848, %v3846
        %v3897 = vpack.c.b16 %v3851, %v3849
        %v3898 = vpack.c.b16 %v3852, %v3850
        %v3899 = vpack.c.b16 %v3855, %v3853
        %v3900 = vpack.c.b16 %v3856, %v3854
        %v3901 = vpack.c.b16 %v3859, %v3857
        %v3902 = vpack.c.b16 %v3860, %v3858
        %v3903 = vpack.c.b16 %v3863, %v3861
        %v3904 = vpack.c.b16 %v3864, %v3862
        %v3905 = vpack.c.b16 %v3867, %v3865
        %v3906 = vpack.c.b16 %v3868, %v3866
        %v3907 = vpack.c.b16 %v3871, %v3869
        %v3908 = vpack.c.b16 %v3872, %v3870
        %v3909 = vpack.c.b16 %v3875, %v3873
        %v3910 = vpack.c.b16 %v3876, %v3874
        %v3911 = vpack.c.b16 %v3879, %v3877
        %v3912 = vpack.c.b16 %v3880, %v3878
        %3945 = vmatprep.subr.bf16.mxu0 %v3882
        %3946 = vmatpush1.bf16.msra.mxu0 %v3881
        %3947 = vmatprep.subr.bf16.mxu0 %v3884
        %3948 = vmatpush1.bf16.msra.mxu0 %v3883
        %3949 = vmatprep.subr.bf16.mxu0 %v3886
        %3950 = vmatpush1.bf16.msra.mxu0 %v3885
        %3951 = vmatprep.subr.bf16.mxu0 %v3888
        %3952 = vmatpush1.bf16.msra.mxu0 %v3887
        %3953 = vmatprep.subr.bf16.mxu0 %v3890
        %3954 = vmatpush1.bf16.msra.mxu0 %v3889
        %3955 = vmatprep.subr.bf16.mxu0 %v3892
        %3956 = vmatpush1.bf16.msra.mxu0 %v3891
        %3957 = vmatprep.subr.bf16.mxu0 %v3894
        %3958 = vmatpush1.bf16.msra.mxu0 %v3893
        %3959 = vmatprep.subr.bf16.mxu0 %v3896
        %3960 = vmatpush1.bf16.msra.mxu0 %v3895
        %3961 = vmatprep.subr.bf16.mxu0 %v3898
        %3962 = vmatpush1.bf16.msra.mxu0 %v3897
        %3963 = vmatprep.subr.bf16.mxu0 %v3900
        %3964 = vmatpush1.bf16.msra.mxu0 %v3899
        %3965 = vmatprep.subr.bf16.mxu0 %v3902
        %3966 = vmatpush1.bf16.msra.mxu0 %v3901
        %3967 = vmatprep.subr.bf16.mxu0 %v3904
        %3968 = vmatpush1.bf16.msra.mxu0 %v3903
        %3969 = vmatprep.subr.bf16.mxu0 %v3906
        %3970 = vmatpush1.bf16.msra.mxu0 %v3905
        %3971 = vmatprep.subr.bf16.mxu0 %v3908
        %3972 = vmatpush1.bf16.msra.mxu0 %v3907
        %3973 = vmatprep.subr.bf16.mxu0 %v3910
        %3974 = vmatpush1.bf16.msra.mxu0 %v3909
        %3975 = vmatprep.subr.bf16.mxu0 %v3912
        %3976 = vmatpush1.bf16.msra.mxu0 %v3911
        %3977 = vmatprep.mubr.bf16.mxu0 %v3708
        %3978 = vmatmul.mubr.bf16.gmra.mrb[0].mxu0 %v3707
        %v3979 = vpop.f32.mrb[0].mxu0
        %v3980 = vadd.f32 %v3778, %v3979
        %v3981 = vpop.f32.mrb[0].mxu0
        %v3982 = vadd.f32 %v3782, %v3981
        %v3983 = vpop.f32.mrb[0].mxu0
        %v3984 = vadd.f32 %v3778, %v3983
        %v3985 = vpop.f32.mrb[0].mxu0
        %v3986 = vadd.f32 %v3782, %v3985
        %3987 = vmatprep.mubr.bf16.mxu0 %v3710
        %3988 = vmatmul.mubr.bf16.gmra.mrb[0].mxu0 %v3709
        %v3989 = vpop.f32.mrb[0].mxu0
        %v3990 = vadd.f32 %v3778, %v3989
        %v3991 = vpop.f32.mrb[0].mxu0
        %v3992 = vadd.f32 %v3782, %v3991
        %v3993 = vpop.f32.mrb[0].mxu0
        %v3994 = vadd.f32 %v3778, %v3993
        %v3995 = vpop.f32.mrb[0].mxu0
        %v3996 = vadd.f32 %v3782, %v3995
        %3997 = vmatprep.mubr.bf16.mxu0 %v3712
        %3998 = vmatmul.mubr.bf16.gmra.mrb[0].mxu0 %v3711
        %v3999 = vpop.f32.mrb[0].mxu0
        %v4000 = vadd.f32 %v3778, %v3999
        %v4001 = vpop.f32.mrb[0].mxu0
        %v4002 = vadd.f32 %v3782, %v4001
        %v4003 = vpop.f32.mrb[0].mxu0
        %v4004 = vadd.f32 %v3778, %v4003
        %v4005 = vpop.f32.mrb[0].mxu0
        %v4006 = vadd.f32 %v3782, %v4005
        %4007 = vmatprep.mubr.bf16.mxu0 %v3714
        %4008 = vmatmul.mubr.bf16.gmra.mrb[0].mxu0 %v3713
        %v4009 = vpop.f32.mrb[0].mxu0
        %v4010 = vadd.f32 %v3778, %v4009
        %v4011 = vpop.f32.mrb[0].mxu0
        %v4012 = vadd.f32 %v3782, %v4011
        %v4013 = vpop.f32.mrb[0].mxu0
        %v4014 = vadd.f32 %v3778, %v4013
        %v4015 = vpop.f32.mrb[0].mxu0
        %v4016 = vadd.f32 %v3782, %v4015
        %4017 = vmatprep.mubr.bf16.mxu0 %v3716
        %4018 = vmatmul.mubr.bf16.gmra.mrb[0].mxu0 %v3715
        %v4019 = vpop.f32.mrb[0].mxu0
        %v4020 = vadd.f32 %v3778, %v4019
        %v4021 = vpop.f32.mrb[0].mxu0
        %v4022 = vadd.f32 %v3782, %v4021
        %v4023 = vpop.f32.mrb[0].mxu0
        %v4024 = vadd.f32 %v3778, %v4023
        %v4025 = vpop.f32.mrb[0].mxu0
        %v4026 = vadd.f32 %v3782, %v4025
        %4027 = vmatprep.mubr.bf16.mxu0 %v3718
        %4028 = vmatmul.mubr.bf16.gmra.mrb[0].mxu0 %v3717
        %v4029 = vpop.f32.mrb[0].mxu0
        %v4030 = vadd.f32 %v3778, %v4029
        %v4031 = vpop.f32.mrb[0].mxu0
        %v4032 = vadd.f32 %v3782, %v4031
        %v4033 = vpop.f32.mrb[0].mxu0
        %v4034 = vadd.f32 %v3778, %v4033
        %v4035 = vpop.f32.mrb[0].mxu0
        %v4036 = vadd.f32 %v3782, %v4035
        %4037 = vmatprep.mubr.bf16.mxu0 %v3720
        %4038 = vmatmul.mubr.bf16.gmra.mrb[0].mxu0 %v3719
        %v4039 = vpop.f32.mrb[0].mxu0
        %v4040 = vadd.f32 %v3778, %v4039
        %v4041 = vpop.f32.mrb[0].mxu0
        %v4042 = vadd.f32 %v3782, %v4041
        %v4043 = vpop.f32.mrb[0].mxu0
        %v4044 = vadd.f32 %v3778, %v4043
        %v4045 = vpop.f32.mrb[0].mxu0
        %v4046 = vadd.f32 %v3782, %v4045
        %4047 = vmatprep.mubr.bf16.mxu0 %v3722
        %4048 = vmatmul.mubr.bf16.gmra.mrb[0].mxu0 %v3721
        %v4049 = vpop.f32.mrb[0].mxu0
        %v4050 = vadd.f32 %v3778, %v4049
        %v4051 = vpop.f32.mrb[0].mxu0
        %v4052 = vadd.f32 %v3782, %v4051
        %v4053 = vpop.f32.mrb[0].mxu0
        %v4054 = vadd.f32 %v3778, %v4053
        %v4055 = vpop.f32.mrb[0].mxu0
        %v4056 = vadd.f32 %v3782, %v4055
        %4057 = vmatprep.mubr.bf16.mxu0 %v3724
        %4058 = vmatmul.mubr.bf16.gmra.mrb[0].mxu0 %v3723
        %v4059 = vpop.f32.mrb[0].mxu0
        %v4060 = vadd.f32 %v3778, %v4059
        %v4061 = vpop.f32.mrb[0].mxu0
        %v4062 = vadd.f32 %v3782, %v4061
        %v4063 = vpop.f32.mrb[0].mxu0
        %v4064 = vadd.f32 %v3778, %v4063
        %v4065 = vpop.f32.mrb[0].mxu0
        %v4066 = vadd.f32 %v3782, %v4065
        %4067 = vmatprep.mubr.bf16.mxu0 %v3726
        %4068 = vmatmul.mubr.bf16.gmra.mrb[0].mxu0 %v3725
        %v4069 = vpop.f32.mrb[0].mxu0
        %v4070 = vadd.f32 %v3778, %v4069
        %v4071 = vpop.f32.mrb[0].mxu0
        %v4072 = vadd.f32 %v3782, %v4071
        %v4073 = vpop.f32.mrb[0].mxu0
        %v4074 = vadd.f32 %v3778, %v4073
        %v4075 = vpop.f32.mrb[0].mxu0
        %v4076 = vadd.f32 %v3782, %v4075
        %4077 = vmatprep.mubr.bf16.mxu0 %v3728
        %4078 = vmatmul.mubr.bf16.gmra.mrb[0].mxu0 %v3727
        %v4079 = vpop.f32.mrb[0].mxu0
        %v4080 = vadd.f32 %v3778, %v4079
        %v4081 = vpop.f32.mrb[0].mxu0
        %v4082 = vadd.f32 %v3782, %v4081
        %v4083 = vpop.f32.mrb[0].mxu0
        %v4084 = vadd.f32 %v3778, %v4083
        %v4085 = vpop.f32.mrb[0].mxu0
        %v4086 = vadd.f32 %v3782, %v4085
        %4087 = vmatprep.mubr.bf16.mxu0 %v3730
        %4088 = vmatmul.mubr.bf16.gmra.mrb[0].mxu0 %v3729
        %v4089 = vpop.f32.mrb[0].mxu0
        %v4090 = vadd.f32 %v3778, %v4089
        %v4091 = vpop.f32.mrb[0].mxu0
        %v4092 = vadd.f32 %v3782, %v4091
        %v4093 = vpop.f32.mrb[0].mxu0
        %v4094 = vadd.f32 %v3778, %v4093
        %v4095 = vpop.f32.mrb[0].mxu0
        %v4096 = vadd.f32 %v3782, %v4095
        %4097 = vmatprep.mubr.bf16.mxu0 %v3732
        %4098 = vmatmul.mubr.bf16.gmra.mrb[0].mxu0 %v3731
        %v4099 = vpop.f32.mrb[0].mxu0
        %v4100 = vadd.f32 %v3778, %v4099
        %v4101 = vpop.f32.mrb[0].mxu0
        %v4102 = vadd.f32 %v3782, %v4101
        %v4103 = vpop.f32.mrb[0].mxu0
        %v4104 = vadd.f32 %v3778, %v4103
        %v4105 = vpop.f32.mrb[0].mxu0
        %v4106 = vadd.f32 %v3782, %v4105
        %4107 = vmatprep.mubr.bf16.mxu0 %v3734
        %4108 = vmatmul.mubr.bf16.gmra.mrb[0].mxu0 %v3733
        %v4109 = vpop.f32.mrb[0].mxu0
        %v4110 = vadd.f32 %v3778, %v4109
        %v4111 = vpop.f32.mrb[0].mxu0
        %v4112 = vadd.f32 %v3782, %v4111
        %v4113 = vpop.f32.mrb[0].mxu0
        %v4114 = vadd.f32 %v3778, %v4113
        %v4115 = vpop.f32.mrb[0].mxu0
        %v4116 = vadd.f32 %v3782, %v4115
        %4117 = vmatprep.mubr.bf16.mxu0 %v3736
        %4118 = vmatmul.mubr.bf16.gmra.mrb[0].mxu0 %v3735
        %v4119 = vpop.f32.mrb[0].mxu0
        %v4120 = vadd.f32 %v3778, %v4119
        %v4121 = vpop.f32.mrb[0].mxu0
        %v4122 = vadd.f32 %v3782, %v4121
        %v4123 = vpop.f32.mrb[0].mxu0
        %v4124 = vadd.f32 %v3778, %v4123
        %v4125 = vpop.f32.mrb[0].mxu0
        %v4126 = vadd.f32 %v3782, %v4125
        %4127 = vmatprep.mubr.bf16.mxu0 %v3738
        %4128 = vmatmul.mubr.bf16.gmra.mrb[0].mxu0 %v3737
        %v4129 = vpop.f32.mrb[0].mxu0
        %v4130 = vadd.f32 %v3778, %v4129
        %v4131 = vpop.f32.mrb[0].mxu0
        %v4132 = vadd.f32 %v3782, %v4131
        %v4133 = vpop.f32.mrb[0].mxu0
        %v4134 = vadd.f32 %v3778, %v4133
        %v4135 = vpop.f32.mrb[0].mxu0
        %v4136 = vadd.f32 %v3782, %v4135
        %4137 = vdwg.mxu0
        %v4138 = vmax.f32 %v3980, 0.0
        %v4139 = vmax.f32 %v3982, 0.0
        %v4140 = vmax.f32 %v3984, 0.0
        %v4141 = vmax.f32 %v3986, 0.0
        %v4142 = vmax.f32 %v3990, 0.0
        %v4143 = vmax.f32 %v3992, 0.0
        %v4144 = vmax.f32 %v3994, 0.0
        %v4145 = vmax.f32 %v3996, 0.0
        %v4146 = vmax.f32 %v4000, 0.0
        %v4147 = vmax.f32 %v4002, 0.0
        %v4148 = vmax.f32 %v4004, 0.0
        %v4149 = vmax.f32 %v4006, 0.0
        %v4150 = vmax.f32 %v4010, 0.0
        %v4151 = vmax.f32 %v4012, 0.0
        %v4152 = vmax.f32 %v4014, 0.0
        %v4153 = vmax.f32 %v4016, 0.0
        %v4154 = vmax.f32 %v4020, 0.0
        %v4155 = vmax.f32 %v4022, 0.0
        %v4156 = vmax.f32 %v4024, 0.0
        %v4157 = vmax.f32 %v4026, 0.0
        %v4158 = vmax.f32 %v4030, 0.0
        %v4159 = vmax.f32 %v4032, 0.0
        %v4160 = vmax.f32 %v4034, 0.0
        %v4161 = vmax.f32 %v4036, 0.0
        %v4162 = vmax.f32 %v4040, 0.0
        %v4163 = vmax.f32 %v4042, 0.0
        %v4164 = vmax.f32 %v4044, 0.0
        %v4165 = vmax.f32 %v4046, 0.0
        %v4166 = vmax.f32 %v4050, 0.0
        %v4167 = vmax.f32 %v4052, 0.0
        %v4168 = vmax.f32 %v4054, 0.0
        %v4169 = vmax.f32 %v4056, 0.0
        %v4170 = vmax.f32 %v4060, 0.0
        %v4171 = vmax.f32 %v4062, 0.0
        %v4172 = vmax.f32 %v4064, 0.0
        %v4173 = vmax.f32 %v4066, 0.0
        %v4174 = vmax.f32 %v4070, 0.0
        %v4175 = vmax.f32 %v4072, 0.0
        %v4176 = vmax.f32 %v4074, 0.0
        %v4177 = vmax.f32 %v4076, 0.0
        %v4178 = vmax.f32 %v4080, 0.0
        %v4179 = vmax.f32 %v4082, 0.0
        %v4180 = vmax.f32 %v4084, 0.0
        %v4181 = vmax.f32 %v4086, 0.0
        %v4182 = vmax.f32 %v4090, 0.0
        %v4183 = vmax.f32 %v4092, 0.0
        %v4184 = vmax.f32 %v4094, 0.0
        %v4185 = vmax.f32 %v4096, 0.0
        %v4186 = vmax.f32 %v4100, 0.0
        %v4187 = vmax.f32 %v4102, 0.0
        %v4188 = vmax.f32 %v4104, 0.0
        %v4189 = vmax.f32 %v4106, 0.0
        %v4190 = vmax.f32 %v4110, 0.0
        %v4191 = vmax.f32 %v4112, 0.0
        %v4192 = vmax.f32 %v4114, 0.0
        %v4193 = vmax.f32 %v4116, 0.0
        %v4194 = vmax.f32 %v4120, 0.0
        %v4195 = vmax.f32 %v4122, 0.0
        %v4196 = vmax.f32 %v4124, 0.0
        %v4197 = vmax.f32 %v4126, 0.0
        %v4198 = vmax.f32 %v4130, 0.0
        %v4199 = vmax.f32 %v4132, 0.0
        %v4200 = vmax.f32 %v4134, 0.0
        %v4201 = vmax.f32 %v4136, 0.0
        %v4202 = vpack.c.bf16 %v4140, %v4138
        %v4203 = vpack.c.bf16 %v4141, %v4139
        %v4204 = vpack.c.bf16 %v4144, %v4142
        %v4205 = vpack.c.bf16 %v4145, %v4143
        %v4206 = vpack.c.bf16 %v4148, %v4146
        %v4207 = vpack.c.bf16 %v4149, %v4147
        %v4208 = vpack.c.bf16 %v4152, %v4150
        %v4209 = vpack.c.bf16 %v4153, %v4151
        %v4210 = vpack.c.bf16 %v4156, %v4154
        %v4211 = vpack.c.bf16 %v4157, %v4155
        %v4212 = vpack.c.bf16 %v4160, %v4158
        %v4213 = vpack.c.bf16 %v4161, %v4159
        %v4214 = vpack.c.bf16 %v4164, %v4162
        %v4215 = vpack.c.bf16 %v4165, %v4163
        %v4216 = vpack.c.bf16 %v4168, %v4166
        %v4217 = vpack.c.bf16 %v4169, %v4167
        %v4218 = vpack.c.bf16 %v4172, %v4170
        %v4219 = vpack.c.bf16 %v4173, %v4171
        %v4220 = vpack.c.bf16 %v4176, %v4174
        %v4221 = vpack.c.bf16 %v4177, %v4175
        %v4222 = vpack.c.bf16 %v4180, %v4178
        %v4223 = vpack.c.bf16 %v4181, %v4179
        %v4224 = vpack.c.bf16 %v4184, %v4182
        %v4225 = vpack.c.bf16 %v4185, %v4183
        %v4226 = vpack.c.bf16 %v4188, %v4186
        %v4227 = vpack.c.bf16 %v4189, %v4187
        %v4228 = vpack.c.bf16 %v4192, %v4190
        %v4229 = vpack.c.bf16 %v4193, %v4191
        %v4230 = vpack.c.bf16 %v4196, %v4194
        %v4231 = vpack.c.bf16 %v4197, %v4195
        %v4232 = vpack.c.bf16 %v4200, %v4198
        %v4233 = vpack.c.bf16 %v4201, %v4199
        %v4234 = vld [vmem:[%s5] sm:$0xf]
        %v4235 = vld [vmem:[%s5 + $0x4] sm:$0xf]
        %v4236 = vld [vmem:[%s5 + $0x8] sm:$0xf]
        %v4237 = vld [vmem:[%s5 + $0xc] sm:$0xf]
        %v4238 = vld [vmem:[%s5 + $0x10] sm:$0xf]
        %v4239 = vld [vmem:[%s5 + $0x14] sm:$0xf]
        %v4240 = vld [vmem:[%s5 + $0x18] sm:$0xf]
        %v4241 = vld [vmem:[%s5 + $0x1c] sm:$0xf]
        %v4242 = vld [vmem:[%s5 + $0x20] sm:$0xf]
        %v4243 = vld [vmem:[%s5 + $0x24] sm:$0xf]
        %v4244 = vld [vmem:[%s5 + $0x28] sm:$0xf]
        %v4245 = vld [vmem:[%s5 + $0x2c] sm:$0xf]
        %v4246 = vld [vmem:[%s5 + $0x30] sm:$0xf]
        %v4247 = vld [vmem:[%s5 + $0x34] sm:$0xf]
        %v4248 = vld [vmem:[%s5 + $0x38] sm:$0xf]
        %v4249 = vld [vmem:[%s5 + $0x3c] sm:$0xf]
        %v4250 = vld [vmem:[%s5 + $0x40] sm:$0xf]
        %v4251 = vld [vmem:[%s5 + $0x44] sm:$0xf]
        %v4252 = vld [vmem:[%s5 + $0x48] sm:$0xf]
        %v4253 = vld [vmem:[%s5 + $0x4c] sm:$0xf]
        %v4254 = vld [vmem:[%s5 + $0x50] sm:$0xf]
        %v4255 = vld [vmem:[%s5 + $0x54] sm:$0xf]
        %v4256 = vld [vmem:[%s5 + $0x58] sm:$0xf]
        %v4257 = vld [vmem:[%s5 + $0x5c] sm:$0xf]
        %v4258 = vld [vmem:[%s5 + $0x60] sm:$0xf]
        %v4259 = vld [vmem:[%s5 + $0x64] sm:$0xf]
        %v4260 = vld [vmem:[%s5 + $0x68] sm:$0xf]
        %v4261 = vld [vmem:[%s5 + $0x6c] sm:$0xf]
        %v4262 = vld [vmem:[%s5 + $0x70] sm:$0xf]
        %v4263 = vld [vmem:[%s5 + $0x74] sm:$0xf]
        %v4264 = vld [vmem:[%s5 + $0x78] sm:$0xf]
        %v4265 = vld [vmem:[%s5 + $0x7c] sm:$0xf]
        %v4266 = vld [vmem:[%s6] sm:$0x1]
        %v4268 = vlaneseq
        %v4269 = vshrl.u32 %v4268, 7
        %v4270 = vsub.s32 0, %v4269
        %v4271 = vrot.slane %v4266, %v4270
        %v4305 = vunpack.c.l.b16 %v4234
        %v4306 = vunpack.c.l.b16 %v4235
        %v4307 = vunpack.c.l.b16 %v4236
        %v4308 = vunpack.c.l.b16 %v4237
        %v4309 = vunpack.c.l.b16 %v4238
        %v4310 = vunpack.c.l.b16 %v4239
        %v4311 = vunpack.c.l.b16 %v4240
        %v4312 = vunpack.c.l.b16 %v4241
        %v4313 = vunpack.c.l.b16 %v4242
        %v4314 = vunpack.c.l.b16 %v4243
        %v4315 = vunpack.c.l.b16 %v4244
        %v4316 = vunpack.c.l.b16 %v4245
        %v4317 = vunpack.c.l.b16 %v4246
        %v4318 = vunpack.c.l.b16 %v4247
        %v4319 = vunpack.c.l.b16 %v4248
        %v4320 = vunpack.c.l.b16 %v4249
        %v4321 = vunpack.c.l.b16 %v4250
        %v4322 = vunpack.c.l.b16 %v4251
        %v4323 = vunpack.c.l.b16 %v4252
        %v4324 = vunpack.c.l.b16 %v4253
        %v4325 = vunpack.c.l.b16 %v4254
        %v4326 = vunpack.c.l.b16 %v4255
        %v4327 = vunpack.c.l.b16 %v4256
        %v4328 = vunpack.c.l.b16 %v4257
        %v4329 = vunpack.c.l.b16 %v4258
        %v4330 = vunpack.c.l.b16 %v4259
        %v4331 = vunpack.c.l.b16 %v4260
        %v4332 = vunpack.c.l.b16 %v4261
        %v4333 = vunpack.c.l.b16 %v4262
        %v4334 = vunpack.c.l.b16 %v4263
        %v4335 = vunpack.c.l.b16 %v4264
        %v4336 = vunpack.c.l.b16 %v4265
        %v4337 = vpack.c.b16 %v4306, %v4305
        %v4338 = vpack.c.b16 %v4308, %v4307
        %v4339 = vpack.c.b16 %v4310, %v4309
        %v4340 = vpack.c.b16 %v4312, %v4311
        %v4341 = vpack.c.b16 %v4314, %v4313
        %v4342 = vpack.c.b16 %v4316, %v4315
        %v4343 = vpack.c.b16 %v4318, %v4317
        %v4344 = vpack.c.b16 %v4320, %v4319
        %v4345 = vpack.c.b16 %v4322, %v4321
        %v4346 = vpack.c.b16 %v4324, %v4323
        %v4347 = vpack.c.b16 %v4326, %v4325
        %v4348 = vpack.c.b16 %v4328, %v4327
        %v4349 = vpack.c.b16 %v4330, %v4329
        %v4350 = vpack.c.b16 %v4332, %v4331
        %v4351 = vpack.c.b16 %v4334, %v4333
        %v4352 = vpack.c.b16 %v4336, %v4335
        %4369 = vmatprep.subr.bf16.mxu0 0
        %4370 = vmatpush1.bf16.msra.mxu0 %v4337
        %4371 = vmatprep.subr.bf16.mxu0 0
        %4372 = vmatpush1.bf16.msra.mxu0 %v4338
        %4373 = vmatprep.subr.bf16.mxu0 0
        %4374 = vmatpush1.bf16.msra.mxu0 %v4339
        %4375 = vmatprep.subr.bf16.mxu0 0
        %4376 = vmatpush1.bf16.msra.mxu0 %v4340
        %4377 = vmatprep.subr.bf16.mxu0 0
        %4378 = vmatpush1.bf16.msra.mxu0 %v4341
        %4379 = vmatprep.subr.bf16.mxu0 0
        %4380 = vmatpush1.bf16.msra.mxu0 %v4342
        %4381 = vmatprep.subr.bf16.mxu0 0
        %4382 = vmatpush1.bf16.msra.mxu0 %v4343
        %4383 = vmatprep.subr.bf16.mxu0 0
        %4384 = vmatpush1.bf16.msra.mxu0 %v4344
        %4385 = vmatprep.subr.bf16.mxu0 0
        %4386 = vmatpush1.bf16.msra.mxu0 %v4345
        %4387 = vmatprep.subr.bf16.mxu0 0
        %4388 = vmatpush1.bf16.msra.mxu0 %v4346
        %4389 = vmatprep.subr.bf16.mxu0 0
        %4390 = vmatpush1.bf16.msra.mxu0 %v4347
        %4391 = vmatprep.subr.bf16.mxu0 0
        %4392 = vmatpush1.bf16.msra.mxu0 %v4348
        %4393 = vmatprep.subr.bf16.mxu0 0
        %4394 = vmatpush1.bf16.msra.mxu0 %v4349
        %4395 = vmatprep.subr.bf16.mxu0 0
        %4396 = vmatpush1.bf16.msra.mxu0 %v4350
        %4397 = vmatprep.subr.bf16.mxu0 0
        %4398 = vmatpush1.bf16.msra.mxu0 %v4351
        %4399 = vmatprep.subr.bf16.mxu0 0
        %4400 = vmatpush1.bf16.msra.mxu0 %v4352
        %4401 = vmatprep.mubr.bf16.mxu0 %v4203
        %4402 = vmatmul.mubr.bf16.gmra.mrb[0].mxu0 %v4202
        %v4403 = vpop.f32.mrb[0].mxu0
        %v4404 = vadd.f32 %v4271, %v4403
        %v4405 = vpop.f32.mrb[0].mxu0
        %v4406 = vpop.f32.mrb[0].mxu0
        %v4407 = vadd.f32 %v4271, %v4406
        %v4408 = vpop.f32.mrb[0].mxu0
        %4409 = vmatprep.mubr.bf16.mxu0 %v4205
        %4410 = vmatmul.mubr.bf16.gmra.mrb[0].mxu0 %v4204
        %v4411 = vpop.f32.mrb[0].mxu0
        %v4412 = vadd.f32 %v4271, %v4411
        %v4413 = vpop.f32.mrb[0].mxu0
        %v4414 = vpop.f32.mrb[0].mxu0
        %v4415 = vadd.f32 %v4271, %v4414
        %v4416 = vpop.f32.mrb[0].mxu0
        %4417 = vmatprep.mubr.bf16.mxu0 %v4207
        %4418 = vmatmul.mubr.bf16.gmra.mrb[0].mxu0 %v4206
        %v4419 = vpop.f32.mrb[0].mxu0
        %v4420 = vadd.f32 %v4271, %v4419
        %v4421 = vpop.f32.mrb[0].mxu0
        %v4422 = vpop.f32.mrb[0].mxu0
        %v4423 = vadd.f32 %v4271, %v4422
        %v4424 = vpop.f32.mrb[0].mxu0
        %4425 = vmatprep.mubr.bf16.mxu0 %v4209
        %4426 = vmatmul.mubr.bf16.gmra.mrb[0].mxu0 %v4208
        %v4427 = vpop.f32.mrb[0].mxu0
        %v4428 = vadd.f32 %v4271, %v4427
        %v4429 = vpop.f32.mrb[0].mxu0
        %v4430 = vpop.f32.mrb[0].mxu0
        %v4431 = vadd.f32 %v4271, %v4430
        %v4432 = vpop.f32.mrb[0].mxu0
        %4433 = vmatprep.mubr.bf16.mxu0 %v4211
        %4434 = vmatmul.mubr.bf16.gmra.mrb[0].mxu0 %v4210
        %v4435 = vpop.f32.mrb[0].mxu0
        %v4436 = vadd.f32 %v4271, %v4435
        %v4437 = vpop.f32.mrb[0].mxu0
        %v4438 = vpop.f32.mrb[0].mxu0
        %v4439 = vadd.f32 %v4271, %v4438
        %v4440 = vpop.f32.mrb[0].mxu0
        %4441 = vmatprep.mubr.bf16.mxu0 %v4213
        %4442 = vmatmul.mubr.bf16.gmra.mrb[0].mxu0 %v4212
        %v4443 = vpop.f32.mrb[0].mxu0
        %v4444 = vadd.f32 %v4271, %v4443
        %v4445 = vpop.f32.mrb[0].mxu0
        %v4446 = vpop.f32.mrb[0].mxu0
        %v4447 = vadd.f32 %v4271, %v4446
        %v4448 = vpop.f32.mrb[0].mxu0
        %4449 = vmatprep.mubr.bf16.mxu0 %v4215
        %4450 = vmatmul.mubr.bf16.gmra.mrb[0].mxu0 %v4214
        %v4451 = vpop.f32.mrb[0].mxu0
        %v4452 = vadd.f32 %v4271, %v4451
        %v4453 = vpop.f32.mrb[0].mxu0
        %v4454 = vpop.f32.mrb[0].mxu0
        %v4455 = vadd.f32 %v4271, %v4454
        %v4456 = vpop.f32.mrb[0].mxu0
        %4457 = vmatprep.mubr.bf16.mxu0 %v4217
        %4458 = vmatmul.mubr.bf16.gmra.mrb[0].mxu0 %v4216
        %v4459 = vpop.f32.mrb[0].mxu0
        %v4460 = vadd.f32 %v4271, %v4459
        %v4461 = vpop.f32.mrb[0].mxu0
        %v4462 = vpop.f32.mrb[0].mxu0
        %v4463 = vadd.f32 %v4271, %v4462
        %v4464 = vpop.f32.mrb[0].mxu0
        %4465 = vmatprep.mubr.bf16.mxu0 %v4219
        %4466 = vmatmul.mubr.bf16.gmra.mrb[0].mxu0 %v4218
        %v4467 = vpop.f32.mrb[0].mxu0
        %v4468 = vadd.f32 %v4271, %v4467
        %v4469 = vpop.f32.mrb[0].mxu0
        %v4470 = vpop.f32.mrb[0].mxu0
        %v4471 = vadd.f32 %v4271, %v4470
        %v4472 = vpop.f32.mrb[0].mxu0
        %4473 = vmatprep.mubr.bf16.mxu0 %v4221
        %4474 = vmatmul.mubr.bf16.gmra.mrb[0].mxu0 %v4220
        %v4475 = vpop.f32.mrb[0].mxu0
        %v4476 = vadd.f32 %v4271, %v4475
        %v4477 = vpop.f32.mrb[0].mxu0
        %v4478 = vpop.f32.mrb[0].mxu0
        %v4479 = vadd.f32 %v4271, %v4478
        %v4480 = vpop.f32.mrb[0].mxu0
        %4481 = vmatprep.mubr.bf16.mxu0 %v4223
        %4482 = vmatmul.mubr.bf16.gmra.mrb[0].mxu0 %v4222
        %v4483 = vpop.f32.mrb[0].mxu0
        %v4484 = vadd.f32 %v4271, %v4483
        %v4485 = vpop.f32.mrb[0].mxu0
        %v4486 = vpop.f32.mrb[0].mxu0
        %v4487 = vadd.f32 %v4271, %v4486
        %v4488 = vpop.f32.mrb[0].mxu0
        %4489 = vmatprep.mubr.bf16.mxu0 %v4225
        %4490 = vmatmul.mubr.bf16.gmra.mrb[0].mxu0 %v4224
        %v4491 = vpop.f32.mrb[0].mxu0
        %v4492 = vadd.f32 %v4271, %v4491
        %v4493 = vpop.f32.mrb[0].mxu0
        %v4494 = vpop.f32.mrb[0].mxu0
        %v4495 = vadd.f32 %v4271, %v4494
        %v4496 = vpop.f32.mrb[0].mxu0
        %4497 = vmatprep.mubr.bf16.mxu0 %v4227
        %4498 = vmatmul.mubr.bf16.gmra.mrb[0].mxu0 %v4226
        %v4499 = vpop.f32.mrb[0].mxu0
        %v4500 = vadd.f32 %v4271, %v4499
        %v4501 = vpop.f32.mrb[0].mxu0
        %v4502 = vpop.f32.mrb[0].mxu0
        %v4503 = vadd.f32 %v4271, %v4502
        %v4504 = vpop.f32.mrb[0].mxu0
        %4505 = vmatprep.mubr.bf16.mxu0 %v4229
        %4506 = vmatmul.mubr.bf16.gmra.mrb[0].mxu0 %v4228
        %v4507 = vpop.f32.mrb[0].mxu0
        %v4508 = vadd.f32 %v4271, %v4507
        %v4509 = vpop.f32.mrb[0].mxu0
        %v4510 = vpop.f32.mrb[0].mxu0
        %v4511 = vadd.f32 %v4271, %v4510
        %v4512 = vpop.f32.mrb[0].mxu0
        %4513 = vmatprep.mubr.bf16.mxu0 %v4231
        %4514 = vmatmul.mubr.bf16.gmra.mrb[0].mxu0 %v4230
        %v4515 = vpop.f32.mrb[0].mxu0
        %v4516 = vadd.f32 %v4271, %v4515
        %v4517 = vpop.f32.mrb[0].mxu0
        %v4518 = vpop.f32.mrb[0].mxu0
        %v4519 = vadd.f32 %v4271, %v4518
        %v4520 = vpop.f32.mrb[0].mxu0
        %4521 = vmatprep.mubr.bf16.mxu0 %v4233
        %4522 = vmatmul.mubr.bf16.gmra.mrb[0].mxu0 %v4232
        %v4523 = vpop.f32.mrb[0].mxu0
        %v4524 = vadd.f32 %v4271, %v4523
        %v4525 = vpop.f32.mrb[0].mxu0
        %v4526 = vpop.f32.mrb[0].mxu0
        %v4527 = vadd.f32 %v4271, %v4526
        %v4528 = vpop.f32.mrb[0].mxu0
        %4529 = vdwg.mxu0
        %v4530 = vmax.f32 %v4404, 0.0
        %v4531 = vmax.f32 %v4407, 0.0
        %v4532 = vmax.f32 %v4412, 0.0
        %v4533 = vmax.f32 %v4415, 0.0
        %v4534 = vmax.f32 %v4420, 0.0
        %v4535 = vmax.f32 %v4423, 0.0
        %v4536 = vmax.f32 %v4428, 0.0
        %v4537 = vmax.f32 %v4431, 0.0
        %v4538 = vmax.f32 %v4436, 0.0
        %v4539 = vmax.f32 %v4439, 0.0
        %v4540 = vmax.f32 %v4444, 0.0
        %v4541 = vmax.f32 %v4447, 0.0
        %v4542 = vmax.f32 %v4452, 0.0
        %v4543 = vmax.f32 %v4455, 0.0
        %v4544 = vmax.f32 %v4460, 0.0
        %v4545 = vmax.f32 %v4463, 0.0
        %v4546 = vmax.f32 %v4468, 0.0
        %v4547 = vmax.f32 %v4471, 0.0
        %v4548 = vmax.f32 %v4476, 0.0
        %v4549 = vmax.f32 %v4479, 0.0
        %v4550 = vmax.f32 %v4484, 0.0
        %v4551 = vmax.f32 %v4487, 0.0
        %v4552 = vmax.f32 %v4492, 0.0
        %v4553 = vmax.f32 %v4495, 0.0
        %v4554 = vmax.f32 %v4500, 0.0
        %v4555 = vmax.f32 %v4503, 0.0
        %v4556 = vmax.f32 %v4508, 0.0
        %v4557 = vmax.f32 %v4511, 0.0
        %v4558 = vmax.f32 %v4516, 0.0
        %v4559 = vmax.f32 %v4519, 0.0
        %v4560 = vmax.f32 %v4524, 0.0
        %v4561 = vmax.f32 %v4527, 0.0
        %4562 = vst [vmem:[%s287] sm:$0xff] %v4530
        %4563 = vst [vmem:[%s287 + $0x8] sm:$0xff] %v4531
        %4564 = vst [vmem:[%s287 + $0x10] sm:$0xff] %v4532
        %4565 = vst [vmem:[%s287 + $0x18] sm:$0xff] %v4533
        %4566 = vst [vmem:[%s287 + $0x20] sm:$0xff] %v4534
        %4567 = vst [vmem:[%s287 + $0x28] sm:$0xff] %v4535
        %4568 = vst [vmem:[%s287 + $0x30] sm:$0xff] %v4536
        %4569 = vst [vmem:[%s287 + $0x38] sm:$0xff] %v4537
        %4570 = vst [vmem:[%s287 + $0x40] sm:$0xff] %v4538
        %4571 = vst [vmem:[%s287 + $0x48] sm:$0xff] %v4539
        %4572 = vst [vmem:[%s287 + $0x50] sm:$0xff] %v4540
        %4573 = vst [vmem:[%s287 + $0x58] sm:$0xff] %v4541
        %4574 = vst [vmem:[%s287 + $0x60] sm:$0xff] %v4542
        %4575 = vst [vmem:[%s287 + $0x68] sm:$0xff] %v4543
        %4576 = vst [vmem:[%s287 + $0x70] sm:$0xff] %v4544
        %4577 = vst [vmem:[%s287 + $0x78] sm:$0xff] %v4545
        %4578 = vst [vmem:[%s287 + $0x80] sm:$0xff] %v4546
        %4579 = vst [vmem:[%s287 + $0x88] sm:$0xff] %v4547
        %4580 = vst [vmem:[%s287 + $0x90] sm:$0xff] %v4548
        %4581 = vst [vmem:[%s287 + $0x98] sm:$0xff] %v4549
        %4582 = vst [vmem:[%s287 + $0xa0] sm:$0xff] %v4550
        %4583 = vst [vmem:[%s287 + $0xa8] sm:$0xff] %v4551
        %4584 = vst [vmem:[%s287 + $0xb0] sm:$0xff] %v4552
        %4585 = vst [vmem:[%s287 + $0xb8] sm:$0xff] %v4553
        %4586 = vst [vmem:[%s287 + $0xc0] sm:$0xff] %v4554
        %4587 = vst [vmem:[%s287 + $0xc8] sm:$0xff] %v4555
        %4588 = vst [vmem:[%s287 + $0xd0] sm:$0xff] %v4556
        %4589 = vst [vmem:[%s287 + $0xd8] sm:$0xff] %v4557
        %4590 = vst [vmem:[%s287 + $0xe0] sm:$0xff] %v4558
        %4591 = vst [vmem:[%s287 + $0xe8] sm:$0xff] %v4559
        %4592 = vst [vmem:[%s287 + $0xf0] sm:$0xff] %v4560
        %4593 = vst [vmem:[%s287 + $0xf8] sm:$0xff] %v4561
        %s4594 = sand.u32 %s182, 1
        %s4595 = scalar_lea.sflag [#allocation4], %s4594
        %s4596 = sand.u32 %s182, 1
        %s4597 = smul.addr %s4596, 256
        %s4598 = scalar_lea.vmem [#allocation5], %s4597
        // Predicated region
        $region53: #{tpu_custom_call.1} parent=47 // pred_check
          %p4599 = pneg %p192
        $region54: #{tpu_custom_call.1} parent=47 // pred_check_branch
          %4601 = sbr.rel (%p4599) target = $region56
        $region55: #{tpu_custom_call.1} parent=47 // pred_region
          %s4602 = smul.u32 32, %s22
          %s4604 = ssub.s32 4096, 4096
          %4605 = vsyncadd %s4595, %s4604
          %s4606 = smul.addr %s4602, 128
          %s4607 = scalar_lea.hbm %s7, %s4606
          %s4608 = sshll.u32 %s4598, 4
          %s4609 = int_to_ptr.vmem [resolvable:$true] %s4608
          %4614 = dma.vmem_to_hbm [thread:$0]  %s4609, 4096, %s4607, %s4595, 128, 128, 8
        $region56: #{tpu_custom_call.1} parent=47 // pred_fallthru
          _
      $region48: #{tpu_custom_call.1} parent=5 // pred_fallthru
        _
      %p4615 = scmp.le.s32.totalorder 2, %s17
      // Predicated region
      $region57: #{tpu_custom_call.1} parent=5 // pred_check
        %p4616 = pneg %p4615
      $region58: #{tpu_custom_call.1} parent=5 // pred_check_branch
        %4618 = sbr.rel (%p4616) target = $region60
      $region59: #{tpu_custom_call.1} parent=5 // pred_region
        %s4619 = ssub.s32 %s17, 2
        // Predicated region
        $region61: #{tpu_custom_call.1} parent=59 // pred_check
          %p4620 = pneg %p198
        $region62: #{tpu_custom_call.1} parent=59 // pred_check_branch
          %4622 = sbr.rel (%p4620) target = $region64
        $region63: #{tpu_custom_call.1} parent=59 // pred_region
          %s4623 = sand.u32 %s183, 1
          %s4624 = scalar_lea.sflag [#allocation4], %s4623
          %s4625 = sand.u32 %s183, 1
          %s4626 = smul.addr %s4625, 256
          %s4627 = scalar_lea.vmem [#allocation5], %s4626
          %4628 = dma.done %s4624, 4096
        $region64: #{tpu_custom_call.1} parent=59 // pred_fallthru
          _
      $region60: #{tpu_custom_call.1} parent=5 // pred_fallthru
        _
    $region6: #{tpu_custom_call.1} parent=1 // loop_footer
      %s21 = sadd.s32 1, %s17
    $region7: #{tpu_custom_call.1} parent=1 // loop_footer_branch
      %16 = sbr.rel target = $region3
    $region8: #{tpu_custom_call.1} parent=1 // loop_exit
      _
    %4629 = vsyncpa [#allocation3], 1
    %s4630 = scalar_lea.sflag [#allocation3], 1
    %4631 = vsyncpa %s4630, 1
    %4632 = vsyncpa [#allocation4], 1
    %s4633 = scalar_lea.sflag [#allocation4], 1
    %4634 = vsyncpa %s4633, 1

</llo_original>
